<compile_context>
chip_gen: v5e
topology: v5e:2x2
jax: 0.10.0
libtpu: 0.0.40
codegen_flags: <defaults>
</compile_context>

<pallas_src>
import jax
import jax.numpy as jnp
from jax import lax
from jax.experimental import pallas as pl
from jax.experimental.pallas import tpu as pltpu

_LANES = 128  # lane-dense output width (Cout is zero-padded to this)


def _res_up_kernel(x1_ref, x2_ref, wt_ref, bt_ref, wa_ref, oa_ref,
                   wb_ref, ob_ref, w1_ref, b1_ref, out_ref):
    """Processes one batch element (grid axis 0 = batch)."""
    _, Hh, Wh, Ch = x1_ref.shape          # low-res input (to be upsampled)
    _, H, W, _ = x2_ref.shape             # skip connection (full resolution)
    Cin = 2 * Ch                          # channels after concat
    HW = H * W

    x1 = x1_ref[0]                        # (Hh, Wh, Ch)  f32
    x2 = x2_ref[0]                        # (H,  W,  Ch)  f32

    # ---- ConvTranspose2d(Ch -> Ch, k=2, s=2): ONE fused MXU matmul + 2x2 interleave ----
    x1f = x1.reshape(Hh * Wh, Ch).astype(jnp.bfloat16)
    y_all = jnp.dot(x1f, wt_ref[...], preferred_element_type=jnp.float32)  # (HhWh, 4*Ch)

    def parity(k):                        # kernel tap k = 2*di + dj, f32
        return y_all[:, k * Ch:(k + 1) * Ch].reshape(Hh, Wh, Ch)

    def ilv_w(a, b):                      # out[:, 2q+k, :] = (a, b)[k][:, q, :]
        h, w, c = a.shape
        return jnp.stack([a, b], axis=2).reshape(h, 2 * w, c)

    def ilv_h(a, b):                      # out[2p+k, :, :] = (a, b)[k][p, :, :]
        h, w, c = a.shape
        return jnp.stack([a, b], axis=1).reshape(2 * h, w, c)

    up = ilv_h(ilv_w(parity(0), parity(1)),
               ilv_w(parity(2), parity(3))) + bt_ref[0]          # (H, W, Ch) f32

    # ---- im2col: zero-pad H/W, concat the 9 shifted taps along channels (bf16) ----
    def im2col(v):                        # v: (H, W, C) bf16 -> (HW, 9*C) bf16
        h, w, c = v.shape
        zr = jnp.zeros((1, w, c), v.dtype)
        vp = jnp.concatenate([zr, v, zr], axis=0)
        zc = jnp.zeros((h + 2, 1, c), v.dtype)
        vp = jnp.concatenate([zc, vp, zc], axis=1)
        taps = [vp[di:di + h, dj:dj + w, :] for di in range(3) for dj in range(3)]
        return jnp.concatenate(taps, axis=-1).reshape(h * w, 9 * c)

    # Channel concat [x2 | up] — used both as conv input and as the residual.
    x_cat = jnp.concatenate([x2, up], axis=-1)                    # (H, W, Cin) f32

    # ---- double_conv, conv #1 (Cin -> Cin): single im2col matmul; bias+BN folded; ReLU ----
    hA = jnp.dot(im2col(x_cat.astype(jnp.bfloat16)), wa_ref[...],
                 preferred_element_type=jnp.float32) + oa_ref[0]
    hA = jnp.maximum(hA, 0.0)                                     # (HW, Cin) f32

    # ---- double_conv, conv #2 (Cin -> Cin) ----
    hB = jnp.dot(im2col(hA.astype(jnp.bfloat16).reshape(H, W, Cin)), wb_ref[...],
                 preferred_element_type=jnp.float32) + ob_ref[0]
    hB = jnp.maximum(hB, 0.0)                                     # (HW, Cin) f32

    # ---- residual add + 1x1 conv (Cin -> lane-padded Cout) ----
    h = (hB + x_cat.reshape(HW, Cin)).astype(jnp.bfloat16)
    out = jnp.dot(h, w1_ref[...], preferred_element_type=jnp.float32) + b1_ref[0]

    out_ref[0] = out.reshape(H, W, _LANES)                        # lane-dense store


def _prepare_params(p, eps=1e-5):
    """Fold conv bias + inference BN into weights/offsets; pack for im2col; bf16 MXU weights."""
    def fold(w_pt, b, gamma, beta, mean, var):
        s = gamma / jnp.sqrt(var + eps)                           # (Cout,)
        w = jnp.transpose(w_pt, (2, 3, 1, 0)) * s                 # (3, 3, Cin, Cout)
        kh, kw, ci, co = w.shape
        w = w.reshape(kh * kw * ci, co).astype(jnp.bfloat16)      # im2col-packed (9*Cin, Cout)
        o = (b - mean) * s + beta
        return w, o.reshape(1, -1).astype(jnp.float32)

    wa, oa = fold(p["ca_w"], p["ca_b"], p["bna_g"], p["bna_b"], p["bna_m"], p["bna_v"])
    wb, ob = fold(p["cb_w"], p["cb_b"], p["bnb_g"], p["bnb_b"], p["bnb_m"], p["bnb_v"])

    # ConvTranspose weights packed so one matmul yields all 4 kernel taps:
    #   wt[c, (2*di+dj)*Co + d] = up_w[c, d, di, dj]
    wt4 = jnp.transpose(p["up_w"], (2, 3, 0, 1))                  # (2, 2, Ci, Co)
    ci, co = wt4.shape[2], wt4.shape[3]
    wt = jnp.transpose(wt4, (2, 0, 1, 3)).reshape(ci, 4 * co).astype(jnp.bfloat16)
    bt = p["up_b"].reshape(1, -1).astype(jnp.float32)

    # 1x1 conv, zero-padded to a lane-dense (Cin, 128) layout.
    w1 = p["c1_w"][:, :, 0, 0].T                                  # (Cin, Cout)
    cin, cout = w1.shape
    w1 = jnp.pad(w1, ((0, 0), (0, _LANES - cout))).astype(jnp.bfloat16)
    b1 = jnp.pad(p["c1_b"], (0, _LANES - cout)).reshape(1, -1).astype(jnp.float32)
    return wt, bt, wa, oa, wb, ob, w1, b1


@jax.jit
def res_up_pallas(x1_nchw, x2_nchw, params):
    x1 = jnp.transpose(x1_nchw, (0, 2, 3, 1)).astype(jnp.float32)     # NCHW -> NHWC
    x2 = jnp.transpose(x2_nchw, (0, 2, 3, 1)).astype(jnp.float32)
    N, Hh, Wh, Ch = x1.shape
    _, H, W, _ = x2.shape
    wt, bt, wa, oa, wb, ob, w1, b1 = _prepare_params(params)
    Cout = params["c1_b"].shape[0]

    def const_spec(shape):
        return pl.BlockSpec(shape, lambda b, n=len(shape): (0,) * n)

    in_specs = [
        pl.BlockSpec((1, Hh, Wh, Ch), lambda b: (b, 0, 0, 0)),        # x1
        pl.BlockSpec((1, H, W, Ch), lambda b: (b, 0, 0, 0)),          # x2
        const_spec(wt.shape), const_spec(bt.shape),
        const_spec(wa.shape), const_spec(oa.shape),
        const_spec(wb.shape), const_spec(ob.shape),
        const_spec(w1.shape), const_spec(b1.shape),
    ]
    out_spec = pl.BlockSpec((1, H, W, _LANES), lambda b: (b, 0, 0, 0))

    out_pad = pl.pallas_call(
        _res_up_kernel,
        out_shape=jax.ShapeDtypeStruct((N, H, W, _LANES), jnp.float32),
        grid=(N,),
        in_specs=in_specs,
        out_specs=out_spec,
        compiler_params=pltpu.CompilerParams(dimension_semantics=("parallel",)),
    )(x1, x2, wt, bt, wa, oa, wb, ob, w1, b1)
    out = out_pad[..., :Cout]                                         # strip lane padding
    return jnp.transpose(out, (0, 3, 1, 2))                           # NHWC -> NCHW


def init_params(key, in_ch, out_ch):
    """Deterministic synthetic parameters in PyTorch layouts."""
    ch = in_ch // 2
    ks = jax.random.split(key, 16)

    def nrm(k, shape, s=0.2):
        return s * jax.random.normal(k, shape, jnp.float32)

    return {
        "up_w": nrm(ks[0], (ch, ch, 2, 2)),          # ConvTranspose2d: (in, out, kH, kW)
        "up_b": nrm(ks[1], (ch,), 0.1),
        "ca_w": nrm(ks[2], (in_ch, in_ch, 3, 3)),    # Conv2d: (out, in, kH, kW)
        "ca_b": nrm(ks[3], (in_ch,), 0.1),
        "bna_g": 1.0 + nrm(ks[4], (in_ch,), 0.1),
        "bna_b": nrm(ks[5], (in_ch,), 0.1),
        "bna_m": nrm(ks[6], (in_ch,), 0.1),
        "bna_v": jax.random.uniform(ks[7], (in_ch,), jnp.float32, 0.5, 1.5),
        "cb_w": nrm(ks[8], (in_ch, in_ch, 3, 3)),
        "cb_b": nrm(ks[9], (in_ch,), 0.1),
        "bnb_g": 1.0 + nrm(ks[10], (in_ch,), 0.1),
        "bnb_b": nrm(ks[11], (in_ch,), 0.1),
        "bnb_m": nrm(ks[12], (in_ch,), 0.1),
        "bnb_v": jax.random.uniform(ks[13], (in_ch,), jnp.float32, 0.5, 1.5),
        "c1_w": nrm(ks[14], (out_ch, in_ch, 1, 1)),
        "c1_b": nrm(ks[15], (out_ch,), 0.1),
    }


def res_up_reference(x1_nchw, x2_nchw, p, eps=1e-5):
    """Pure-JAX (XLA, f32) reference implementing the PyTorch forward in eval mode."""
    x1 = jnp.transpose(x1_nchw, (0, 2, 3, 1)).astype(jnp.float32)
    x2 = jnp.transpose(x2_nchw, (0, 2, 3, 1)).astype(jnp.float32)
    N, Hh, Wh, Ch = x1.shape

    # ConvTranspose2d(k=2, s=2): out[n, 2h+i, 2w+j, d] = sum_c x1[n,h,w,c] w[c,d,i,j] + b
    t = jnp.einsum("nhwc,cdij->nhiwjd", x1, p["up_w"])
    up = t.reshape(N, 2 * Hh, 2 * Wh, Ch) + p["up_b"].reshape(1, 1, 1, Ch)

    x = jnp.concatenate([x2, up], axis=-1)
    res = x

    def conv_bn_relu(y, w_pt, b, gamma, beta, mean, var):
        c_out = w_pt.shape[0]
        w = jnp.transpose(w_pt, (2, 3, 1, 0))        # HWIO
        y = lax.conv_general_dilated(y, w, (1, 1), "SAME",
                                     dimension_numbers=("NHWC", "HWIO", "NHWC"))
        y = y + b.reshape(1, 1, 1, c_out)
        y = ((y - mean.reshape(1, 1, 1, -1)) / jnp.sqrt(var.reshape(1, 1, 1, -1) + eps)
             * gamma.reshape(1, 1, 1, -1) + beta.reshape(1, 1, 1, -1))
        return jnp.maximum(y, 0.0)

    x = conv_bn_relu(x, p["ca_w"], p["ca_b"], p["bna_g"], p["bna_b"], p["bna_m"], p["bna_v"])
    x = conv_bn_relu(x, p["cb_w"], p["cb_b"], p["bnb_g"], p["bnb_b"], p["bnb_m"], p["bnb_v"])
    x = x + res
    out = jnp.einsum("nhwc,dc->nhwd", x, p["c1_w"][:, :, 0, 0]) + p["c1_b"].reshape(1, 1, 1, -1)
    return jnp.transpose(out, (0, 3, 1, 2))


if __name__ == "__main__":
    key = jax.random.PRNGKey(0)
    k1, k2, kp = jax.random.split(key, 3)

    N, in_ch, out_ch = 2, 8, 8
    H, W = 16, 16
    ch = in_ch // 2
    x1 = jax.random.normal(k1, (N, ch, H // 2, W // 2), jnp.float32)   # low-res input
    x2 = jax.random.normal(k2, (N, ch, H, W), jnp.float32)             # skip connection

    params = init_params(kp, in_ch, out_ch)

    out = jax.block_until_ready(res_up_pallas(x1, x2, params))
    assert out.shape == (N, out_ch, H, W), out.shape

    ref = jax.block_until_ready(res_up_reference(x1, x2, params))
    # Kernel uses bf16 MXU operands with f32 accumulation; reference is pure f32.
    if not jnp.allclose(out, ref, atol=3e-2, rtol=3e-2):
        raise AssertionError(
            f"mismatch vs reference, max abs err={float(jnp.max(jnp.abs(out - ref)))}")

    print("KERNEL_OK")
</pallas_src>

<mosaic_0001>
module attributes {stable_mosaic.version = 11 : i64} {
  func.func @_res_up_kernel(%arg0: i32, %arg1: memref<1x8x8x4xf32, #tpu.memory_space<vmem>>, %arg2: memref<1x16x16x4xf32, #tpu.memory_space<vmem>>, %arg3: memref<4x16xbf16, #tpu.memory_space<vmem>>, %arg4: memref<1x4xf32, #tpu.memory_space<vmem>>, %arg5: memref<72x8xbf16, #tpu.memory_space<vmem>>, %arg6: memref<1x8xf32, #tpu.memory_space<vmem>>, %arg7: memref<72x8xbf16, #tpu.memory_space<vmem>>, %arg8: memref<1x8xf32, #tpu.memory_space<vmem>>, %arg9: memref<8x128xbf16, #tpu.memory_space<vmem>>, %arg10: memref<1x128xf32, #tpu.memory_space<vmem>>, %arg11: memref<1x16x16x128xf32, #tpu.memory_space<vmem>>) attributes {dimension_semantics = [#tpu.dimension_semantics<parallel>], iteration_bounds = array<i64: 2>, scalar_prefetch = 0 : i64, scratch_operands = 0 : i64, tpu.core_type = #tpu.core_type<tc>, window_params = [{transform_indices = @transform_0, window_bounds = array<i64: 1, 8, 8, 4>}, {transform_indices = @transform_1, window_bounds = array<i64: 1, 16, 16, 4>}, {pipeline_mode = #tpu.pipeline_mode<synchronous>, transform_indices = @transform_2, window_bounds = array<i64: 4, 16>}, {pipeline_mode = #tpu.pipeline_mode<synchronous>, transform_indices = @transform_3, window_bounds = array<i64: 1, 4>}, {pipeline_mode = #tpu.pipeline_mode<synchronous>, transform_indices = @transform_4, window_bounds = array<i64: 72, 8>}, {pipeline_mode = #tpu.pipeline_mode<synchronous>, transform_indices = @transform_5, window_bounds = array<i64: 1, 8>}, {pipeline_mode = #tpu.pipeline_mode<synchronous>, transform_indices = @transform_6, window_bounds = array<i64: 72, 8>}, {pipeline_mode = #tpu.pipeline_mode<synchronous>, transform_indices = @transform_7, window_bounds = array<i64: 1, 8>}, {pipeline_mode = #tpu.pipeline_mode<synchronous>, transform_indices = @transform_8, window_bounds = array<i64: 8, 128>}, {pipeline_mode = #tpu.pipeline_mode<synchronous>, transform_indices = @transform_9, window_bounds = array<i64: 1, 128>}, {transform_indices = @transform_10, window_bounds = array<i64: 1, 16, 16, 128>}]} {
    %c0 = arith.constant 0 : index
    %c0_0 = arith.constant 0 : index
    %c0_1 = arith.constant 0 : index
    %c0_2 = arith.constant 0 : index
    %0 = vector.load %arg1[%c0, %c0_0, %c0_1, %c0_2] : memref<1x8x8x4xf32, #tpu.memory_space<vmem>>, vector<1x8x8x4xf32>
    %1 = vector.shape_cast %0 : vector<1x8x8x4xf32> to vector<8x8x4xf32>
    %c0_3 = arith.constant 0 : index
    %c0_4 = arith.constant 0 : index
    %c0_5 = arith.constant 0 : index
    %c0_6 = arith.constant 0 : index
    %2 = vector.load %arg2[%c0_3, %c0_4, %c0_5, %c0_6] : memref<1x16x16x4xf32, #tpu.memory_space<vmem>>, vector<1x16x16x4xf32>
    %3 = vector.shape_cast %2 : vector<1x16x16x4xf32> to vector<16x16x4xf32>
    %4 = vector.shape_cast %1 : vector<8x8x4xf32> to vector<64x4xf32>
    %5 = arith.truncf %4 : vector<64x4xf32> to vector<64x4xbf16>
    %c0_7 = arith.constant 0 : index
    %c0_8 = arith.constant 0 : index
    %6 = vector.load %arg3[%c0_7, %c0_8] : memref<4x16xbf16, #tpu.memory_space<vmem>>, vector<4x16xbf16>
    %cst = arith.constant dense<0.000000e+00> : vector<64x16xf32>
    %7 = tpu.matmul %5, %6, %cst {dimension_numbers = #tpu.dot_dimension_numbers<[1], [0], [0], [1], [0, 0, 1, 1], [], []>} : vector<64x4xbf16>, vector<4x16xbf16>, vector<64x16xf32> -> vector<64x16xf32>
    %8 = vector.extract_strided_slice %7 {offsets = [0, 0], sizes = [64, 4], strides = [1, 1]} : vector<64x16xf32> to vector<64x4xf32>
    %9 = vector.shape_cast %8 : vector<64x4xf32> to vector<8x8x4xf32>
    %10 = vector.extract_strided_slice %7 {offsets = [0, 4], sizes = [64, 4], strides = [1, 1]} : vector<64x16xf32> to vector<64x4xf32>
    %11 = vector.shape_cast %10 : vector<64x4xf32> to vector<8x8x4xf32>
    %12 = vector.shape_cast %9 : vector<8x8x4xf32> to vector<8x8x1x4xf32>
    %13 = vector.shape_cast %11 : vector<8x8x4xf32> to vector<8x8x1x4xf32>
    %14 = tpu.concatenate %12, %13 in 2 : vector<8x8x1x4xf32>, vector<8x8x1x4xf32> -> vector<8x8x2x4xf32>
    %15 = vector.shape_cast %14 : vector<8x8x2x4xf32> to vector<8x16x4xf32>
    %16 = vector.extract_strided_slice %7 {offsets = [0, 8], sizes = [64, 4], strides = [1, 1]} : vector<64x16xf32> to vector<64x4xf32>
    %17 = vector.shape_cast %16 : vector<64x4xf32> to vector<8x8x4xf32>
    %18 = vector.extract_strided_slice %7 {offsets = [0, 12], sizes = [64, 4], strides = [1, 1]} : vector<64x16xf32> to vector<64x4xf32>
    %19 = vector.shape_cast %18 : vector<64x4xf32> to vector<8x8x4xf32>
    %20 = vector.shape_cast %17 : vector<8x8x4xf32> to vector<8x8x1x4xf32>
    %21 = vector.shape_cast %19 : vector<8x8x4xf32> to vector<8x8x1x4xf32>
    %22 = tpu.concatenate %20, %21 in 2 : vector<8x8x1x4xf32>, vector<8x8x1x4xf32> -> vector<8x8x2x4xf32>
    %23 = vector.shape_cast %22 : vector<8x8x2x4xf32> to vector<8x16x4xf32>
    %24 = vector.shape_cast %15 : vector<8x16x4xf32> to vector<8x1x16x4xf32>
    %25 = vector.shape_cast %23 : vector<8x16x4xf32> to vector<8x1x16x4xf32>
    %26 = tpu.concatenate %24, %25 in 1 : vector<8x1x16x4xf32>, vector<8x1x16x4xf32> -> vector<8x2x16x4xf32>
    %27 = vector.shape_cast %26 : vector<8x2x16x4xf32> to vector<16x16x4xf32>
    %c0_9 = arith.constant 0 : index
    %c0_10 = arith.constant 0 : index
    %28 = vector.load %arg4[%c0_9, %c0_10] : memref<1x4xf32, #tpu.memory_space<vmem>>, vector<1x4xf32>
    %29 = vector.shape_cast %28 : vector<1x4xf32> to vector<4xf32>
    %30 = vector.shape_cast %29 : vector<4xf32> to vector<1x1x4xf32>
    %31 = vector.broadcast %30 : vector<1x1x4xf32> to vector<16x16x4xf32>
    %32 = arith.addf %27, %31 : vector<16x16x4xf32>
    %33 = tpu.concatenate %3, %32 in 2 : vector<16x16x4xf32>, vector<16x16x4xf32> -> vector<16x16x8xf32>
    %34 = arith.truncf %33 : vector<16x16x8xf32> to vector<16x16x8xbf16>
    %cst_11 = arith.constant 0.000000e+00 : bf16
    %35 = vector.broadcast %cst_11 : bf16 to vector<1x16x8xbf16>
    %36 = tpu.concatenate %35, %34, %35 in 0 : vector<1x16x8xbf16>, vector<16x16x8xbf16>, vector<1x16x8xbf16> -> vector<18x16x8xbf16>
    %cst_12 = arith.constant 0.000000e+00 : bf16
    %37 = vector.broadcast %cst_12 : bf16 to vector<18x1x8xbf16>
    %38 = tpu.concatenate %37, %36, %37 in 1 : vector<18x1x8xbf16>, vector<18x16x8xbf16>, vector<18x1x8xbf16> -> vector<18x18x8xbf16>
    %39 = vector.extract_strided_slice %38 {offsets = [0, 0, 0], sizes = [16, 16, 8], strides = [1, 1, 1]} : vector<18x18x8xbf16> to vector<16x16x8xbf16>
    %40 = vector.extract_strided_slice %38 {offsets = [0, 1, 0], sizes = [16, 16, 8], strides = [1, 1, 1]} : vector<18x18x8xbf16> to vector<16x16x8xbf16>
    %41 = vector.extract_strided_slice %38 {offsets = [0, 2, 0], sizes = [16, 16, 8], strides = [1, 1, 1]} : vector<18x18x8xbf16> to vector<16x16x8xbf16>
    %42 = vector.extract_strided_slice %38 {offsets = [1, 0, 0], sizes = [16, 16, 8], strides = [1, 1, 1]} : vector<18x18x8xbf16> to vector<16x16x8xbf16>
    %43 = vector.extract_strided_slice %38 {offsets = [1, 1, 0], sizes = [16, 16, 8], strides = [1, 1, 1]} : vector<18x18x8xbf16> to vector<16x16x8xbf16>
    %44 = vector.extract_strided_slice %38 {offsets = [1, 2, 0], sizes = [16, 16, 8], strides = [1, 1, 1]} : vector<18x18x8xbf16> to vector<16x16x8xbf16>
    %45 = vector.extract_strided_slice %38 {offsets = [2, 0, 0], sizes = [16, 16, 8], strides = [1, 1, 1]} : vector<18x18x8xbf16> to vector<16x16x8xbf16>
    %46 = vector.extract_strided_slice %38 {offsets = [2, 1, 0], sizes = [16, 16, 8], strides = [1, 1, 1]} : vector<18x18x8xbf16> to vector<16x16x8xbf16>
    %47 = vector.extract_strided_slice %38 {offsets = [2, 2, 0], sizes = [16, 16, 8], strides = [1, 1, 1]} : vector<18x18x8xbf16> to vector<16x16x8xbf16>
    %48 = tpu.concatenate %39, %40, %41, %42, %43, %44, %45, %46, %47 in 2 : vector<16x16x8xbf16>, vector<16x16x8xbf16>, vector<16x16x8xbf16>, vector<16x16x8xbf16>, vector<16x16x8xbf16>, vector<16x16x8xbf16>, vector<16x16x8xbf16>, vector<16x16x8xbf16>, vector<16x16x8xbf16> -> vector<16x16x72xbf16>
    %49 = vector.shape_cast %48 : vector<16x16x72xbf16> to vector<256x72xbf16>
    %c0_13 = arith.constant 0 : index
    %c0_14 = arith.constant 0 : index
    %50 = vector.load %arg5[%c0_13, %c0_14] : memref<72x8xbf16, #tpu.memory_space<vmem>>, vector<72x8xbf16>
    %cst_15 = arith.constant dense<0.000000e+00> : vector<256x8xf32>
    %51 = tpu.matmul %49, %50, %cst_15 {dimension_numbers = #tpu.dot_dimension_numbers<[1], [0], [0], [1], [0, 0, 1, 1], [], []>} : vector<256x72xbf16>, vector<72x8xbf16>, vector<256x8xf32> -> vector<256x8xf32>
    %c0_16 = arith.constant 0 : index
    %c0_17 = arith.constant 0 : index
    %52 = vector.load %arg6[%c0_16, %c0_17] : memref<1x8xf32, #tpu.memory_space<vmem>>, vector<1x8xf32>
    %53 = vector.shape_cast %52 : vector<1x8xf32> to vector<8xf32>
    %54 = vector.shape_cast %53 : vector<8xf32> to vector<1x8xf32>
    %55 = vector.broadcast %54 : vector<1x8xf32> to vector<256x8xf32>
    %56 = arith.addf %51, %55 : vector<256x8xf32>
    %cst_18 = arith.constant 0.000000e+00 : f32
    %57 = vector.broadcast %cst_18 : f32 to vector<256x8xf32>
    %58 = arith.maximumf %56, %57 : vector<256x8xf32>
    %59 = arith.truncf %58 : vector<256x8xf32> to vector<256x8xbf16>
    %60 = vector.shape_cast %59 : vector<256x8xbf16> to vector<16x16x8xbf16>
    %cst_19 = arith.constant 0.000000e+00 : bf16
    %61 = vector.broadcast %cst_19 : bf16 to vector<1x16x8xbf16>
    %62 = tpu.concatenate %61, %60, %61 in 0 : vector<1x16x8xbf16>, vector<16x16x8xbf16>, vector<1x16x8xbf16> -> vector<18x16x8xbf16>
    %cst_20 = arith.constant 0.000000e+00 : bf16
    %63 = vector.broadcast %cst_20 : bf16 to vector<18x1x8xbf16>
    %64 = tpu.concatenate %63, %62, %63 in 1 : vector<18x1x8xbf16>, vector<18x16x8xbf16>, vector<18x1x8xbf16> -> vector<18x18x8xbf16>
    %65 = vector.extract_strided_slice %64 {offsets = [0, 0, 0], sizes = [16, 16, 8], strides = [1, 1, 1]} : vector<18x18x8xbf16> to vector<16x16x8xbf16>
    %66 = vector.extract_strided_slice %64 {offsets = [0, 1, 0], sizes = [16, 16, 8], strides = [1, 1, 1]} : vector<18x18x8xbf16> to vector<16x16x8xbf16>
    %67 = vector.extract_strided_slice %64 {offsets = [0, 2, 0], sizes = [16, 16, 8], strides = [1, 1, 1]} : vector<18x18x8xbf16> to vector<16x16x8xbf16>
    %68 = vector.extract_strided_slice %64 {offsets = [1, 0, 0], sizes = [16, 16, 8], strides = [1, 1, 1]} : vector<18x18x8xbf16> to vector<16x16x8xbf16>
    %69 = vector.extract_strided_slice %64 {offsets = [1, 1, 0], sizes = [16, 16, 8], strides = [1, 1, 1]} : vector<18x18x8xbf16> to vector<16x16x8xbf16>
    %70 = vector.extract_strided_slice %64 {offsets = [1, 2, 0], sizes = [16, 16, 8], strides = [1, 1, 1]} : vector<18x18x8xbf16> to vector<16x16x8xbf16>
    %71 = vector.extract_strided_slice %64 {offsets = [2, 0, 0], sizes = [16, 16, 8], strides = [1, 1, 1]} : vector<18x18x8xbf16> to vector<16x16x8xbf16>
    %72 = vector.extract_strided_slice %64 {offsets = [2, 1, 0], sizes = [16, 16, 8], strides = [1, 1, 1]} : vector<18x18x8xbf16> to vector<16x16x8xbf16>
    %73 = vector.extract_strided_slice %64 {offsets = [2, 2, 0], sizes = [16, 16, 8], strides = [1, 1, 1]} : vector<18x18x8xbf16> to vector<16x16x8xbf16>
    %74 = tpu.concatenate %65, %66, %67, %68, %69, %70, %71, %72, %73 in 2 : vector<16x16x8xbf16>, vector<16x16x8xbf16>, vector<16x16x8xbf16>, vector<16x16x8xbf16>, vector<16x16x8xbf16>, vector<16x16x8xbf16>, vector<16x16x8xbf16>, vector<16x16x8xbf16>, vector<16x16x8xbf16> -> vector<16x16x72xbf16>
    %75 = vector.shape_cast %74 : vector<16x16x72xbf16> to vector<256x72xbf16>
    %c0_21 = arith.constant 0 : index
    %c0_22 = arith.constant 0 : index
    %76 = vector.load %arg7[%c0_21, %c0_22] : memref<72x8xbf16, #tpu.memory_space<vmem>>, vector<72x8xbf16>
    %cst_23 = arith.constant dense<0.000000e+00> : vector<256x8xf32>
    %77 = tpu.matmul %75, %76, %cst_23 {dimension_numbers = #tpu.dot_dimension_numbers<[1], [0], [0], [1], [0, 0, 1, 1], [], []>} : vector<256x72xbf16>, vector<72x8xbf16>, vector<256x8xf32> -> vector<256x8xf32>
    %c0_24 = arith.constant 0 : index
    %c0_25 = arith.constant 0 : index
    %78 = vector.load %arg8[%c0_24, %c0_25] : memref<1x8xf32, #tpu.memory_space<vmem>>, vector<1x8xf32>
    %79 = vector.shape_cast %78 : vector<1x8xf32> to vector<8xf32>
    %80 = vector.shape_cast %79 : vector<8xf32> to vector<1x8xf32>
    %81 = vector.broadcast %80 : vector<1x8xf32> to vector<256x8xf32>
    %82 = arith.addf %77, %81 : vector<256x8xf32>
    %cst_26 = arith.constant 0.000000e+00 : f32
    %83 = vector.broadcast %cst_26 : f32 to vector<256x8xf32>
    %84 = arith.maximumf %82, %83 : vector<256x8xf32>
    %85 = vector.shape_cast %33 : vector<16x16x8xf32> to vector<256x8xf32>
    %86 = arith.addf %84, %85 : vector<256x8xf32>
    %87 = arith.truncf %86 : vector<256x8xf32> to vector<256x8xbf16>
    %c0_27 = arith.constant 0 : index
    %c0_28 = arith.constant 0 : index
    %88 = vector.load %arg9[%c0_27, %c0_28] : memref<8x128xbf16, #tpu.memory_space<vmem>>, vector<8x128xbf16>
    %cst_29 = arith.constant dense<0.000000e+00> : vector<256x128xf32>
    %89 = tpu.matmul %87, %88, %cst_29 {dimension_numbers = #tpu.dot_dimension_numbers<[1], [0], [0], [1], [0, 0, 1, 1], [], []>} : vector<256x8xbf16>, vector<8x128xbf16>, vector<256x128xf32> -> vector<256x128xf32>
    %c0_30 = arith.constant 0 : index
    %c0_31 = arith.constant 0 : index
    %90 = vector.load %arg10[%c0_30, %c0_31] : memref<1x128xf32, #tpu.memory_space<vmem>>, vector<1x128xf32>
    %91 = vector.shape_cast %90 : vector<1x128xf32> to vector<128xf32>
    %92 = vector.shape_cast %91 : vector<128xf32> to vector<1x128xf32>
    %93 = vector.broadcast %92 : vector<1x128xf32> to vector<256x128xf32>
    %94 = arith.addf %89, %93 : vector<256x128xf32>
    %95 = vector.shape_cast %94 : vector<256x128xf32> to vector<16x16x128xf32>
    %c0_32 = arith.constant 0 : index
    %c0_33 = arith.constant 0 : index
    %c0_34 = arith.constant 0 : index
    %c0_35 = arith.constant 0 : index
    %96 = vector.load %arg11[%c0_32, %c0_33, %c0_34, %c0_35] : memref<1x16x16x128xf32, #tpu.memory_space<vmem>>, vector<1x16x16x128xf32>
    %97 = vector.shape_cast %96 : vector<1x16x16x128xf32> to vector<16x16x128xf32>
    %98 = vector.shape_cast %95 : vector<16x16x128xf32> to vector<1x16x16x128xf32>
    tpu.vector_store %arg11[%c0_32, %c0_33, %c0_34, %c0_35], %98 {strides = array<i32>} : memref<1x16x16x128xf32, #tpu.memory_space<vmem>>, vector<1x16x16x128xf32>,
    return
  }
  func.func @transform_0(%arg0: i32) -> (i32, i32, i32, i32) {
    %c0_i32 = arith.constant 0 : i32
    %c0_i32_0 = arith.constant 0 : i32
    %c0_i32_1 = arith.constant 0 : i32
    %c0_i32_2 = arith.constant 0 : i32
    return %arg0, %c0_i32, %c0_i32_0, %c0_i32_1 : i32, i32, i32, i32
  }
  func.func @transform_1(%arg0: i32) -> (i32, i32, i32, i32) {
    %c0_i32 = arith.constant 0 : i32
    %c0_i32_0 = arith.constant 0 : i32
    %c0_i32_1 = arith.constant 0 : i32
    %c0_i32_2 = arith.constant 0 : i32
    return %arg0, %c0_i32, %c0_i32_0, %c0_i32_1 : i32, i32, i32, i32
  }
  func.func @transform_2(%arg0: i32) -> (i32, i32) {
    %c0_i32 = arith.constant 0 : i32
    %c0_i32_0 = arith.constant 0 : i32
    %c0_i32_1 = arith.constant 0 : i32
    return %c0_i32, %c0_i32_0 : i32, i32
  }
  func.func @transform_3(%arg0: i32) -> (i32, i32) {
    %c0_i32 = arith.constant 0 : i32
    %c0_i32_0 = arith.constant 0 : i32
    %c0_i32_1 = arith.constant 0 : i32
    return %c0_i32, %c0_i32_0 : i32, i32
  }
  func.func @transform_4(%arg0: i32) -> (i32, i32) {
    %c0_i32 = arith.constant 0 : i32
    %c0_i32_0 = arith.constant 0 : i32
    %c0_i32_1 = arith.constant 0 : i32
    return %c0_i32, %c0_i32_0 : i32, i32
  }
  func.func @transform_5(%arg0: i32) -> (i32, i32) {
    %c0_i32 = arith.constant 0 : i32
    %c0_i32_0 = arith.constant 0 : i32
    %c0_i32_1 = arith.constant 0 : i32
    return %c0_i32, %c0_i32_0 : i32, i32
  }
  func.func @transform_6(%arg0: i32) -> (i32, i32) {
    %c0_i32 = arith.constant 0 : i32
    %c0_i32_0 = arith.constant 0 : i32
    %c0_i32_1 = arith.constant 0 : i32
    return %c0_i32, %c0_i32_0 : i32, i32
  }
  func.func @transform_7(%arg0: i32) -> (i32, i32) {
    %c0_i32 = arith.constant 0 : i32
    %c0_i32_0 = arith.constant 0 : i32
    %c0_i32_1 = arith.constant 0 : i32
    return %c0_i32, %c0_i32_0 : i32, i32
  }
  func.func @transform_8(%arg0: i32) -> (i32, i32) {
    %c0_i32 = arith.constant 0 : i32
    %c0_i32_0 = arith.constant 0 : i32
    %c0_i32_1 = arith.constant 0 : i32
    return %c0_i32, %c0_i32_0 : i32, i32
  }
  func.func @transform_9(%arg0: i32) -> (i32, i32) {
    %c0_i32 = arith.constant 0 : i32
    %c0_i32_0 = arith.constant 0 : i32
    %c0_i32_1 = arith.constant 0 : i32
    return %c0_i32, %c0_i32_0 : i32, i32
  }
  func.func @transform_10(%arg0: i32) -> (i32, i32, i32, i32) {
    %c0_i32 = arith.constant 0 : i32
    %c0_i32_0 = arith.constant 0 : i32
    %c0_i32_1 = arith.constant 0 : i32
    %c0_i32_2 = arith.constant 0 : i32
    return %arg0, %c0_i32, %c0_i32_0, %c0_i32_1 : i32, i32, i32, i32
  }
}

</mosaic_0001>

<llo_original>
// kernel: res_up_pallas.1
$region0: #{res_up_pallas.1}
  #allocation0 [shape = 'u32[]', space=smem, size = 0x4, offset = 0x4, fixed_abs, tag = 'smem constant byte address 0x4 - core index']
  #allocation1 [shape = 'u32[72,128]{1,0:T(1,128)}', space=vmem, size = 0x9000, scoped, tag = 'internal scratch']
  %s0 = inlined_call_operand.vmem [shape: f32[2,8,8,4], index: 0, kind: input, shape index: {}]
  %s1 = inlined_call_operand.vmem [shape: f32[2,16,16,4], index: 1, kind: input, shape index: {}]
  %s2 = inlined_call_operand.vmem [shape: bf16[4,16], index: 2, kind: input, shape index: {}]
  %s3 = inlined_call_operand.vmem [shape: f32[1,4], index: 3, kind: input, shape index: {}]
  %s4 = inlined_call_operand.vmem [shape: bf16[72,8], index: 4, kind: input, shape index: {}]
  %s5 = inlined_call_operand.vmem [shape: f32[1,8], index: 5, kind: input, shape index: {}]
  %s6 = inlined_call_operand.vmem [shape: bf16[72,8], index: 6, kind: input, shape index: {}]
  %s7 = inlined_call_operand.vmem [shape: f32[1,8], index: 7, kind: input, shape index: {}]
  %s8 = inlined_call_operand.vmem [shape: bf16[8,128], index: 8, kind: input, shape index: {}]
  %s9 = inlined_call_operand.vmem [shape: f32[1,128], index: 9, kind: input, shape index: {}]
  %s10 = inlined_call_operand.vmem [shape: f32[2,16,16,128], index: 10, kind: output, shape index: {}]
  %s11 = sld [smem:[#allocation0]]
  $region73: #{res_up_pallas.1} parent=0
    _
  %s13 = ssub.s32 1, %s11
  %s14 = scalar_select 0, %s13, %s11
  loop: start=0, step=1, limit=4
  $region2: #{res_up_pallas.1} parent=0 // loop_pre_header
    _
  $region3: #{res_up_pallas.1} parent=0 // loop_header
    %s16 = sphi 0, %s20
    %p17 = scmp.ge.s32.totalorder %s16, 4
    %s26 = sphi 0, %s28
    %s29 = sphi 0, %s26
    %s30 = sphi 0, %s29
    %s46 = sphi 0, %s30
    %s52 = sphi 0, %s54
    %s55 = sphi 0, %s52
    %s56 = sphi 0, %s55
    %s72 = sphi 0, %s56
    %s76 = sphi 0, %s76
    %s78 = sphi 0, %s76
    %s79 = sphi 0, %s78
    %s93 = sphi 0, %s79
    %s97 = sphi 0, %s97
    %s99 = sphi 0, %s97
    %s100 = sphi 0, %s99
    %s114 = sphi 0, %s100
    %s118 = sphi 0, %s118
    %s120 = sphi 0, %s118
    %s121 = sphi 0, %s120
    %s135 = sphi 0, %s121
    %s139 = sphi 0, %s139
    %s141 = sphi 0, %s139
    %s142 = sphi 0, %s141
    %s156 = sphi 0, %s142
    %s160 = sphi 0, %s160
    %s162 = sphi 0, %s160
    %s163 = sphi 0, %s162
    %s177 = sphi 0, %s163
    %s181 = sphi 0, %s181
    %s183 = sphi 0, %s181
    %s184 = sphi 0, %s183
    %s198 = sphi 0, %s184
    %s202 = sphi 0, %s202
    %s204 = sphi 0, %s202
    %s205 = sphi 0, %s204
    %s219 = sphi 0, %s205
    %s223 = sphi 0, %s223
    %s225 = sphi 0, %s223
    %s226 = sphi 0, %s225
    %s240 = sphi 0, %s226
    %s246 = sphi 0, %s248
    %s249 = sphi 0, %s246
    %s250 = sphi 0, %s249
    %s266 = sphi 0, %s250
  $region4: #{res_up_pallas.1} parent=0 // loop_header_branch
    %19 = sbr.rel (%p17) target = $region8
  $region5: #{res_up_pallas.1} parent=0 // loop_body
    %s21 = ssub.s32 %s16, 1
    %s22 = ssub.s32 %s16, 2
    %s23 = sadd.s32 %s16, 1
    %s24 = ssub.s32 %s16, %s23
    %p25 = scmp.eq.s32.totalorder %s24, 0
    %s27 = sadd.s32 %s26, 1
    %s28 = scalar_select %p25, %s26, %s27
    %p31 = pneg %p25
    %p32 = scmp.eq.s32.totalorder %s16, 1
    %p33 = por %p31, %p32
    %p34 = scmp.ne.s32.totalorder %s26, %s29
    %p35 = scmp.eq.s32.totalorder %s16, 0
    %p36 = por %p34, %p35
    %p37 = scmp.ne.s32.totalorder %s26, %s29
    %p38 = scmp.eq.s32.totalorder %s21, 1
    %p39 = por %p37, %p38
    %p40 = scmp.ne.s32.totalorder %s29, %s30
    %p41 = scmp.eq.s32.totalorder %s21, 0
    %p42 = por %p40, %p41
    %p43 = scmp.ne.s32.totalorder %s29, %s30
    %p44 = scmp.eq.s32.totalorder %s22, 1
    %p45 = por %p43, %p44
    %p47 = scmp.ne.s32.totalorder %s30, %s46
    %p48 = scmp.eq.s32.totalorder %s22, 0
    %p49 = por %p47, %p48
    %s50 = ssub.s32 %s16, %s23
    %p51 = scmp.eq.s32.totalorder %s50, 0
    %s53 = sadd.s32 %s52, 1
    %s54 = scalar_select %p51, %s52, %s53
    %p57 = pneg %p51
    %p58 = scmp.eq.s32.totalorder %s16, 1
    %p59 = por %p57, %p58
    %p60 = scmp.ne.s32.totalorder %s52, %s55
    %p61 = scmp.eq.s32.totalorder %s16, 0
    %p62 = por %p60, %p61
    %p63 = scmp.ne.s32.totalorder %s52, %s55
    %p64 = scmp.eq.s32.totalorder %s21, 1
    %p65 = por %p63, %p64
    %p66 = scmp.ne.s32.totalorder %s55, %s56
    %p67 = scmp.eq.s32.totalorder %s21, 0
    %p68 = por %p66, %p67
    %p69 = scmp.ne.s32.totalorder %s55, %s56
    %p70 = scmp.eq.s32.totalorder %s22, 1
    %p71 = por %p69, %p70
    %p73 = scmp.ne.s32.totalorder %s56, %s72
    %p74 = scmp.eq.s32.totalorder %s22, 0
    %p75 = por %p73, %p74
    %s77 = sadd.s32 %s76, 1
    %p80 = scmp.eq.s32.totalorder %s16, 1
    %p81 = scmp.ne.s32.totalorder %s76, %s78
    %p82 = scmp.eq.s32.totalorder %s16, 0
    %p83 = por %p81, %p82
    %p84 = scmp.ne.s32.totalorder %s76, %s78
    %p85 = scmp.eq.s32.totalorder %s21, 1
    %p86 = por %p84, %p85
    %p87 = scmp.ne.s32.totalorder %s78, %s79
    %p88 = scmp.eq.s32.totalorder %s21, 0
    %p89 = por %p87, %p88
    %p90 = scmp.ne.s32.totalorder %s78, %s79
    %p91 = scmp.eq.s32.totalorder %s22, 1
    %p92 = por %p90, %p91
    %p94 = scmp.ne.s32.totalorder %s79, %s93
    %p95 = scmp.eq.s32.totalorder %s22, 0
    %p96 = por %p94, %p95
    %s98 = sadd.s32 %s97, 1
    %p101 = scmp.eq.s32.totalorder %s16, 1
    %p102 = scmp.ne.s32.totalorder %s97, %s99
    %p103 = scmp.eq.s32.totalorder %s16, 0
    %p104 = por %p102, %p103
    %p105 = scmp.ne.s32.totalorder %s97, %s99
    %p106 = scmp.eq.s32.totalorder %s21, 1
    %p107 = por %p105, %p106
    %p108 = scmp.ne.s32.totalorder %s99, %s100
    %p109 = scmp.eq.s32.totalorder %s21, 0
    %p110 = por %p108, %p109
    %p111 = scmp.ne.s32.totalorder %s99, %s100
    %p112 = scmp.eq.s32.totalorder %s22, 1
    %p113 = por %p111, %p112
    %p115 = scmp.ne.s32.totalorder %s100, %s114
    %p116 = scmp.eq.s32.totalorder %s22, 0
    %p117 = por %p115, %p116
    %s119 = sadd.s32 %s118, 1
    %p122 = scmp.eq.s32.totalorder %s16, 1
    %p123 = scmp.ne.s32.totalorder %s118, %s120
    %p124 = scmp.eq.s32.totalorder %s16, 0
    %p125 = por %p123, %p124
    %p126 = scmp.ne.s32.totalorder %s118, %s120
    %p127 = scmp.eq.s32.totalorder %s21, 1
    %p128 = por %p126, %p127
    %p129 = scmp.ne.s32.totalorder %s120, %s121
    %p130 = scmp.eq.s32.totalorder %s21, 0
    %p131 = por %p129, %p130
    %p132 = scmp.ne.s32.totalorder %s120, %s121
    %p133 = scmp.eq.s32.totalorder %s22, 1
    %p134 = por %p132, %p133
    %p136 = scmp.ne.s32.totalorder %s121, %s135
    %p137 = scmp.eq.s32.totalorder %s22, 0
    %p138 = por %p136, %p137
    %s140 = sadd.s32 %s139, 1
    %p143 = scmp.eq.s32.totalorder %s16, 1
    %p144 = scmp.ne.s32.totalorder %s139, %s141
    %p145 = scmp.eq.s32.totalorder %s16, 0
    %p146 = por %p144, %p145
    %p147 = scmp.ne.s32.totalorder %s139, %s141
    %p148 = scmp.eq.s32.totalorder %s21, 1
    %p149 = por %p147, %p148
    %p150 = scmp.ne.s32.totalorder %s141, %s142
    %p151 = scmp.eq.s32.totalorder %s21, 0
    %p152 = por %p150, %p151
    %p153 = scmp.ne.s32.totalorder %s141, %s142
    %p154 = scmp.eq.s32.totalorder %s22, 1
    %p155 = por %p153, %p154
    %p157 = scmp.ne.s32.totalorder %s142, %s156
    %p158 = scmp.eq.s32.totalorder %s22, 0
    %p159 = por %p157, %p158
    %s161 = sadd.s32 %s160, 1
    %p164 = scmp.eq.s32.totalorder %s16, 1
    %p165 = scmp.ne.s32.totalorder %s160, %s162
    %p166 = scmp.eq.s32.totalorder %s16, 0
    %p167 = por %p165, %p166
    %p168 = scmp.ne.s32.totalorder %s160, %s162
    %p169 = scmp.eq.s32.totalorder %s21, 1
    %p170 = por %p168, %p169
    %p171 = scmp.ne.s32.totalorder %s162, %s163
    %p172 = scmp.eq.s32.totalorder %s21, 0
    %p173 = por %p171, %p172
    %p174 = scmp.ne.s32.totalorder %s162, %s163
    %p175 = scmp.eq.s32.totalorder %s22, 1
    %p176 = por %p174, %p175
    %p178 = scmp.ne.s32.totalorder %s163, %s177
    %p179 = scmp.eq.s32.totalorder %s22, 0
    %p180 = por %p178, %p179
    %s182 = sadd.s32 %s181, 1
    %p185 = scmp.eq.s32.totalorder %s16, 1
    %p186 = scmp.ne.s32.totalorder %s181, %s183
    %p187 = scmp.eq.s32.totalorder %s16, 0
    %p188 = por %p186, %p187
    %p189 = scmp.ne.s32.totalorder %s181, %s183
    %p190 = scmp.eq.s32.totalorder %s21, 1
    %p191 = por %p189, %p190
    %p192 = scmp.ne.s32.totalorder %s183, %s184
    %p193 = scmp.eq.s32.totalorder %s21, 0
    %p194 = por %p192, %p193
    %p195 = scmp.ne.s32.totalorder %s183, %s184
    %p196 = scmp.eq.s32.totalorder %s22, 1
    %p197 = por %p195, %p196
    %p199 = scmp.ne.s32.totalorder %s184, %s198
    %p200 = scmp.eq.s32.totalorder %s22, 0
    %p201 = por %p199, %p200
    %s203 = sadd.s32 %s202, 1
    %p206 = scmp.eq.s32.totalorder %s16, 1
    %p207 = scmp.ne.s32.totalorder %s202, %s204
    %p208 = scmp.eq.s32.totalorder %s16, 0
    %p209 = por %p207, %p208
    %p210 = scmp.ne.s32.totalorder %s202, %s204
    %p211 = scmp.eq.s32.totalorder %s21, 1
    %p212 = por %p210, %p211
    %p213 = scmp.ne.s32.totalorder %s204, %s205
    %p214 = scmp.eq.s32.totalorder %s21, 0
    %p215 = por %p213, %p214
    %p216 = scmp.ne.s32.totalorder %s204, %s205
    %p217 = scmp.eq.s32.totalorder %s22, 1
    %p218 = por %p216, %p217
    %p220 = scmp.ne.s32.totalorder %s205, %s219
    %p221 = scmp.eq.s32.totalorder %s22, 0
    %p222 = por %p220, %p221
    %s224 = sadd.s32 %s223, 1
    %p227 = scmp.eq.s32.totalorder %s16, 1
    %p228 = scmp.ne.s32.totalorder %s223, %s225
    %p229 = scmp.eq.s32.totalorder %s16, 0
    %p230 = por %p228, %p229
    %p231 = scmp.ne.s32.totalorder %s223, %s225
    %p232 = scmp.eq.s32.totalorder %s21, 1
    %p233 = por %p231, %p232
    %p234 = scmp.ne.s32.totalorder %s225, %s226
    %p235 = scmp.eq.s32.totalorder %s21, 0
    %p236 = por %p234, %p235
    %p237 = scmp.ne.s32.totalorder %s225, %s226
    %p238 = scmp.eq.s32.totalorder %s22, 1
    %p239 = por %p237, %p238
    %p241 = scmp.ne.s32.totalorder %s226, %s240
    %p242 = scmp.eq.s32.totalorder %s22, 0
    %p243 = por %p241, %p242
    %s244 = ssub.s32 %s16, %s23
    %p245 = scmp.eq.s32.totalorder %s244, 0
    %s247 = sadd.s32 %s246, 1
    %s248 = scalar_select %p245, %s246, %s247
    %p251 = pneg %p245
    %p252 = scmp.eq.s32.totalorder %s16, 1
    %p253 = por %p251, %p252
    %p254 = scmp.ne.s32.totalorder %s246, %s249
    %p255 = scmp.eq.s32.totalorder %s16, 0
    %p256 = por %p254, %p255
    %p257 = scmp.ne.s32.totalorder %s246, %s249
    %p258 = scmp.eq.s32.totalorder %s21, 1
    %p259 = por %p257, %p258
    %p260 = scmp.ne.s32.totalorder %s249, %s250
    %p261 = scmp.eq.s32.totalorder %s21, 0
    %p262 = por %p260, %p261
    %p263 = scmp.ne.s32.totalorder %s249, %s250
    %p264 = scmp.eq.s32.totalorder %s22, 1
    %p265 = por %p263, %p264
    %p267 = scmp.ne.s32.totalorder %s250, %s266
    %p268 = scmp.eq.s32.totalorder %s22, 0
    %p269 = por %p267, %p268
    %p270 = scmp.le.s32.totalorder 1, %s16
    %p271 = scmp.lt.s32.totalorder %s16, 3
    %p272 = pnand %p270, %p271
    %p273 = pneg %p272
    // Predicated region
    $region9: #{res_up_pallas.1} parent=5 // pred_check
      _
    $region10: #{res_up_pallas.1} parent=5 // pred_check_branch
      %275 = sbr.rel (%p272) target = $region12
    $region11: #{res_up_pallas.1} parent=5 // pred_region
      %s276 = ssub.s32 %s16, 1
      // Predicated region
      $region13: #{res_up_pallas.1} parent=11 // pred_check
        %p277 = pneg %p89
      $region14: #{res_up_pallas.1} parent=11 // pred_check_branch
        %279 = sbr.rel (%p277) target = $region16
      $region15: #{res_up_pallas.1} parent=11 // pred_region
        _
      $region16: #{res_up_pallas.1} parent=11 // pred_fallthru
        _
      // Predicated region
      $region17: #{res_up_pallas.1} parent=11 // pred_check
        %p280 = pneg %p110
      $region18: #{res_up_pallas.1} parent=11 // pred_check_branch
        %282 = sbr.rel (%p280) target = $region20
      $region19: #{res_up_pallas.1} parent=11 // pred_region
        _
      $region20: #{res_up_pallas.1} parent=11 // pred_fallthru
        _
      // Predicated region
      $region21: #{res_up_pallas.1} parent=11 // pred_check
        %p283 = pneg %p131
      $region22: #{res_up_pallas.1} parent=11 // pred_check_branch
        %285 = sbr.rel (%p283) target = $region24
      $region23: #{res_up_pallas.1} parent=11 // pred_region
        _
      $region24: #{res_up_pallas.1} parent=11 // pred_fallthru
        _
      // Predicated region
      $region25: #{res_up_pallas.1} parent=11 // pred_check
        %p286 = pneg %p152
      $region26: #{res_up_pallas.1} parent=11 // pred_check_branch
        %288 = sbr.rel (%p286) target = $region28
      $region27: #{res_up_pallas.1} parent=11 // pred_region
        _
      $region28: #{res_up_pallas.1} parent=11 // pred_fallthru
        _
      // Predicated region
      $region29: #{res_up_pallas.1} parent=11 // pred_check
        %p289 = pneg %p173
      $region30: #{res_up_pallas.1} parent=11 // pred_check_branch
        %291 = sbr.rel (%p289) target = $region32
      $region31: #{res_up_pallas.1} parent=11 // pred_region
        _
      $region32: #{res_up_pallas.1} parent=11 // pred_fallthru
        _
      // Predicated region
      $region33: #{res_up_pallas.1} parent=11 // pred_check
        %p292 = pneg %p194
      $region34: #{res_up_pallas.1} parent=11 // pred_check_branch
        %294 = sbr.rel (%p292) target = $region36
      $region35: #{res_up_pallas.1} parent=11 // pred_region
        _
      $region36: #{res_up_pallas.1} parent=11 // pred_fallthru
        _
      // Predicated region
      $region37: #{res_up_pallas.1} parent=11 // pred_check
        %p295 = pneg %p215
      $region38: #{res_up_pallas.1} parent=11 // pred_check_branch
        %297 = sbr.rel (%p295) target = $region40
      $region39: #{res_up_pallas.1} parent=11 // pred_region
        _
      $region40: #{res_up_pallas.1} parent=11 // pred_fallthru
        _
      // Predicated region
      $region41: #{res_up_pallas.1} parent=11 // pred_check
        %p298 = pneg %p236
      $region42: #{res_up_pallas.1} parent=11 // pred_check_branch
        %300 = sbr.rel (%p298) target = $region44
      $region43: #{res_up_pallas.1} parent=11 // pred_region
        _
      $region44: #{res_up_pallas.1} parent=11 // pred_fallthru
        _
    $region12: #{res_up_pallas.1} parent=5 // pred_fallthru
      _
    %p301 = scmp.lt.s32.totalorder %s16, 2
    // Predicated region
    $region45: #{res_up_pallas.1} parent=5 // pred_check
      %p302 = pneg %p301
    $region46: #{res_up_pallas.1} parent=5 // pred_check_branch
      %304 = sbr.rel (%p302) target = $region48
    $region47: #{res_up_pallas.1} parent=5 // pred_region
      // Predicated region
      $region49: #{res_up_pallas.1} parent=47 // pred_check
        %p305 = pneg %p36
      $region50: #{res_up_pallas.1} parent=47 // pred_check_branch
        %307 = sbr.rel (%p305) target = $region52
      $region51: #{res_up_pallas.1} parent=47 // pred_region
        %p308 = scmp.lt.s32.totalorder %s16, 1
        %s309 = scalar_select %p308, %s16, 1
        %s310 = smul.addr %s309, 8
        %s311 = smul.addr %s310, 8
        %s312 = scalar_lea.vmem %s0, %s311
      $region52: #{res_up_pallas.1} parent=47 // pred_fallthru
        _
      // Predicated region
      $region53: #{res_up_pallas.1} parent=47 // pred_check
        %p313 = pneg %p62
      $region54: #{res_up_pallas.1} parent=47 // pred_check_branch
        %315 = sbr.rel (%p313) target = $region56
      $region55: #{res_up_pallas.1} parent=47 // pred_region
        %p316 = scmp.lt.s32.totalorder %s16, 1
        %s317 = scalar_select %p316, %s16, 1
        %s318 = smul.addr %s317, 32
        %s319 = smul.addr %s318, 8
        %s320 = scalar_lea.vmem %s1, %s319
      $region56: #{res_up_pallas.1} parent=47 // pred_fallthru
        _
    $region48: #{res_up_pallas.1} parent=5 // pred_fallthru
      _
    %p321 = scmp.le.s32.totalorder 1, %s16
    %p322 = scmp.lt.s32.totalorder %s16, 3
    %p323 = pnand %p321, %p322
    %p324 = pneg %p323
    // Predicated region
    $region57: #{res_up_pallas.1} parent=5 // pred_check
      _
    $region58: #{res_up_pallas.1} parent=5 // pred_check_branch
      %326 = sbr.rel (%p323) target = $region60
    $region59: #{res_up_pallas.1} parent=5 // pred_region
      %s327 = ssub.s32 %s16, 1
      %p328 = scmp.lt.s32.totalorder %s21, 1
      %s329 = scalar_select %p328, %s21, 1
      %s330 = smul.addr %s329, 8
      %s331 = smul.addr %s330, 8
      %s332 = scalar_lea.vmem %s0, %s331
      %p333 = pneg %p42
      %p334 = pneg %p39
      %p335 = scmp.lt.s32.totalorder %s21, 1
      %s336 = scalar_select %p335, %s21, 1
      %s337 = smul.addr %s336, 32
      %s338 = smul.addr %s337, 8
      %s339 = scalar_lea.vmem %s1, %s338
      %p340 = pneg %p68
      %p341 = pneg %p65
      %p342 = pneg %p89
      %p343 = pneg %p86
      %p344 = pneg %p110
      %p345 = pneg %p107
      %p346 = pneg %p131
      %p347 = pneg %p128
      %p348 = pneg %p152
      %p349 = pneg %p149
      %p350 = pneg %p173
      %p351 = pneg %p170
      %p352 = pneg %p194
      %p353 = pneg %p191
      %p354 = pneg %p215
      %p355 = pneg %p212
      %p356 = pneg %p236
      %p357 = pneg %p233
      %p358 = pneg %p262
      %p359 = pneg %p259
      %p360 = scmp.lt.s32.totalorder %s21, 1
      %s361 = scalar_select %p360, %s21, 1
      %s362 = smul.addr %s361, 32
      %s363 = smul.addr %s362, 8
      %s364 = scalar_lea.vmem %s10, %s363
      %p365 = scmp.lt.s32.totalorder %s21, 1
      %s366 = scalar_select %p365, %s21, 1
      %s367 = smul.addr %s366, 8
      %s368 = smul.addr %s367, 8
      %s369 = scalar_lea.vmem %s0, %s368
      %p370 = scmp.lt.s32.totalorder %s21, 1
      %s371 = scalar_select %p370, %s21, 1
      %s372 = smul.addr %s371, 32
      %s373 = smul.addr %s372, 8
      %s374 = scalar_lea.vmem %s1, %s373
      %p375 = scmp.lt.s32.totalorder %s21, 1
      %s376 = scalar_select %p375, %s21, 1
      %s377 = smul.addr %s376, 32
      %s378 = smul.addr %s377, 8
      %s379 = scalar_lea.vmem %s10, %s378
      %v381 = vld [vmem:[%s369] sm:$0xff]
      %v382 = vld [vmem:[%s369 + $0x8] sm:$0xff]
      %v383 = vld [vmem:[%s369 + $0x10] sm:$0xff]
      %v384 = vld [vmem:[%s369 + $0x18] sm:$0xff]
      %v385 = vld [vmem:[%s369 + $0x20] sm:$0xff]
      %v386 = vld [vmem:[%s369 + $0x28] sm:$0xff]
      %v387 = vld [vmem:[%s369 + $0x30] sm:$0xff]
      %v388 = vld [vmem:[%s369 + $0x38] sm:$0xff]
      %v389 = vld [vmem:[%s374] sm:$0xff]
      %v390 = vld [vmem:[%s374 + $0x8] sm:$0xff]
      %v391 = vld [vmem:[%s374 + $0x10] sm:$0xff]
      %v392 = vld [vmem:[%s374 + $0x18] sm:$0xff]
      %v393 = vld [vmem:[%s374 + $0x20] sm:$0xff]
      %v394 = vld [vmem:[%s374 + $0x28] sm:$0xff]
      %v395 = vld [vmem:[%s374 + $0x30] sm:$0xff]
      %v396 = vld [vmem:[%s374 + $0x38] sm:$0xff]
      %v397 = vld [vmem:[%s374 + $0x40] sm:$0xff]
      %v398 = vld [vmem:[%s374 + $0x48] sm:$0xff]
      %v399 = vld [vmem:[%s374 + $0x50] sm:$0xff]
      %v400 = vld [vmem:[%s374 + $0x58] sm:$0xff]
      %v401 = vld [vmem:[%s374 + $0x60] sm:$0xff]
      %v402 = vld [vmem:[%s374 + $0x68] sm:$0xff]
      %v403 = vld [vmem:[%s374 + $0x70] sm:$0xff]
      %v404 = vld [vmem:[%s374 + $0x78] sm:$0xff]
      %v405 = vld [vmem:[%s374 + $0x80] sm:$0xff]
      %v406 = vld [vmem:[%s374 + $0x88] sm:$0xff]
      %v407 = vld [vmem:[%s374 + $0x90] sm:$0xff]
      %v408 = vld [vmem:[%s374 + $0x98] sm:$0xff]
      %v409 = vld [vmem:[%s374 + $0xa0] sm:$0xff]
      %v410 = vld [vmem:[%s374 + $0xa8] sm:$0xff]
      %v411 = vld [vmem:[%s374 + $0xb0] sm:$0xff]
      %v412 = vld [vmem:[%s374 + $0xb8] sm:$0xff]
      %v413 = vld [vmem:[%s374 + $0xc0] sm:$0xff]
      %v414 = vld [vmem:[%s374 + $0xc8] sm:$0xff]
      %v415 = vld [vmem:[%s374 + $0xd0] sm:$0xff]
      %v416 = vld [vmem:[%s374 + $0xd8] sm:$0xff]
      %v417 = vld [vmem:[%s374 + $0xe0] sm:$0xff]
      %v418 = vld [vmem:[%s374 + $0xe8] sm:$0xff]
      %v419 = vld [vmem:[%s374 + $0xf0] sm:$0xff]
      %v420 = vld [vmem:[%s374 + $0xf8] sm:$0xff]
      %v421 = vpack.c.bf16 %v382, %v381
      %v422 = vpack.c.bf16 %v384, %v383
      %v423 = vpack.c.bf16 %v386, %v385
      %v424 = vpack.c.bf16 %v388, %v387
      %v425 = vld [vmem:[%s2] sm:$0x3]
      %vm426 = vcmask 31744
      %v428 = vsel %vm426, %v421, 0
      %v431 = vsel %vm426, %v422, 0
      %v434 = vsel %vm426, %v423, 0
      %v437 = vsel %vm426, %v424, 0
      %vm439 = vcmask 1041408
      %v441 = vsel %vm439, %v425, 0
      %443 = vmatpush.bf16.msra.mxu0 0
      %444 = vmatpush.bf16.msra.mxu0 0
      %445 = vmatpush.bf16.msra.mxu0 0
      %446 = vmatpush.bf16.msra.mxu0 0
      %447 = vmatpush.bf16.msra.mxu0 0
      %448 = vmatpush.bf16.msra.mxu0 0
      %449 = vmatpush.bf16.msra.mxu0 0
      %450 = vmatpush.bf16.msra.mxu0 %v441
      %451 = vmatmul.bf16.gmra.mxu0 %v428
      %v452 = vpop.f32.mrf.mxu0
      %v453 = vadd.f32 0.0, %v452
      %v454 = vpop.f32.mrf.mxu0
      %v455 = vadd.f32 0.0, %v454
      %456 = vmatmul.bf16.gmra.mxu0 %v431
      %v457 = vpop.f32.mrf.mxu0
      %v458 = vadd.f32 0.0, %v457
      %v459 = vpop.f32.mrf.mxu0
      %v460 = vadd.f32 0.0, %v459
      %461 = vmatmul.bf16.gmra.mxu0 %v434
      %v462 = vpop.f32.mrf.mxu0
      %v463 = vadd.f32 0.0, %v462
      %v464 = vpop.f32.mrf.mxu0
      %v465 = vadd.f32 0.0, %v464
      %466 = vmatmul.bf16.gmra.mxu0 %v437
      %v467 = vpop.f32.mrf.mxu0
      %v468 = vadd.f32 0.0, %v467
      %v469 = vpop.f32.mrf.mxu0
      %v470 = vadd.f32 0.0, %v469
      %471 = vdwg.mxu0
      %v480 = vrot.slane %v453, 1
      %v481 = vrot.slane %v453, 2
      %v482 = vrot.slane %v453, 3
      %v483 = vrot.slane %v453, 4
      %v484 = vrot.slane %v453, 5
      %v485 = vrot.slane %v453, 6
      %v486 = vrot.slane %v453, 7
      %v487 = vrot.slane %v455, 1
      %v488 = vrot.slane %v455, 2
      %v489 = vrot.slane %v455, 3
      %v490 = vrot.slane %v455, 4
      %v491 = vrot.slane %v455, 5
      %v492 = vrot.slane %v455, 6
      %v493 = vrot.slane %v455, 7
      %v494 = vrot.slane %v458, 1
      %v495 = vrot.slane %v458, 2
      %v496 = vrot.slane %v458, 3
      %v497 = vrot.slane %v458, 4
      %v498 = vrot.slane %v458, 5
      %v499 = vrot.slane %v458, 6
      %v500 = vrot.slane %v458, 7
      %v501 = vrot.slane %v460, 1
      %v502 = vrot.slane %v460, 2
      %v503 = vrot.slane %v460, 3
      %v504 = vrot.slane %v460, 4
      %v505 = vrot.slane %v460, 5
      %v506 = vrot.slane %v460, 6
      %v507 = vrot.slane %v460, 7
      %v508 = vrot.slane %v463, 1
      %v509 = vrot.slane %v463, 2
      %v510 = vrot.slane %v463, 3
      %v511 = vrot.slane %v463, 4
      %v512 = vrot.slane %v463, 5
      %v513 = vrot.slane %v463, 6
      %v514 = vrot.slane %v463, 7
      %v515 = vrot.slane %v465, 1
      %v516 = vrot.slane %v465, 2
      %v517 = vrot.slane %v465, 3
      %v518 = vrot.slane %v465, 4
      %v519 = vrot.slane %v465, 5
      %v520 = vrot.slane %v465, 6
      %v521 = vrot.slane %v465, 7
      %v522 = vrot.slane %v468, 1
      %v523 = vrot.slane %v468, 2
      %v524 = vrot.slane %v468, 3
      %v525 = vrot.slane %v468, 4
      %v526 = vrot.slane %v468, 5
      %v527 = vrot.slane %v468, 6
      %v528 = vrot.slane %v468, 7
      %v529 = vrot.slane %v470, 1
      %v530 = vrot.slane %v470, 2
      %v531 = vrot.slane %v470, 3
      %v532 = vrot.slane %v470, 4
      %v533 = vrot.slane %v470, 5
      %v534 = vrot.slane %v470, 6
      %v535 = vrot.slane %v470, 7
      %v592 = vperm.slane %v453, 0
      %v593 = vperm.slane %v480, 0
      %v594 = vperm.slane %v481, 0
      %v595 = vperm.slane %v482, 0
      %v596 = vperm.slane %v483, 0
      %v597 = vperm.slane %v484, 0
      %v598 = vperm.slane %v485, 0
      %v599 = vperm.slane %v486, 0
      %v600 = vperm.slane %v455, 0
      %v601 = vperm.slane %v487, 0
      %v602 = vperm.slane %v488, 0
      %v603 = vperm.slane %v489, 0
      %v604 = vperm.slane %v490, 0
      %v605 = vperm.slane %v491, 0
      %v606 = vperm.slane %v492, 0
      %v607 = vperm.slane %v493, 0
      %v608 = vperm.slane %v458, 0
      %v609 = vperm.slane %v494, 0
      %v610 = vperm.slane %v495, 0
      %v611 = vperm.slane %v496, 0
      %v612 = vperm.slane %v497, 0
      %v613 = vperm.slane %v498, 0
      %v614 = vperm.slane %v499, 0
      %v615 = vperm.slane %v500, 0
      %v616 = vperm.slane %v460, 0
      %v617 = vperm.slane %v501, 0
      %v618 = vperm.slane %v502, 0
      %v619 = vperm.slane %v503, 0
      %v620 = vperm.slane %v504, 0
      %v621 = vperm.slane %v505, 0
      %v622 = vperm.slane %v506, 0
      %v623 = vperm.slane %v507, 0
      %v624 = vperm.slane %v463, 0
      %v625 = vperm.slane %v508, 0
      %v626 = vperm.slane %v509, 0
      %v627 = vperm.slane %v510, 0
      %v628 = vperm.slane %v511, 0
      %v629 = vperm.slane %v512, 0
      %v630 = vperm.slane %v513, 0
      %v631 = vperm.slane %v514, 0
      %v632 = vperm.slane %v465, 0
      %v633 = vperm.slane %v515, 0
      %v634 = vperm.slane %v516, 0
      %v635 = vperm.slane %v517, 0
      %v636 = vperm.slane %v518, 0
      %v637 = vperm.slane %v519, 0
      %v638 = vperm.slane %v520, 0
      %v639 = vperm.slane %v521, 0
      %v640 = vperm.slane %v468, 0
      %v641 = vperm.slane %v522, 0
      %v642 = vperm.slane %v523, 0
      %v643 = vperm.slane %v524, 0
      %v644 = vperm.slane %v525, 0
      %v645 = vperm.slane %v526, 0
      %v646 = vperm.slane %v527, 0
      %v647 = vperm.slane %v528, 0
      %v648 = vperm.slane %v470, 0
      %v649 = vperm.slane %v529, 0
      %v650 = vperm.slane %v530, 0
      %v651 = vperm.slane %v531, 0
      %v652 = vperm.slane %v532, 0
      %v653 = vperm.slane %v533, 0
      %v654 = vperm.slane %v534, 0
      %v655 = vperm.slane %v535, 0
      %656 = vrot.lane.b32.xlu0 %v592, 124
      %v657 = vpop.permute.xlu0 %656
      %658 = vrot.lane.b32.xlu0 %v593, 124
      %v659 = vpop.permute.xlu0 %658
      %660 = vrot.lane.b32.xlu0 %v594, 124
      %v661 = vpop.permute.xlu0 %660
      %662 = vrot.lane.b32.xlu0 %v595, 124
      %v663 = vpop.permute.xlu0 %662
      %664 = vrot.lane.b32.xlu0 %v596, 124
      %v665 = vpop.permute.xlu0 %664
      %666 = vrot.lane.b32.xlu0 %v597, 124
      %v667 = vpop.permute.xlu0 %666
      %668 = vrot.lane.b32.xlu0 %v598, 124
      %v669 = vpop.permute.xlu0 %668
      %670 = vrot.lane.b32.xlu0 %v599, 124
      %v671 = vpop.permute.xlu0 %670
      %672 = vrot.lane.b32.xlu0 %v600, 124
      %v673 = vpop.permute.xlu0 %672
      %674 = vrot.lane.b32.xlu0 %v601, 124
      %v675 = vpop.permute.xlu0 %674
      %676 = vrot.lane.b32.xlu0 %v602, 124
      %v677 = vpop.permute.xlu0 %676
      %678 = vrot.lane.b32.xlu0 %v603, 124
      %v679 = vpop.permute.xlu0 %678
      %680 = vrot.lane.b32.xlu0 %v604, 124
      %v681 = vpop.permute.xlu0 %680
      %682 = vrot.lane.b32.xlu0 %v605, 124
      %v683 = vpop.permute.xlu0 %682
      %684 = vrot.lane.b32.xlu0 %v606, 124
      %v685 = vpop.permute.xlu0 %684
      %686 = vrot.lane.b32.xlu0 %v607, 124
      %v687 = vpop.permute.xlu0 %686
      %688 = vrot.lane.b32.xlu0 %v608, 124
      %v689 = vpop.permute.xlu0 %688
      %690 = vrot.lane.b32.xlu0 %v609, 124
      %v691 = vpop.permute.xlu0 %690
      %692 = vrot.lane.b32.xlu0 %v610, 124
      %v693 = vpop.permute.xlu0 %692
      %694 = vrot.lane.b32.xlu0 %v611, 124
      %v695 = vpop.permute.xlu0 %694
      %696 = vrot.lane.b32.xlu0 %v612, 124
      %v697 = vpop.permute.xlu0 %696
      %698 = vrot.lane.b32.xlu0 %v613, 124
      %v699 = vpop.permute.xlu0 %698
      %700 = vrot.lane.b32.xlu0 %v614, 124
      %v701 = vpop.permute.xlu0 %700
      %702 = vrot.lane.b32.xlu0 %v615, 124
      %v703 = vpop.permute.xlu0 %702
      %704 = vrot.lane.b32.xlu0 %v616, 124
      %v705 = vpop.permute.xlu0 %704
      %706 = vrot.lane.b32.xlu0 %v617, 124
      %v707 = vpop.permute.xlu0 %706
      %708 = vrot.lane.b32.xlu0 %v618, 124
      %v709 = vpop.permute.xlu0 %708
      %710 = vrot.lane.b32.xlu0 %v619, 124
      %v711 = vpop.permute.xlu0 %710
      %712 = vrot.lane.b32.xlu0 %v620, 124
      %v713 = vpop.permute.xlu0 %712
      %714 = vrot.lane.b32.xlu0 %v621, 124
      %v715 = vpop.permute.xlu0 %714
      %716 = vrot.lane.b32.xlu0 %v622, 124
      %v717 = vpop.permute.xlu0 %716
      %718 = vrot.lane.b32.xlu0 %v623, 124
      %v719 = vpop.permute.xlu0 %718
      %720 = vrot.lane.b32.xlu0 %v624, 124
      %v721 = vpop.permute.xlu0 %720
      %722 = vrot.lane.b32.xlu0 %v625, 124
      %v723 = vpop.permute.xlu0 %722
      %724 = vrot.lane.b32.xlu0 %v626, 124
      %v725 = vpop.permute.xlu0 %724
      %726 = vrot.lane.b32.xlu0 %v627, 124
      %v727 = vpop.permute.xlu0 %726
      %728 = vrot.lane.b32.xlu0 %v628, 124
      %v729 = vpop.permute.xlu0 %728
      %730 = vrot.lane.b32.xlu0 %v629, 124
      %v731 = vpop.permute.xlu0 %730
      %732 = vrot.lane.b32.xlu0 %v630, 124
      %v733 = vpop.permute.xlu0 %732
      %734 = vrot.lane.b32.xlu0 %v631, 124
      %v735 = vpop.permute.xlu0 %734
      %736 = vrot.lane.b32.xlu0 %v632, 124
      %v737 = vpop.permute.xlu0 %736
      %738 = vrot.lane.b32.xlu0 %v633, 124
      %v739 = vpop.permute.xlu0 %738
      %740 = vrot.lane.b32.xlu0 %v634, 124
      %v741 = vpop.permute.xlu0 %740
      %742 = vrot.lane.b32.xlu0 %v635, 124
      %v743 = vpop.permute.xlu0 %742
      %744 = vrot.lane.b32.xlu0 %v636, 124
      %v745 = vpop.permute.xlu0 %744
      %746 = vrot.lane.b32.xlu0 %v637, 124
      %v747 = vpop.permute.xlu0 %746
      %748 = vrot.lane.b32.xlu0 %v638, 124
      %v749 = vpop.permute.xlu0 %748
      %750 = vrot.lane.b32.xlu0 %v639, 124
      %v751 = vpop.permute.xlu0 %750
      %752 = vrot.lane.b32.xlu0 %v640, 124
      %v753 = vpop.permute.xlu0 %752
      %754 = vrot.lane.b32.xlu0 %v641, 124
      %v755 = vpop.permute.xlu0 %754
      %756 = vrot.lane.b32.xlu0 %v642, 124
      %v757 = vpop.permute.xlu0 %756
      %758 = vrot.lane.b32.xlu0 %v643, 124
      %v759 = vpop.permute.xlu0 %758
      %760 = vrot.lane.b32.xlu0 %v644, 124
      %v761 = vpop.permute.xlu0 %760
      %762 = vrot.lane.b32.xlu0 %v645, 124
      %v763 = vpop.permute.xlu0 %762
      %764 = vrot.lane.b32.xlu0 %v646, 124
      %v765 = vpop.permute.xlu0 %764
      %766 = vrot.lane.b32.xlu0 %v647, 124
      %v767 = vpop.permute.xlu0 %766
      %768 = vrot.lane.b32.xlu0 %v648, 124
      %v769 = vpop.permute.xlu0 %768
      %770 = vrot.lane.b32.xlu0 %v649, 124
      %v771 = vpop.permute.xlu0 %770
      %772 = vrot.lane.b32.xlu0 %v650, 124
      %v773 = vpop.permute.xlu0 %772
      %774 = vrot.lane.b32.xlu0 %v651, 124
      %v775 = vpop.permute.xlu0 %774
      %776 = vrot.lane.b32.xlu0 %v652, 124
      %v777 = vpop.permute.xlu0 %776
      %778 = vrot.lane.b32.xlu0 %v653, 124
      %v779 = vpop.permute.xlu0 %778
      %780 = vrot.lane.b32.xlu0 %v654, 124
      %v781 = vpop.permute.xlu0 %780
      %782 = vrot.lane.b32.xlu0 %v655, 124
      %v783 = vpop.permute.xlu0 %782
      %vm848 = vcmask 1040384
      %v849 = vsel %vm848, %v453, %v657
      %v850 = vsel %vm848, %v480, %v659
      %v851 = vsel %vm848, %v481, %v661
      %v852 = vsel %vm848, %v482, %v663
      %v853 = vsel %vm848, %v483, %v665
      %v854 = vsel %vm848, %v484, %v667
      %v855 = vsel %vm848, %v485, %v669
      %v856 = vsel %vm848, %v486, %v671
      %v857 = vsel %vm848, %v455, %v673
      %v858 = vsel %vm848, %v487, %v675
      %v859 = vsel %vm848, %v488, %v677
      %v860 = vsel %vm848, %v489, %v679
      %v861 = vsel %vm848, %v490, %v681
      %v862 = vsel %vm848, %v491, %v683
      %v863 = vsel %vm848, %v492, %v685
      %v864 = vsel %vm848, %v493, %v687
      %v865 = vsel %vm848, %v458, %v689
      %v866 = vsel %vm848, %v494, %v691
      %v867 = vsel %vm848, %v495, %v693
      %v868 = vsel %vm848, %v496, %v695
      %v869 = vsel %vm848, %v497, %v697
      %v870 = vsel %vm848, %v498, %v699
      %v871 = vsel %vm848, %v499, %v701
      %v872 = vsel %vm848, %v500, %v703
      %v873 = vsel %vm848, %v460, %v705
      %v874 = vsel %vm848, %v501, %v707
      %v875 = vsel %vm848, %v502, %v709
      %v876 = vsel %vm848, %v503, %v711
      %v877 = vsel %vm848, %v504, %v713
      %v878 = vsel %vm848, %v505, %v715
      %v879 = vsel %vm848, %v506, %v717
      %v880 = vsel %vm848, %v507, %v719
      %v881 = vsel %vm848, %v463, %v721
      %v882 = vsel %vm848, %v508, %v723
      %v883 = vsel %vm848, %v509, %v725
      %v884 = vsel %vm848, %v510, %v727
      %v885 = vsel %vm848, %v511, %v729
      %v886 = vsel %vm848, %v512, %v731
      %v887 = vsel %vm848, %v513, %v733
      %v888 = vsel %vm848, %v514, %v735
      %v889 = vsel %vm848, %v465, %v737
      %v890 = vsel %vm848, %v515, %v739
      %v891 = vsel %vm848, %v516, %v741
      %v892 = vsel %vm848, %v517, %v743
      %v893 = vsel %vm848, %v518, %v745
      %v894 = vsel %vm848, %v519, %v747
      %v895 = vsel %vm848, %v520, %v749
      %v896 = vsel %vm848, %v521, %v751
      %v897 = vsel %vm848, %v468, %v753
      %v898 = vsel %vm848, %v522, %v755
      %v899 = vsel %vm848, %v523, %v757
      %v900 = vsel %vm848, %v524, %v759
      %v901 = vsel %vm848, %v525, %v761
      %v902 = vsel %vm848, %v526, %v763
      %v903 = vsel %vm848, %v527, %v765
      %v904 = vsel %vm848, %v528, %v767
      %v905 = vsel %vm848, %v470, %v769
      %v906 = vsel %vm848, %v529, %v771
      %v907 = vsel %vm848, %v530, %v773
      %v908 = vsel %vm848, %v531, %v775
      %v909 = vsel %vm848, %v532, %v777
      %v910 = vsel %vm848, %v533, %v779
      %v911 = vsel %vm848, %v534, %v781
      %v912 = vsel %vm848, %v535, %v783
      %977 = vrot.lane.b32.xlu0 %v849, 120
      %v978 = vpop.permute.xlu0 %977
      %979 = vrot.lane.b32.xlu0 %v850, 120
      %v980 = vpop.permute.xlu0 %979
      %981 = vrot.lane.b32.xlu0 %v851, 120
      %v982 = vpop.permute.xlu0 %981
      %983 = vrot.lane.b32.xlu0 %v852, 120
      %v984 = vpop.permute.xlu0 %983
      %985 = vrot.lane.b32.xlu0 %v853, 120
      %v986 = vpop.permute.xlu0 %985
      %987 = vrot.lane.b32.xlu0 %v854, 120
      %v988 = vpop.permute.xlu0 %987
      %989 = vrot.lane.b32.xlu0 %v855, 120
      %v990 = vpop.permute.xlu0 %989
      %991 = vrot.lane.b32.xlu0 %v856, 120
      %v992 = vpop.permute.xlu0 %991
      %993 = vrot.lane.b32.xlu0 %v857, 120
      %v994 = vpop.permute.xlu0 %993
      %995 = vrot.lane.b32.xlu0 %v858, 120
      %v996 = vpop.permute.xlu0 %995
      %997 = vrot.lane.b32.xlu0 %v859, 120
      %v998 = vpop.permute.xlu0 %997
      %999 = vrot.lane.b32.xlu0 %v860, 120
      %v1000 = vpop.permute.xlu0 %999
      %1001 = vrot.lane.b32.xlu0 %v861, 120
      %v1002 = vpop.permute.xlu0 %1001
      %1003 = vrot.lane.b32.xlu0 %v862, 120
      %v1004 = vpop.permute.xlu0 %1003
      %1005 = vrot.lane.b32.xlu0 %v863, 120
      %v1006 = vpop.permute.xlu0 %1005
      %1007 = vrot.lane.b32.xlu0 %v864, 120
      %v1008 = vpop.permute.xlu0 %1007
      %1009 = vrot.lane.b32.xlu0 %v865, 120
      %v1010 = vpop.permute.xlu0 %1009
      %1011 = vrot.lane.b32.xlu0 %v866, 120
      %v1012 = vpop.permute.xlu0 %1011
      %1013 = vrot.lane.b32.xlu0 %v867, 120
      %v1014 = vpop.permute.xlu0 %1013
      %1015 = vrot.lane.b32.xlu0 %v868, 120
      %v1016 = vpop.permute.xlu0 %1015
      %1017 = vrot.lane.b32.xlu0 %v869, 120
      %v1018 = vpop.permute.xlu0 %1017
      %1019 = vrot.lane.b32.xlu0 %v870, 120
      %v1020 = vpop.permute.xlu0 %1019
      %1021 = vrot.lane.b32.xlu0 %v871, 120
      %v1022 = vpop.permute.xlu0 %1021
      %1023 = vrot.lane.b32.xlu0 %v872, 120
      %v1024 = vpop.permute.xlu0 %1023
      %1025 = vrot.lane.b32.xlu0 %v873, 120
      %v1026 = vpop.permute.xlu0 %1025
      %1027 = vrot.lane.b32.xlu0 %v874, 120
      %v1028 = vpop.permute.xlu0 %1027
      %1029 = vrot.lane.b32.xlu0 %v875, 120
      %v1030 = vpop.permute.xlu0 %1029
      %1031 = vrot.lane.b32.xlu0 %v876, 120
      %v1032 = vpop.permute.xlu0 %1031
      %1033 = vrot.lane.b32.xlu0 %v877, 120
      %v1034 = vpop.permute.xlu0 %1033
      %1035 = vrot.lane.b32.xlu0 %v878, 120
      %v1036 = vpop.permute.xlu0 %1035
      %1037 = vrot.lane.b32.xlu0 %v879, 120
      %v1038 = vpop.permute.xlu0 %1037
      %1039 = vrot.lane.b32.xlu0 %v880, 120
      %v1040 = vpop.permute.xlu0 %1039
      %1041 = vrot.lane.b32.xlu0 %v881, 120
      %v1042 = vpop.permute.xlu0 %1041
      %1043 = vrot.lane.b32.xlu0 %v882, 120
      %v1044 = vpop.permute.xlu0 %1043
      %1045 = vrot.lane.b32.xlu0 %v883, 120
      %v1046 = vpop.permute.xlu0 %1045
      %1047 = vrot.lane.b32.xlu0 %v884, 120
      %v1048 = vpop.permute.xlu0 %1047
      %1049 = vrot.lane.b32.xlu0 %v885, 120
      %v1050 = vpop.permute.xlu0 %1049
      %1051 = vrot.lane.b32.xlu0 %v886, 120
      %v1052 = vpop.permute.xlu0 %1051
      %1053 = vrot.lane.b32.xlu0 %v887, 120
      %v1054 = vpop.permute.xlu0 %1053
      %1055 = vrot.lane.b32.xlu0 %v888, 120
      %v1056 = vpop.permute.xlu0 %1055
      %1057 = vrot.lane.b32.xlu0 %v889, 120
      %v1058 = vpop.permute.xlu0 %1057
      %1059 = vrot.lane.b32.xlu0 %v890, 120
      %v1060 = vpop.permute.xlu0 %1059
      %1061 = vrot.lane.b32.xlu0 %v891, 120
      %v1062 = vpop.permute.xlu0 %1061
      %1063 = vrot.lane.b32.xlu0 %v892, 120
      %v1064 = vpop.permute.xlu0 %1063
      %1065 = vrot.lane.b32.xlu0 %v893, 120
      %v1066 = vpop.permute.xlu0 %1065
      %1067 = vrot.lane.b32.xlu0 %v894, 120
      %v1068 = vpop.permute.xlu0 %1067
      %1069 = vrot.lane.b32.xlu0 %v895, 120
      %v1070 = vpop.permute.xlu0 %1069
      %1071 = vrot.lane.b32.xlu0 %v896, 120
      %v1072 = vpop.permute.xlu0 %1071
      %1073 = vrot.lane.b32.xlu0 %v897, 120
      %v1074 = vpop.permute.xlu0 %1073
      %1075 = vrot.lane.b32.xlu0 %v898, 120
      %v1076 = vpop.permute.xlu0 %1075
      %1077 = vrot.lane.b32.xlu0 %v899, 120
      %v1078 = vpop.permute.xlu0 %1077
      %1079 = vrot.lane.b32.xlu0 %v900, 120
      %v1080 = vpop.permute.xlu0 %1079
      %1081 = vrot.lane.b32.xlu0 %v901, 120
      %v1082 = vpop.permute.xlu0 %1081
      %1083 = vrot.lane.b32.xlu0 %v902, 120
      %v1084 = vpop.permute.xlu0 %1083
      %1085 = vrot.lane.b32.xlu0 %v903, 120
      %v1086 = vpop.permute.xlu0 %1085
      %1087 = vrot.lane.b32.xlu0 %v904, 120
      %v1088 = vpop.permute.xlu0 %1087
      %1089 = vrot.lane.b32.xlu0 %v905, 120
      %v1090 = vpop.permute.xlu0 %1089
      %1091 = vrot.lane.b32.xlu0 %v906, 120
      %v1092 = vpop.permute.xlu0 %1091
      %1093 = vrot.lane.b32.xlu0 %v907, 120
      %v1094 = vpop.permute.xlu0 %1093
      %1095 = vrot.lane.b32.xlu0 %v908, 120
      %v1096 = vpop.permute.xlu0 %1095
      %1097 = vrot.lane.b32.xlu0 %v909, 120
      %v1098 = vpop.permute.xlu0 %1097
      %1099 = vrot.lane.b32.xlu0 %v910, 120
      %v1100 = vpop.permute.xlu0 %1099
      %1101 = vrot.lane.b32.xlu0 %v911, 120
      %v1102 = vpop.permute.xlu0 %1101
      %1103 = vrot.lane.b32.xlu0 %v912, 120
      %v1104 = vpop.permute.xlu0 %1103
      %v1169 = vld [vmem:[%s3] sm:$0x1]
      %v1171 = vperm.slane %v1169, 0
      %v1173 = vrot.slane %v1171, 2
      %v1174 = vrot.slane %v1171, 4
      %v1175 = vrot.slane %v1171, 6
      %v1179 = vadd.f32 %v849, %v1171
      %v1180 = vadd.f32 %v850, %v1173
      %v1181 = vadd.f32 %v851, %v1174
      %v1182 = vadd.f32 %v852, %v1175
      %v1183 = vadd.f32 %v853, %v1171
      %v1184 = vadd.f32 %v854, %v1173
      %v1185 = vadd.f32 %v855, %v1174
      %v1186 = vadd.f32 %v856, %v1175
      %v1187 = vadd.f32 %v978, %v1171
      %v1188 = vadd.f32 %v980, %v1173
      %v1189 = vadd.f32 %v982, %v1174
      %v1190 = vadd.f32 %v984, %v1175
      %v1191 = vadd.f32 %v986, %v1171
      %v1192 = vadd.f32 %v988, %v1173
      %v1193 = vadd.f32 %v990, %v1174
      %v1194 = vadd.f32 %v992, %v1175
      %v1195 = vadd.f32 %v857, %v1171
      %v1196 = vadd.f32 %v858, %v1173
      %v1197 = vadd.f32 %v859, %v1174
      %v1198 = vadd.f32 %v860, %v1175
      %v1199 = vadd.f32 %v861, %v1171
      %v1200 = vadd.f32 %v862, %v1173
      %v1201 = vadd.f32 %v863, %v1174
      %v1202 = vadd.f32 %v864, %v1175
      %v1203 = vadd.f32 %v994, %v1171
      %v1204 = vadd.f32 %v996, %v1173
      %v1205 = vadd.f32 %v998, %v1174
      %v1206 = vadd.f32 %v1000, %v1175
      %v1207 = vadd.f32 %v1002, %v1171
      %v1208 = vadd.f32 %v1004, %v1173
      %v1209 = vadd.f32 %v1006, %v1174
      %v1210 = vadd.f32 %v1008, %v1175
      %v1211 = vadd.f32 %v865, %v1171
      %v1212 = vadd.f32 %v866, %v1173
      %v1213 = vadd.f32 %v867, %v1174
      %v1214 = vadd.f32 %v868, %v1175
      %v1215 = vadd.f32 %v869, %v1171
      %v1216 = vadd.f32 %v870, %v1173
      %v1217 = vadd.f32 %v871, %v1174
      %v1218 = vadd.f32 %v872, %v1175
      %v1219 = vadd.f32 %v1010, %v1171
      %v1220 = vadd.f32 %v1012, %v1173
      %v1221 = vadd.f32 %v1014, %v1174
      %v1222 = vadd.f32 %v1016, %v1175
      %v1223 = vadd.f32 %v1018, %v1171
      %v1224 = vadd.f32 %v1020, %v1173
      %v1225 = vadd.f32 %v1022, %v1174
      %v1226 = vadd.f32 %v1024, %v1175
      %v1227 = vadd.f32 %v873, %v1171
      %v1228 = vadd.f32 %v874, %v1173
      %v1229 = vadd.f32 %v875, %v1174
      %v1230 = vadd.f32 %v876, %v1175
      %v1231 = vadd.f32 %v877, %v1171
      %v1232 = vadd.f32 %v878, %v1173
      %v1233 = vadd.f32 %v879, %v1174
      %v1234 = vadd.f32 %v880, %v1175
      %v1235 = vadd.f32 %v1026, %v1171
      %v1236 = vadd.f32 %v1028, %v1173
      %v1237 = vadd.f32 %v1030, %v1174
      %v1238 = vadd.f32 %v1032, %v1175
      %v1239 = vadd.f32 %v1034, %v1171
      %v1240 = vadd.f32 %v1036, %v1173
      %v1241 = vadd.f32 %v1038, %v1174
      %v1242 = vadd.f32 %v1040, %v1175
      %v1243 = vadd.f32 %v881, %v1171
      %v1244 = vadd.f32 %v882, %v1173
      %v1245 = vadd.f32 %v883, %v1174
      %v1246 = vadd.f32 %v884, %v1175
      %v1247 = vadd.f32 %v885, %v1171
      %v1248 = vadd.f32 %v886, %v1173
      %v1249 = vadd.f32 %v887, %v1174
      %v1250 = vadd.f32 %v888, %v1175
      %v1251 = vadd.f32 %v1042, %v1171
      %v1252 = vadd.f32 %v1044, %v1173
      %v1253 = vadd.f32 %v1046, %v1174
      %v1254 = vadd.f32 %v1048, %v1175
      %v1255 = vadd.f32 %v1050, %v1171
      %v1256 = vadd.f32 %v1052, %v1173
      %v1257 = vadd.f32 %v1054, %v1174
      %v1258 = vadd.f32 %v1056, %v1175
      %v1259 = vadd.f32 %v889, %v1171
      %v1260 = vadd.f32 %v890, %v1173
      %v1261 = vadd.f32 %v891, %v1174
      %v1262 = vadd.f32 %v892, %v1175
      %v1263 = vadd.f32 %v893, %v1171
      %v1264 = vadd.f32 %v894, %v1173
      %v1265 = vadd.f32 %v895, %v1174
      %v1266 = vadd.f32 %v896, %v1175
      %v1267 = vadd.f32 %v1058, %v1171
      %v1268 = vadd.f32 %v1060, %v1173
      %v1269 = vadd.f32 %v1062, %v1174
      %v1270 = vadd.f32 %v1064, %v1175
      %v1271 = vadd.f32 %v1066, %v1171
      %v1272 = vadd.f32 %v1068, %v1173
      %v1273 = vadd.f32 %v1070, %v1174
      %v1274 = vadd.f32 %v1072, %v1175
      %v1275 = vadd.f32 %v897, %v1171
      %v1276 = vadd.f32 %v898, %v1173
      %v1277 = vadd.f32 %v899, %v1174
      %v1278 = vadd.f32 %v900, %v1175
      %v1279 = vadd.f32 %v901, %v1171
      %v1280 = vadd.f32 %v902, %v1173
      %v1281 = vadd.f32 %v903, %v1174
      %v1282 = vadd.f32 %v904, %v1175
      %v1283 = vadd.f32 %v1074, %v1171
      %v1284 = vadd.f32 %v1076, %v1173
      %v1285 = vadd.f32 %v1078, %v1174
      %v1286 = vadd.f32 %v1080, %v1175
      %v1287 = vadd.f32 %v1082, %v1171
      %v1288 = vadd.f32 %v1084, %v1173
      %v1289 = vadd.f32 %v1086, %v1174
      %v1290 = vadd.f32 %v1088, %v1175
      %v1291 = vadd.f32 %v905, %v1171
      %v1292 = vadd.f32 %v906, %v1173
      %v1293 = vadd.f32 %v907, %v1174
      %v1294 = vadd.f32 %v908, %v1175
      %v1295 = vadd.f32 %v909, %v1171
      %v1296 = vadd.f32 %v910, %v1173
      %v1297 = vadd.f32 %v911, %v1174
      %v1298 = vadd.f32 %v912, %v1175
      %v1299 = vadd.f32 %v1090, %v1171
      %v1300 = vadd.f32 %v1092, %v1173
      %v1301 = vadd.f32 %v1094, %v1174
      %v1302 = vadd.f32 %v1096, %v1175
      %v1303 = vadd.f32 %v1098, %v1171
      %v1304 = vadd.f32 %v1100, %v1173
      %v1305 = vadd.f32 %v1102, %v1174
      %v1306 = vadd.f32 %v1104, %v1175
      %1435 = vst [vmem:[#allocation1] ss:$4 sm:$0xff] %v1179
      %s1436 = scalar_lea.vmem [#allocation1], 1
      %1437 = vst [vmem:[%s1436] ss:$4 sm:$0xff] %v1180
      %s1438 = scalar_lea.vmem [#allocation1], 2
      %1439 = vst [vmem:[%s1438] ss:$4 sm:$0xff] %v1181
      %s1440 = scalar_lea.vmem [#allocation1], 3
      %1441 = vst [vmem:[%s1440] ss:$4 sm:$0xff] %v1182
      %s1442 = scalar_lea.vmem [#allocation1], 32
      %1443 = vst [vmem:[%s1442] ss:$4 sm:$0xff] %v1183
      %s1444 = scalar_lea.vmem [#allocation1], 33
      %1445 = vst [vmem:[%s1444] ss:$4 sm:$0xff] %v1184
      %s1446 = scalar_lea.vmem [#allocation1], 34
      %1447 = vst [vmem:[%s1446] ss:$4 sm:$0xff] %v1185
      %s1448 = scalar_lea.vmem [#allocation1], 35
      %1449 = vst [vmem:[%s1448] ss:$4 sm:$0xff] %v1186
      %v1450 = vld.sshfl [vmem:[#allocation1] sm:$0xff pattern:$0x73625140]
      %v1451 = vld.sshfl [vmem:[#allocation1 + $0x20] sm:$0xff pattern:$0x73625140]
      %1452 = vst [vmem:[#allocation1] ss:$4 sm:$0xff] %v1187
      %1453 = vst [vmem:[%s1436] ss:$4 sm:$0xff] %v1188
      %1454 = vst [vmem:[%s1438] ss:$4 sm:$0xff] %v1189
      %1455 = vst [vmem:[%s1440] ss:$4 sm:$0xff] %v1190
      %1456 = vst [vmem:[%s1442] ss:$4 sm:$0xff] %v1191
      %1457 = vst [vmem:[%s1444] ss:$4 sm:$0xff] %v1192
      %1458 = vst [vmem:[%s1446] ss:$4 sm:$0xff] %v1193
      %1459 = vst [vmem:[%s1448] ss:$4 sm:$0xff] %v1194
      %v1460 = vld.sshfl [vmem:[#allocation1] sm:$0xff pattern:$0x73625140]
      %v1461 = vld.sshfl [vmem:[#allocation1 + $0x20] sm:$0xff pattern:$0x73625140]
      %1462 = vst [vmem:[#allocation1] ss:$4 sm:$0xff] %v1195
      %1463 = vst [vmem:[%s1436] ss:$4 sm:$0xff] %v1196
      %1464 = vst [vmem:[%s1438] ss:$4 sm:$0xff] %v1197
      %1465 = vst [vmem:[%s1440] ss:$4 sm:$0xff] %v1198
      %1466 = vst [vmem:[%s1442] ss:$4 sm:$0xff] %v1199
      %1467 = vst [vmem:[%s1444] ss:$4 sm:$0xff] %v1200
      %1468 = vst [vmem:[%s1446] ss:$4 sm:$0xff] %v1201
      %1469 = vst [vmem:[%s1448] ss:$4 sm:$0xff] %v1202
      %v1470 = vld.sshfl [vmem:[#allocation1] sm:$0xff pattern:$0x73625140]
      %v1471 = vld.sshfl [vmem:[#allocation1 + $0x20] sm:$0xff pattern:$0x73625140]
      %1472 = vst [vmem:[#allocation1] ss:$4 sm:$0xff] %v1203
      %1473 = vst [vmem:[%s1436] ss:$4 sm:$0xff] %v1204
      %1474 = vst [vmem:[%s1438] ss:$4 sm:$0xff] %v1205
      %1475 = vst [vmem:[%s1440] ss:$4 sm:$0xff] %v1206
      %1476 = vst [vmem:[%s1442] ss:$4 sm:$0xff] %v1207
      %1477 = vst [vmem:[%s1444] ss:$4 sm:$0xff] %v1208
      %1478 = vst [vmem:[%s1446] ss:$4 sm:$0xff] %v1209
      %1479 = vst [vmem:[%s1448] ss:$4 sm:$0xff] %v1210
      %v1480 = vld.sshfl [vmem:[#allocation1] sm:$0xff pattern:$0x73625140]
      %v1481 = vld.sshfl [vmem:[#allocation1 + $0x20] sm:$0xff pattern:$0x73625140]
      %1482 = vst [vmem:[#allocation1] ss:$4 sm:$0xff] %v1211
      %1483 = vst [vmem:[%s1436] ss:$4 sm:$0xff] %v1212
      %1484 = vst [vmem:[%s1438] ss:$4 sm:$0xff] %v1213
      %1485 = vst [vmem:[%s1440] ss:$4 sm:$0xff] %v1214
      %1486 = vst [vmem:[%s1442] ss:$4 sm:$0xff] %v1215
      %1487 = vst [vmem:[%s1444] ss:$4 sm:$0xff] %v1216
      %1488 = vst [vmem:[%s1446] ss:$4 sm:$0xff] %v1217
      %1489 = vst [vmem:[%s1448] ss:$4 sm:$0xff] %v1218
      %v1490 = vld.sshfl [vmem:[#allocation1] sm:$0xff pattern:$0x73625140]
      %v1491 = vld.sshfl [vmem:[#allocation1 + $0x20] sm:$0xff pattern:$0x73625140]
      %1492 = vst [vmem:[#allocation1] ss:$4 sm:$0xff] %v1219
      %1493 = vst [vmem:[%s1436] ss:$4 sm:$0xff] %v1220
      %1494 = vst [vmem:[%s1438] ss:$4 sm:$0xff] %v1221
      %1495 = vst [vmem:[%s1440] ss:$4 sm:$0xff] %v1222
      %1496 = vst [vmem:[%s1442] ss:$4 sm:$0xff] %v1223
      %1497 = vst [vmem:[%s1444] ss:$4 sm:$0xff] %v1224
      %1498 = vst [vmem:[%s1446] ss:$4 sm:$0xff] %v1225
      %1499 = vst [vmem:[%s1448] ss:$4 sm:$0xff] %v1226
      %v1500 = vld.sshfl [vmem:[#allocation1] sm:$0xff pattern:$0x73625140]
      %v1501 = vld.sshfl [vmem:[#allocation1 + $0x20] sm:$0xff pattern:$0x73625140]
      %1502 = vst [vmem:[#allocation1] ss:$4 sm:$0xff] %v1227
      %1503 = vst [vmem:[%s1436] ss:$4 sm:$0xff] %v1228
      %1504 = vst [vmem:[%s1438] ss:$4 sm:$0xff] %v1229
      %1505 = vst [vmem:[%s1440] ss:$4 sm:$0xff] %v1230
      %1506 = vst [vmem:[%s1442] ss:$4 sm:$0xff] %v1231
      %1507 = vst [vmem:[%s1444] ss:$4 sm:$0xff] %v1232
      %1508 = vst [vmem:[%s1446] ss:$4 sm:$0xff] %v1233
      %1509 = vst [vmem:[%s1448] ss:$4 sm:$0xff] %v1234
      %v1510 = vld.sshfl [vmem:[#allocation1] sm:$0xff pattern:$0x73625140]
      %v1511 = vld.sshfl [vmem:[#allocation1 + $0x20] sm:$0xff pattern:$0x73625140]
      %1512 = vst [vmem:[#allocation1] ss:$4 sm:$0xff] %v1235
      %1513 = vst [vmem:[%s1436] ss:$4 sm:$0xff] %v1236
      %1514 = vst [vmem:[%s1438] ss:$4 sm:$0xff] %v1237
      %1515 = vst [vmem:[%s1440] ss:$4 sm:$0xff] %v1238
      %1516 = vst [vmem:[%s1442] ss:$4 sm:$0xff] %v1239
      %1517 = vst [vmem:[%s1444] ss:$4 sm:$0xff] %v1240
      %1518 = vst [vmem:[%s1446] ss:$4 sm:$0xff] %v1241
      %1519 = vst [vmem:[%s1448] ss:$4 sm:$0xff] %v1242
      %v1520 = vld.sshfl [vmem:[#allocation1] sm:$0xff pattern:$0x73625140]
      %v1521 = vld.sshfl [vmem:[#allocation1 + $0x20] sm:$0xff pattern:$0x73625140]
      %1522 = vst [vmem:[#allocation1] ss:$4 sm:$0xff] %v1243
      %1523 = vst [vmem:[%s1436] ss:$4 sm:$0xff] %v1244
      %1524 = vst [vmem:[%s1438] ss:$4 sm:$0xff] %v1245
      %1525 = vst [vmem:[%s1440] ss:$4 sm:$0xff] %v1246
      %1526 = vst [vmem:[%s1442] ss:$4 sm:$0xff] %v1247
      %1527 = vst [vmem:[%s1444] ss:$4 sm:$0xff] %v1248
      %1528 = vst [vmem:[%s1446] ss:$4 sm:$0xff] %v1249
      %1529 = vst [vmem:[%s1448] ss:$4 sm:$0xff] %v1250
      %v1530 = vld.sshfl [vmem:[#allocation1] sm:$0xff pattern:$0x73625140]
      %v1531 = vld.sshfl [vmem:[#allocation1 + $0x20] sm:$0xff pattern:$0x73625140]
      %1532 = vst [vmem:[#allocation1] ss:$4 sm:$0xff] %v1251
      %1533 = vst [vmem:[%s1436] ss:$4 sm:$0xff] %v1252
      %1534 = vst [vmem:[%s1438] ss:$4 sm:$0xff] %v1253
      %1535 = vst [vmem:[%s1440] ss:$4 sm:$0xff] %v1254
      %1536 = vst [vmem:[%s1442] ss:$4 sm:$0xff] %v1255
      %1537 = vst [vmem:[%s1444] ss:$4 sm:$0xff] %v1256
      %1538 = vst [vmem:[%s1446] ss:$4 sm:$0xff] %v1257
      %1539 = vst [vmem:[%s1448] ss:$4 sm:$0xff] %v1258
      %v1540 = vld.sshfl [vmem:[#allocation1] sm:$0xff pattern:$0x73625140]
      %v1541 = vld.sshfl [vmem:[#allocation1 + $0x20] sm:$0xff pattern:$0x73625140]
      %1542 = vst [vmem:[#allocation1] ss:$4 sm:$0xff] %v1259
      %1543 = vst [vmem:[%s1436] ss:$4 sm:$0xff] %v1260
      %1544 = vst [vmem:[%s1438] ss:$4 sm:$0xff] %v1261
      %1545 = vst [vmem:[%s1440] ss:$4 sm:$0xff] %v1262
      %1546 = vst [vmem:[%s1442] ss:$4 sm:$0xff] %v1263
      %1547 = vst [vmem:[%s1444] ss:$4 sm:$0xff] %v1264
      %1548 = vst [vmem:[%s1446] ss:$4 sm:$0xff] %v1265
      %1549 = vst [vmem:[%s1448] ss:$4 sm:$0xff] %v1266
      %v1550 = vld.sshfl [vmem:[#allocation1] sm:$0xff pattern:$0x73625140]
      %v1551 = vld.sshfl [vmem:[#allocation1 + $0x20] sm:$0xff pattern:$0x73625140]
      %1552 = vst [vmem:[#allocation1] ss:$4 sm:$0xff] %v1267
      %1553 = vst [vmem:[%s1436] ss:$4 sm:$0xff] %v1268
      %1554 = vst [vmem:[%s1438] ss:$4 sm:$0xff] %v1269
      %1555 = vst [vmem:[%s1440] ss:$4 sm:$0xff] %v1270
      %1556 = vst [vmem:[%s1442] ss:$4 sm:$0xff] %v1271
      %1557 = vst [vmem:[%s1444] ss:$4 sm:$0xff] %v1272
      %1558 = vst [vmem:[%s1446] ss:$4 sm:$0xff] %v1273
      %1559 = vst [vmem:[%s1448] ss:$4 sm:$0xff] %v1274
      %v1560 = vld.sshfl [vmem:[#allocation1] sm:$0xff pattern:$0x73625140]
      %v1561 = vld.sshfl [vmem:[#allocation1 + $0x20] sm:$0xff pattern:$0x73625140]
      %1562 = vst [vmem:[#allocation1] ss:$4 sm:$0xff] %v1275
      %1563 = vst [vmem:[%s1436] ss:$4 sm:$0xff] %v1276
      %1564 = vst [vmem:[%s1438] ss:$4 sm:$0xff] %v1277
      %1565 = vst [vmem:[%s1440] ss:$4 sm:$0xff] %v1278
      %1566 = vst [vmem:[%s1442] ss:$4 sm:$0xff] %v1279
      %1567 = vst [vmem:[%s1444] ss:$4 sm:$0xff] %v1280
      %1568 = vst [vmem:[%s1446] ss:$4 sm:$0xff] %v1281
      %1569 = vst [vmem:[%s1448] ss:$4 sm:$0xff] %v1282
      %v1570 = vld.sshfl [vmem:[#allocation1] sm:$0xff pattern:$0x73625140]
      %v1571 = vld.sshfl [vmem:[#allocation1 + $0x20] sm:$0xff pattern:$0x73625140]
      %1572 = vst [vmem:[#allocation1] ss:$4 sm:$0xff] %v1283
      %1573 = vst [vmem:[%s1436] ss:$4 sm:$0xff] %v1284
      %1574 = vst [vmem:[%s1438] ss:$4 sm:$0xff] %v1285
      %1575 = vst [vmem:[%s1440] ss:$4 sm:$0xff] %v1286
      %1576 = vst [vmem:[%s1442] ss:$4 sm:$0xff] %v1287
      %1577 = vst [vmem:[%s1444] ss:$4 sm:$0xff] %v1288
      %1578 = vst [vmem:[%s1446] ss:$4 sm:$0xff] %v1289
      %1579 = vst [vmem:[%s1448] ss:$4 sm:$0xff] %v1290
      %v1580 = vld.sshfl [vmem:[#allocation1] sm:$0xff pattern:$0x73625140]
      %v1581 = vld.sshfl [vmem:[#allocation1 + $0x20] sm:$0xff pattern:$0x73625140]
      %1582 = vst [vmem:[#allocation1] ss:$4 sm:$0xff] %v1291
      %1583 = vst [vmem:[%s1436] ss:$4 sm:$0xff] %v1292
      %1584 = vst [vmem:[%s1438] ss:$4 sm:$0xff] %v1293
      %1585 = vst [vmem:[%s1440] ss:$4 sm:$0xff] %v1294
      %1586 = vst [vmem:[%s1442] ss:$4 sm:$0xff] %v1295
      %1587 = vst [vmem:[%s1444] ss:$4 sm:$0xff] %v1296
      %1588 = vst [vmem:[%s1446] ss:$4 sm:$0xff] %v1297
      %1589 = vst [vmem:[%s1448] ss:$4 sm:$0xff] %v1298
      %v1590 = vld.sshfl [vmem:[#allocation1] sm:$0xff pattern:$0x73625140]
      %v1591 = vld.sshfl [vmem:[#allocation1 + $0x20] sm:$0xff pattern:$0x73625140]
      %1592 = vst [vmem:[#allocation1] ss:$4 sm:$0xff] %v1299
      %1593 = vst [vmem:[%s1436] ss:$4 sm:$0xff] %v1300
      %1594 = vst [vmem:[%s1438] ss:$4 sm:$0xff] %v1301
      %1595 = vst [vmem:[%s1440] ss:$4 sm:$0xff] %v1302
      %1596 = vst [vmem:[%s1442] ss:$4 sm:$0xff] %v1303
      %1597 = vst [vmem:[%s1444] ss:$4 sm:$0xff] %v1304
      %1598 = vst [vmem:[%s1446] ss:$4 sm:$0xff] %v1305
      %1599 = vst [vmem:[%s1448] ss:$4 sm:$0xff] %v1306
      %v1600 = vld.sshfl [vmem:[#allocation1] sm:$0xff pattern:$0x73625140]
      %v1601 = vld.sshfl [vmem:[#allocation1 + $0x20] sm:$0xff pattern:$0x73625140]
      %1602 = vrot.lane.b32.xlu0 %v1450, 4
      %v1603 = vpop.permute.xlu0 %1602
      %1604 = vrot.lane.b32.xlu0 %v1451, 4
      %v1605 = vpop.permute.xlu0 %1604
      %1606 = vrot.lane.b32.xlu0 %v1460, 4
      %v1607 = vpop.permute.xlu0 %1606
      %1608 = vrot.lane.b32.xlu0 %v1461, 4
      %v1609 = vpop.permute.xlu0 %1608
      %1610 = vrot.lane.b32.xlu0 %v1470, 4
      %v1611 = vpop.permute.xlu0 %1610
      %1612 = vrot.lane.b32.xlu0 %v1471, 4
      %v1613 = vpop.permute.xlu0 %1612
      %1614 = vrot.lane.b32.xlu0 %v1480, 4
      %v1615 = vpop.permute.xlu0 %1614
      %1616 = vrot.lane.b32.xlu0 %v1481, 4
      %v1617 = vpop.permute.xlu0 %1616
      %1618 = vrot.lane.b32.xlu0 %v1490, 4
      %v1619 = vpop.permute.xlu0 %1618
      %1620 = vrot.lane.b32.xlu0 %v1491, 4
      %v1621 = vpop.permute.xlu0 %1620
      %1622 = vrot.lane.b32.xlu0 %v1500, 4
      %v1623 = vpop.permute.xlu0 %1622
      %1624 = vrot.lane.b32.xlu0 %v1501, 4
      %v1625 = vpop.permute.xlu0 %1624
      %1626 = vrot.lane.b32.xlu0 %v1510, 4
      %v1627 = vpop.permute.xlu0 %1626
      %1628 = vrot.lane.b32.xlu0 %v1511, 4
      %v1629 = vpop.permute.xlu0 %1628
      %1630 = vrot.lane.b32.xlu0 %v1520, 4
      %v1631 = vpop.permute.xlu0 %1630
      %1632 = vrot.lane.b32.xlu0 %v1521, 4
      %v1633 = vpop.permute.xlu0 %1632
      %1634 = vrot.lane.b32.xlu0 %v1530, 4
      %v1635 = vpop.permute.xlu0 %1634
      %1636 = vrot.lane.b32.xlu0 %v1531, 4
      %v1637 = vpop.permute.xlu0 %1636
      %1638 = vrot.lane.b32.xlu0 %v1540, 4
      %v1639 = vpop.permute.xlu0 %1638
      %1640 = vrot.lane.b32.xlu0 %v1541, 4
      %v1641 = vpop.permute.xlu0 %1640
      %1642 = vrot.lane.b32.xlu0 %v1550, 4
      %v1643 = vpop.permute.xlu0 %1642
      %1644 = vrot.lane.b32.xlu0 %v1551, 4
      %v1645 = vpop.permute.xlu0 %1644
      %1646 = vrot.lane.b32.xlu0 %v1560, 4
      %v1647 = vpop.permute.xlu0 %1646
      %1648 = vrot.lane.b32.xlu0 %v1561, 4
      %v1649 = vpop.permute.xlu0 %1648
      %1650 = vrot.lane.b32.xlu0 %v1570, 4
      %v1651 = vpop.permute.xlu0 %1650
      %1652 = vrot.lane.b32.xlu0 %v1571, 4
      %v1653 = vpop.permute.xlu0 %1652
      %1654 = vrot.lane.b32.xlu0 %v1580, 4
      %v1655 = vpop.permute.xlu0 %1654
      %1656 = vrot.lane.b32.xlu0 %v1581, 4
      %v1657 = vpop.permute.xlu0 %1656
      %1658 = vrot.lane.b32.xlu0 %v1590, 4
      %v1659 = vpop.permute.xlu0 %1658
      %1660 = vrot.lane.b32.xlu0 %v1591, 4
      %v1661 = vpop.permute.xlu0 %1660
      %1662 = vrot.lane.b32.xlu0 %v1600, 4
      %v1663 = vpop.permute.xlu0 %1662
      %1664 = vrot.lane.b32.xlu0 %v1601, 4
      %v1665 = vpop.permute.xlu0 %1664
      %v1698 = vsel %vm426, %v389, %v1603
      %v1699 = vsel %vm426, %v390, %v1605
      %v1700 = vsel %vm426, %v391, %v1607
      %v1701 = vsel %vm426, %v392, %v1609
      %v1702 = vsel %vm426, %v393, %v1611
      %v1703 = vsel %vm426, %v394, %v1613
      %v1704 = vsel %vm426, %v395, %v1615
      %v1705 = vsel %vm426, %v396, %v1617
      %v1706 = vsel %vm426, %v397, %v1619
      %v1707 = vsel %vm426, %v398, %v1621
      %v1708 = vsel %vm426, %v399, %v1623
      %v1709 = vsel %vm426, %v400, %v1625
      %v1710 = vsel %vm426, %v401, %v1627
      %v1711 = vsel %vm426, %v402, %v1629
      %v1712 = vsel %vm426, %v403, %v1631
      %v1713 = vsel %vm426, %v404, %v1633
      %v1714 = vsel %vm426, %v405, %v1635
      %v1715 = vsel %vm426, %v406, %v1637
      %v1716 = vsel %vm426, %v407, %v1639
      %v1717 = vsel %vm426, %v408, %v1641
      %v1718 = vsel %vm426, %v409, %v1643
      %v1719 = vsel %vm426, %v410, %v1645
      %v1720 = vsel %vm426, %v411, %v1647
      %v1721 = vsel %vm426, %v412, %v1649
      %v1722 = vsel %vm426, %v413, %v1651
      %v1723 = vsel %vm426, %v414, %v1653
      %v1724 = vsel %vm426, %v415, %v1655
      %v1725 = vsel %vm426, %v416, %v1657
      %v1726 = vsel %vm426, %v417, %v1659
      %v1727 = vsel %vm426, %v418, %v1661
      %v1728 = vsel %vm426, %v419, %v1663
      %v1729 = vsel %vm426, %v420, %v1665
      %v1730 = vpack.c.bf16 %v1698, %v1698
      %v1731 = vpack.c.bf16 %v1699, %v1699
      %v1732 = vpack.c.bf16 %v1700, %v1700
      %v1733 = vpack.c.bf16 %v1701, %v1701
      %v1734 = vpack.c.bf16 %v1702, %v1702
      %v1735 = vpack.c.bf16 %v1703, %v1703
      %v1736 = vpack.c.bf16 %v1704, %v1704
      %v1737 = vpack.c.bf16 %v1705, %v1705
      %v1738 = vpack.c.bf16 %v1706, %v1706
      %v1739 = vpack.c.bf16 %v1707, %v1707
      %v1740 = vpack.c.bf16 %v1708, %v1708
      %v1741 = vpack.c.bf16 %v1709, %v1709
      %v1742 = vpack.c.bf16 %v1710, %v1710
      %v1743 = vpack.c.bf16 %v1711, %v1711
      %v1744 = vpack.c.bf16 %v1712, %v1712
      %v1745 = vpack.c.bf16 %v1713, %v1713
      %v1746 = vpack.c.bf16 %v1714, %v1714
      %v1747 = vpack.c.bf16 %v1715, %v1715
      %v1748 = vpack.c.bf16 %v1716, %v1716
      %v1749 = vpack.c.bf16 %v1717, %v1717
      %v1750 = vpack.c.bf16 %v1718, %v1718
      %v1751 = vpack.c.bf16 %v1719, %v1719
      %v1752 = vpack.c.bf16 %v1720, %v1720
      %v1753 = vpack.c.bf16 %v1721, %v1721
      %v1754 = vpack.c.bf16 %v1722, %v1722
      %v1755 = vpack.c.bf16 %v1723, %v1723
      %v1756 = vpack.c.bf16 %v1724, %v1724
      %v1757 = vpack.c.bf16 %v1725, %v1725
      %v1758 = vpack.c.bf16 %v1726, %v1726
      %v1759 = vpack.c.bf16 %v1727, %v1727
      %v1760 = vpack.c.bf16 %v1728, %v1728
      %v1761 = vpack.c.bf16 %v1729, %v1729
      %v1794 = vunpack.c.l.b16 %v1730
      %v1795 = vunpack.c.l.b16 %v1731
      %v1796 = vunpack.c.l.b16 %v1732
      %v1797 = vunpack.c.l.b16 %v1733
      %v1798 = vunpack.c.l.b16 %v1734
      %v1799 = vunpack.c.l.b16 %v1735
      %v1800 = vunpack.c.l.b16 %v1736
      %v1801 = vunpack.c.l.b16 %v1737
      %v1802 = vunpack.c.l.b16 %v1738
      %v1803 = vunpack.c.l.b16 %v1739
      %v1804 = vunpack.c.l.b16 %v1740
      %v1805 = vunpack.c.l.b16 %v1741
      %v1806 = vunpack.c.l.b16 %v1742
      %v1807 = vunpack.c.l.b16 %v1743
      %v1808 = vunpack.c.l.b16 %v1744
      %v1809 = vunpack.c.l.b16 %v1745
      %v1810 = vunpack.c.l.b16 %v1746
      %v1811 = vunpack.c.l.b16 %v1747
      %v1812 = vunpack.c.l.b16 %v1748
      %v1813 = vunpack.c.l.b16 %v1749
      %v1814 = vunpack.c.l.b16 %v1750
      %v1815 = vunpack.c.l.b16 %v1751
      %v1816 = vunpack.c.l.b16 %v1752
      %v1817 = vunpack.c.l.b16 %v1753
      %v1818 = vunpack.c.l.b16 %v1754
      %v1819 = vunpack.c.l.b16 %v1755
      %v1820 = vunpack.c.l.b16 %v1756
      %v1821 = vunpack.c.l.b16 %v1757
      %v1822 = vunpack.c.l.b16 %v1758
      %v1823 = vunpack.c.l.b16 %v1759
      %v1824 = vunpack.c.l.b16 %v1760
      %v1825 = vunpack.c.l.b16 %v1761
      %v1826 = vpack.c.b16 %v1795, %v1794
      %v1827 = vpack.c.b16 %v1797, %v1796
      %v1828 = vpack.c.b16 %v1799, %v1798
      %v1829 = vpack.c.b16 %v1801, %v1800
      %v1830 = vpack.c.b16 %v1803, %v1802
      %v1831 = vpack.c.b16 %v1805, %v1804
      %v1832 = vpack.c.b16 %v1807, %v1806
      %v1833 = vpack.c.b16 %v1809, %v1808
      %v1834 = vpack.c.b16 %v1811, %v1810
      %v1835 = vpack.c.b16 %v1813, %v1812
      %v1836 = vpack.c.b16 %v1815, %v1814
      %v1837 = vpack.c.b16 %v1817, %v1816
      %v1838 = vpack.c.b16 %v1819, %v1818
      %v1839 = vpack.c.b16 %v1821, %v1820
      %v1840 = vpack.c.b16 %v1823, %v1822
      %v1841 = vpack.c.b16 %v1825, %v1824
      %v1843 = vshrl.u32 0, 16
      %v1845 = vrot.slane %v1843, 7
      %v1846 = vshll.u32 0, 16
      %v1848 = vor.u32 %v1845, %v1846
      %v1850 = vshrl.u32 %v1826, 16
      %v1852 = vrot.slane %v1850, 7
      %v1853 = vshll.u32 %v1826, 16
      %v1855 = vor.u32 %v1852, %v1853
      %v1857 = vshrl.u32 %v1827, 16
      %v1859 = vrot.slane %v1857, 7
      %v1860 = vshll.u32 %v1827, 16
      %v1862 = vor.u32 %v1859, %v1860
      %v1864 = vshrl.u32 %v1828, 16
      %v1866 = vrot.slane %v1864, 7
      %v1867 = vshll.u32 %v1828, 16
      %v1869 = vor.u32 %v1866, %v1867
      %v1871 = vshrl.u32 %v1829, 16
      %v1873 = vrot.slane %v1871, 7
      %v1874 = vshll.u32 %v1829, 16
      %v1876 = vor.u32 %v1873, %v1874
      %v1878 = vshrl.u32 %v1830, 16
      %v1880 = vrot.slane %v1878, 7
      %v1881 = vshll.u32 %v1830, 16
      %v1883 = vor.u32 %v1880, %v1881
      %v1885 = vshrl.u32 %v1831, 16
      %v1887 = vrot.slane %v1885, 7
      %v1888 = vshll.u32 %v1831, 16
      %v1890 = vor.u32 %v1887, %v1888
      %v1892 = vshrl.u32 %v1832, 16
      %v1894 = vrot.slane %v1892, 7
      %v1895 = vshll.u32 %v1832, 16
      %v1897 = vor.u32 %v1894, %v1895
      %v1899 = vshrl.u32 %v1833, 16
      %v1901 = vrot.slane %v1899, 7
      %v1902 = vshll.u32 %v1833, 16
      %v1904 = vor.u32 %v1901, %v1902
      %v1906 = vshrl.u32 %v1834, 16
      %v1908 = vrot.slane %v1906, 7
      %v1909 = vshll.u32 %v1834, 16
      %v1911 = vor.u32 %v1908, %v1909
      %v1913 = vshrl.u32 %v1835, 16
      %v1915 = vrot.slane %v1913, 7
      %v1916 = vshll.u32 %v1835, 16
      %v1918 = vor.u32 %v1915, %v1916
      %v1920 = vshrl.u32 %v1836, 16
      %v1922 = vrot.slane %v1920, 7
      %v1923 = vshll.u32 %v1836, 16
      %v1925 = vor.u32 %v1922, %v1923
      %v1927 = vshrl.u32 %v1837, 16
      %v1929 = vrot.slane %v1927, 7
      %v1930 = vshll.u32 %v1837, 16
      %v1932 = vor.u32 %v1929, %v1930
      %v1934 = vshrl.u32 %v1838, 16
      %v1936 = vrot.slane %v1934, 7
      %v1937 = vshll.u32 %v1838, 16
      %v1939 = vor.u32 %v1936, %v1937
      %v1941 = vshrl.u32 %v1839, 16
      %v1943 = vrot.slane %v1941, 7
      %v1944 = vshll.u32 %v1839, 16
      %v1946 = vor.u32 %v1943, %v1944
      %v1948 = vshrl.u32 %v1840, 16
      %v1950 = vrot.slane %v1948, 7
      %v1951 = vshll.u32 %v1840, 16
      %v1953 = vor.u32 %v1950, %v1951
      %v1955 = vshrl.u32 %v1841, 16
      %v1957 = vrot.slane %v1955, 7
      %v1958 = vshll.u32 %v1841, 16
      %v1960 = vor.u32 %v1957, %v1958
      %vm1995 = vcmask 1040384
      %vm1996 = vsmask.f32 256
      %vm1997 = vmand %vm1995, %vm1996
      %v1998 = vsel %vm1997, 0, %v1848
      %v1999 = vsel %vm1997, 0, %v1855
      %v2000 = vsel %vm1997, 0, %v1862
      %v2001 = vsel %vm1997, 0, %v1869
      %v2002 = vsel %vm1997, 0, %v1876
      %v2003 = vsel %vm1997, 0, %v1883
      %v2004 = vsel %vm1997, 0, %v1890
      %v2005 = vsel %vm1997, 0, %v1897
      %v2006 = vsel %vm1997, 0, %v1904
      %v2007 = vsel %vm1997, 0, %v1911
      %v2008 = vsel %vm1997, 0, %v1918
      %v2009 = vsel %vm1997, 0, %v1925
      %v2010 = vsel %vm1997, 0, %v1932
      %v2011 = vsel %vm1997, 0, %v1939
      %v2012 = vsel %vm1997, 0, %v1946
      %v2013 = vsel %vm1997, 0, %v1953
      %v2014 = vsel %vm1997, 0, %v1960
      %v2015 = vsel %vm1997, %v1845, 0
      %v2016 = vsel %vm1997, %v1852, 0
      %v2017 = vsel %vm1997, %v1859, 0
      %v2018 = vsel %vm1997, %v1866, 0
      %v2019 = vsel %vm1997, %v1873, 0
      %v2020 = vsel %vm1997, %v1880, 0
      %v2021 = vsel %vm1997, %v1887, 0
      %v2022 = vsel %vm1997, %v1894, 0
      %v2023 = vsel %vm1997, %v1901, 0
      %v2024 = vsel %vm1997, %v1908, 0
      %v2025 = vsel %vm1997, %v1915, 0
      %v2026 = vsel %vm1997, %v1922, 0
      %v2027 = vsel %vm1997, %v1929, 0
      %v2028 = vsel %vm1997, %v1936, 0
      %v2029 = vsel %vm1997, %v1943, 0
      %v2030 = vsel %vm1997, %v1950, 0
      %v2031 = vsel %vm1997, %v1957, 0
      %vm2032 = vsmask.f32 7424
      %v2034 = vshrl.u32 %v1998, 16
      %v2036 = vshll.u32 %v1998, 16
      %v2038 = vrot.slane %v2036, 1
      %v2039 = vor.u32 %v2034, %v2038
      %v2041 = vshll.u32 %v2015, 16
      %v2043 = vrot.slane %v2041, 1
      %v2044 = vsel %vm2032, %v2039, %v2043
      %v2046 = vshrl.u32 %v1999, 16
      %v2048 = vshll.u32 %v1999, 16
      %v2050 = vrot.slane %v2048, 1
      %v2051 = vor.u32 %v2046, %v2050
      %v2053 = vshll.u32 %v2016, 16
      %v2055 = vrot.slane %v2053, 1
      %v2056 = vsel %vm2032, %v2051, %v2055
      %v2058 = vshrl.u32 %v2000, 16
      %v2060 = vshll.u32 %v2000, 16
      %v2062 = vrot.slane %v2060, 1
      %v2063 = vor.u32 %v2058, %v2062
      %v2065 = vshll.u32 %v2017, 16
      %v2067 = vrot.slane %v2065, 1
      %v2068 = vsel %vm2032, %v2063, %v2067
      %v2070 = vshrl.u32 %v2001, 16
      %v2072 = vshll.u32 %v2001, 16
      %v2074 = vrot.slane %v2072, 1
      %v2075 = vor.u32 %v2070, %v2074
      %v2077 = vshll.u32 %v2018, 16
      %v2079 = vrot.slane %v2077, 1
      %v2080 = vsel %vm2032, %v2075, %v2079
      %v2082 = vshrl.u32 %v2002, 16
      %v2084 = vshll.u32 %v2002, 16
      %v2086 = vrot.slane %v2084, 1
      %v2087 = vor.u32 %v2082, %v2086
      %v2089 = vshll.u32 %v2019, 16
      %v2091 = vrot.slane %v2089, 1
      %v2092 = vsel %vm2032, %v2087, %v2091
      %v2094 = vshrl.u32 %v2003, 16
      %v2096 = vshll.u32 %v2003, 16
      %v2098 = vrot.slane %v2096, 1
      %v2099 = vor.u32 %v2094, %v2098
      %v2101 = vshll.u32 %v2020, 16
      %v2103 = vrot.slane %v2101, 1
      %v2104 = vsel %vm2032, %v2099, %v2103
      %v2106 = vshrl.u32 %v2004, 16
      %v2108 = vshll.u32 %v2004, 16
      %v2110 = vrot.slane %v2108, 1
      %v2111 = vor.u32 %v2106, %v2110
      %v2113 = vshll.u32 %v2021, 16
      %v2115 = vrot.slane %v2113, 1
      %v2116 = vsel %vm2032, %v2111, %v2115
      %v2118 = vshrl.u32 %v2005, 16
      %v2120 = vshll.u32 %v2005, 16
      %v2122 = vrot.slane %v2120, 1
      %v2123 = vor.u32 %v2118, %v2122
      %v2125 = vshll.u32 %v2022, 16
      %v2127 = vrot.slane %v2125, 1
      %v2128 = vsel %vm2032, %v2123, %v2127
      %v2130 = vshrl.u32 %v2006, 16
      %v2132 = vshll.u32 %v2006, 16
      %v2134 = vrot.slane %v2132, 1
      %v2135 = vor.u32 %v2130, %v2134
      %v2137 = vshll.u32 %v2023, 16
      %v2139 = vrot.slane %v2137, 1
      %v2140 = vsel %vm2032, %v2135, %v2139
      %v2142 = vshrl.u32 %v2007, 16
      %v2144 = vshll.u32 %v2007, 16
      %v2146 = vrot.slane %v2144, 1
      %v2147 = vor.u32 %v2142, %v2146
      %v2149 = vshll.u32 %v2024, 16
      %v2151 = vrot.slane %v2149, 1
      %v2152 = vsel %vm2032, %v2147, %v2151
      %v2154 = vshrl.u32 %v2008, 16
      %v2156 = vshll.u32 %v2008, 16
      %v2158 = vrot.slane %v2156, 1
      %v2159 = vor.u32 %v2154, %v2158
      %v2161 = vshll.u32 %v2025, 16
      %v2163 = vrot.slane %v2161, 1
      %v2164 = vsel %vm2032, %v2159, %v2163
      %v2166 = vshrl.u32 %v2009, 16
      %v2168 = vshll.u32 %v2009, 16
      %v2170 = vrot.slane %v2168, 1
      %v2171 = vor.u32 %v2166, %v2170
      %v2173 = vshll.u32 %v2026, 16
      %v2175 = vrot.slane %v2173, 1
      %v2176 = vsel %vm2032, %v2171, %v2175
      %v2178 = vshrl.u32 %v2010, 16
      %v2180 = vshll.u32 %v2010, 16
      %v2182 = vrot.slane %v2180, 1
      %v2183 = vor.u32 %v2178, %v2182
      %v2185 = vshll.u32 %v2027, 16
      %v2187 = vrot.slane %v2185, 1
      %v2188 = vsel %vm2032, %v2183, %v2187
      %v2190 = vshrl.u32 %v2011, 16
      %v2192 = vshll.u32 %v2011, 16
      %v2194 = vrot.slane %v2192, 1
      %v2195 = vor.u32 %v2190, %v2194
      %v2197 = vshll.u32 %v2028, 16
      %v2199 = vrot.slane %v2197, 1
      %v2200 = vsel %vm2032, %v2195, %v2199
      %v2202 = vshrl.u32 %v2012, 16
      %v2204 = vshll.u32 %v2012, 16
      %v2206 = vrot.slane %v2204, 1
      %v2207 = vor.u32 %v2202, %v2206
      %v2209 = vshll.u32 %v2029, 16
      %v2211 = vrot.slane %v2209, 1
      %v2212 = vsel %vm2032, %v2207, %v2211
      %v2214 = vshrl.u32 %v2013, 16
      %v2216 = vshll.u32 %v2013, 16
      %v2218 = vrot.slane %v2216, 1
      %v2219 = vor.u32 %v2214, %v2218
      %v2221 = vshll.u32 %v2030, 16
      %v2223 = vrot.slane %v2221, 1
      %v2224 = vsel %vm2032, %v2219, %v2223
      %2225 = vrot.lane.b32.xlu0 %v2044, 8
      %v2226 = vpop.permute.xlu0 %2225
      %2227 = vrot.lane.b32.xlu0 %v2056, 8
      %v2228 = vpop.permute.xlu0 %2227
      %2229 = vrot.lane.b32.xlu0 %v2068, 8
      %v2230 = vpop.permute.xlu0 %2229
      %2231 = vrot.lane.b32.xlu0 %v2080, 8
      %v2232 = vpop.permute.xlu0 %2231
      %2233 = vrot.lane.b32.xlu0 %v2092, 8
      %v2234 = vpop.permute.xlu0 %2233
      %2235 = vrot.lane.b32.xlu0 %v2104, 8
      %v2236 = vpop.permute.xlu0 %2235
      %2237 = vrot.lane.b32.xlu0 %v2116, 8
      %v2238 = vpop.permute.xlu0 %2237
      %2239 = vrot.lane.b32.xlu0 %v2128, 8
      %v2240 = vpop.permute.xlu0 %2239
      %2241 = vrot.lane.b32.xlu0 %v2140, 8
      %v2242 = vpop.permute.xlu0 %2241
      %2243 = vrot.lane.b32.xlu0 %v2152, 8
      %v2244 = vpop.permute.xlu0 %2243
      %2245 = vrot.lane.b32.xlu0 %v2164, 8
      %v2246 = vpop.permute.xlu0 %2245
      %2247 = vrot.lane.b32.xlu0 %v2176, 8
      %v2248 = vpop.permute.xlu0 %2247
      %2249 = vrot.lane.b32.xlu0 %v2188, 8
      %v2250 = vpop.permute.xlu0 %2249
      %2251 = vrot.lane.b32.xlu0 %v2200, 8
      %v2252 = vpop.permute.xlu0 %2251
      %2253 = vrot.lane.b32.xlu0 %v2212, 8
      %v2254 = vpop.permute.xlu0 %2253
      %2255 = vrot.lane.b32.xlu0 %v2224, 8
      %v2256 = vpop.permute.xlu0 %2255
      %vm2289 = vcmask 1046528
      %v2290 = vrot.slane %v1998, 1
      %v2291 = vrot.slane %v2015, 1
      %v2292 = vsel %vm2289, %v2290, %v2291
      %v2293 = vrot.slane %v1999, 1
      %v2294 = vrot.slane %v2016, 1
      %v2295 = vsel %vm2289, %v2293, %v2294
      %v2296 = vrot.slane %v2000, 1
      %v2297 = vrot.slane %v2017, 1
      %v2298 = vsel %vm2289, %v2296, %v2297
      %v2299 = vrot.slane %v2001, 1
      %v2300 = vrot.slane %v2018, 1
      %v2301 = vsel %vm2289, %v2299, %v2300
      %v2302 = vrot.slane %v2002, 1
      %v2303 = vrot.slane %v2019, 1
      %v2304 = vsel %vm2289, %v2302, %v2303
      %v2305 = vrot.slane %v2003, 1
      %v2306 = vrot.slane %v2020, 1
      %v2307 = vsel %vm2289, %v2305, %v2306
      %v2308 = vrot.slane %v2004, 1
      %v2309 = vrot.slane %v2021, 1
      %v2310 = vsel %vm2289, %v2308, %v2309
      %v2311 = vrot.slane %v2005, 1
      %v2312 = vrot.slane %v2022, 1
      %v2313 = vsel %vm2289, %v2311, %v2312
      %v2314 = vrot.slane %v2006, 1
      %v2315 = vrot.slane %v2023, 1
      %v2316 = vsel %vm2289, %v2314, %v2315
      %v2317 = vrot.slane %v2007, 1
      %v2318 = vrot.slane %v2024, 1
      %v2319 = vsel %vm2289, %v2317, %v2318
      %v2320 = vrot.slane %v2008, 1
      %v2321 = vrot.slane %v2025, 1
      %v2322 = vsel %vm2289, %v2320, %v2321
      %v2323 = vrot.slane %v2009, 1
      %v2324 = vrot.slane %v2026, 1
      %v2325 = vsel %vm2289, %v2323, %v2324
      %v2326 = vrot.slane %v2010, 1
      %v2327 = vrot.slane %v2027, 1
      %v2328 = vsel %vm2289, %v2326, %v2327
      %v2329 = vrot.slane %v2011, 1
      %v2330 = vrot.slane %v2028, 1
      %v2331 = vsel %vm2289, %v2329, %v2330
      %v2332 = vrot.slane %v2012, 1
      %v2333 = vrot.slane %v2029, 1
      %v2334 = vsel %vm2289, %v2332, %v2333
      %v2335 = vrot.slane %v2013, 1
      %v2336 = vrot.slane %v2030, 1
      %v2337 = vsel %vm2289, %v2335, %v2336
      %2338 = vrot.lane.b32.xlu0 %v2292, 16
      %v2339 = vpop.permute.xlu0 %2338
      %2340 = vrot.lane.b32.xlu0 %v2295, 16
      %v2341 = vpop.permute.xlu0 %2340
      %2342 = vrot.lane.b32.xlu0 %v2298, 16
      %v2343 = vpop.permute.xlu0 %2342
      %2344 = vrot.lane.b32.xlu0 %v2301, 16
      %v2345 = vpop.permute.xlu0 %2344
      %2346 = vrot.lane.b32.xlu0 %v2304, 16
      %v2347 = vpop.permute.xlu0 %2346
      %2348 = vrot.lane.b32.xlu0 %v2307, 16
      %v2349 = vpop.permute.xlu0 %2348
      %2350 = vrot.lane.b32.xlu0 %v2310, 16
      %v2351 = vpop.permute.xlu0 %2350
      %2352 = vrot.lane.b32.xlu0 %v2313, 16
      %v2353 = vpop.permute.xlu0 %2352
      %2354 = vrot.lane.b32.xlu0 %v2316, 16
      %v2355 = vpop.permute.xlu0 %2354
      %2356 = vrot.lane.b32.xlu0 %v2319, 16
      %v2357 = vpop.permute.xlu0 %2356
      %2358 = vrot.lane.b32.xlu0 %v2322, 16
      %v2359 = vpop.permute.xlu0 %2358
      %2360 = vrot.lane.b32.xlu0 %v2325, 16
      %v2361 = vpop.permute.xlu0 %2360
      %2362 = vrot.lane.b32.xlu0 %v2328, 16
      %v2363 = vpop.permute.xlu0 %2362
      %2364 = vrot.lane.b32.xlu0 %v2331, 16
      %v2365 = vpop.permute.xlu0 %2364
      %2366 = vrot.lane.b32.xlu0 %v2334, 16
      %v2367 = vpop.permute.xlu0 %2366
      %2368 = vrot.lane.b32.xlu0 %v2337, 16
      %v2369 = vpop.permute.xlu0 %2368
      %2371 = vrot.lane.b32.xlu0 %v1999, 24
      %v2372 = vpop.permute.xlu0 %2371
      %2373 = vrot.lane.b32.xlu0 %v2000, 24
      %v2374 = vpop.permute.xlu0 %2373
      %2375 = vrot.lane.b32.xlu0 %v2001, 24
      %v2376 = vpop.permute.xlu0 %2375
      %2377 = vrot.lane.b32.xlu0 %v2002, 24
      %v2378 = vpop.permute.xlu0 %2377
      %2379 = vrot.lane.b32.xlu0 %v2003, 24
      %v2380 = vpop.permute.xlu0 %2379
      %2381 = vrot.lane.b32.xlu0 %v2004, 24
      %v2382 = vpop.permute.xlu0 %2381
      %2383 = vrot.lane.b32.xlu0 %v2005, 24
      %v2384 = vpop.permute.xlu0 %2383
      %2385 = vrot.lane.b32.xlu0 %v2006, 24
      %v2386 = vpop.permute.xlu0 %2385
      %2387 = vrot.lane.b32.xlu0 %v2007, 24
      %v2388 = vpop.permute.xlu0 %2387
      %2389 = vrot.lane.b32.xlu0 %v2008, 24
      %v2390 = vpop.permute.xlu0 %2389
      %2391 = vrot.lane.b32.xlu0 %v2009, 24
      %v2392 = vpop.permute.xlu0 %2391
      %2393 = vrot.lane.b32.xlu0 %v2010, 24
      %v2394 = vpop.permute.xlu0 %2393
      %2395 = vrot.lane.b32.xlu0 %v2011, 24
      %v2396 = vpop.permute.xlu0 %2395
      %2397 = vrot.lane.b32.xlu0 %v2012, 24
      %v2398 = vpop.permute.xlu0 %2397
      %2399 = vrot.lane.b32.xlu0 %v2013, 24
      %v2400 = vpop.permute.xlu0 %2399
      %2401 = vrot.lane.b32.xlu0 %v2014, 24
      %v2402 = vpop.permute.xlu0 %2401
      %v2404 = vshrl.u32 %v2014, 16
      %v2406 = vshll.u32 %v2014, 16
      %v2408 = vrot.slane %v2406, 1
      %v2409 = vor.u32 %v2404, %v2408
      %v2411 = vshll.u32 %v2031, 16
      %v2413 = vrot.slane %v2411, 1
      %v2414 = vsel %vm2032, %v2409, %v2413
      %2415 = vrot.lane.b32.xlu0 %v2056, 32
      %v2416 = vpop.permute.xlu0 %2415
      %2417 = vrot.lane.b32.xlu0 %v2068, 32
      %v2418 = vpop.permute.xlu0 %2417
      %2419 = vrot.lane.b32.xlu0 %v2080, 32
      %v2420 = vpop.permute.xlu0 %2419
      %2421 = vrot.lane.b32.xlu0 %v2092, 32
      %v2422 = vpop.permute.xlu0 %2421
      %2423 = vrot.lane.b32.xlu0 %v2104, 32
      %v2424 = vpop.permute.xlu0 %2423
      %2425 = vrot.lane.b32.xlu0 %v2116, 32
      %v2426 = vpop.permute.xlu0 %2425
      %2427 = vrot.lane.b32.xlu0 %v2128, 32
      %v2428 = vpop.permute.xlu0 %2427
      %2429 = vrot.lane.b32.xlu0 %v2140, 32
      %v2430 = vpop.permute.xlu0 %2429
      %2431 = vrot.lane.b32.xlu0 %v2152, 32
      %v2432 = vpop.permute.xlu0 %2431
      %2433 = vrot.lane.b32.xlu0 %v2164, 32
      %v2434 = vpop.permute.xlu0 %2433
      %2435 = vrot.lane.b32.xlu0 %v2176, 32
      %v2436 = vpop.permute.xlu0 %2435
      %2437 = vrot.lane.b32.xlu0 %v2188, 32
      %v2438 = vpop.permute.xlu0 %2437
      %2439 = vrot.lane.b32.xlu0 %v2200, 32
      %v2440 = vpop.permute.xlu0 %2439
      %2441 = vrot.lane.b32.xlu0 %v2212, 32
      %v2442 = vpop.permute.xlu0 %2441
      %2443 = vrot.lane.b32.xlu0 %v2224, 32
      %v2444 = vpop.permute.xlu0 %2443
      %2445 = vrot.lane.b32.xlu0 %v2414, 32
      %v2446 = vpop.permute.xlu0 %2445
      %v2448 = vrot.slane %v2014, 1
      %v2449 = vrot.slane %v2031, 1
      %v2450 = vsel %vm2289, %v2448, %v2449
      %2451 = vrot.lane.b32.xlu0 %v2295, 40
      %v2452 = vpop.permute.xlu0 %2451
      %2453 = vrot.lane.b32.xlu0 %v2298, 40
      %v2454 = vpop.permute.xlu0 %2453
      %2455 = vrot.lane.b32.xlu0 %v2301, 40
      %v2456 = vpop.permute.xlu0 %2455
      %2457 = vrot.lane.b32.xlu0 %v2304, 40
      %v2458 = vpop.permute.xlu0 %2457
      %2459 = vrot.lane.b32.xlu0 %v2307, 40
      %v2460 = vpop.permute.xlu0 %2459
      %2461 = vrot.lane.b32.xlu0 %v2310, 40
      %v2462 = vpop.permute.xlu0 %2461
      %2463 = vrot.lane.b32.xlu0 %v2313, 40
      %v2464 = vpop.permute.xlu0 %2463
      %2465 = vrot.lane.b32.xlu0 %v2316, 40
      %v2466 = vpop.permute.xlu0 %2465
      %2467 = vrot.lane.b32.xlu0 %v2319, 40
      %v2468 = vpop.permute.xlu0 %2467
      %2469 = vrot.lane.b32.xlu0 %v2322, 40
      %v2470 = vpop.permute.xlu0 %2469
      %2471 = vrot.lane.b32.xlu0 %v2325, 40
      %v2472 = vpop.permute.xlu0 %2471
      %2473 = vrot.lane.b32.xlu0 %v2328, 40
      %v2474 = vpop.permute.xlu0 %2473
      %2475 = vrot.lane.b32.xlu0 %v2331, 40
      %v2476 = vpop.permute.xlu0 %2475
      %2477 = vrot.lane.b32.xlu0 %v2334, 40
      %v2478 = vpop.permute.xlu0 %2477
      %2479 = vrot.lane.b32.xlu0 %v2337, 40
      %v2480 = vpop.permute.xlu0 %2479
      %2481 = vrot.lane.b32.xlu0 %v2450, 40
      %v2482 = vpop.permute.xlu0 %2481
      %2483 = vrot.lane.b32.xlu0 %v2000, 48
      %v2484 = vpop.permute.xlu0 %2483
      %2485 = vrot.lane.b32.xlu0 %v2001, 48
      %v2486 = vpop.permute.xlu0 %2485
      %2487 = vrot.lane.b32.xlu0 %v2002, 48
      %v2488 = vpop.permute.xlu0 %2487
      %2489 = vrot.lane.b32.xlu0 %v2003, 48
      %v2490 = vpop.permute.xlu0 %2489
      %2491 = vrot.lane.b32.xlu0 %v2004, 48
      %v2492 = vpop.permute.xlu0 %2491
      %2493 = vrot.lane.b32.xlu0 %v2005, 48
      %v2494 = vpop.permute.xlu0 %2493
      %2495 = vrot.lane.b32.xlu0 %v2006, 48
      %v2496 = vpop.permute.xlu0 %2495
      %2497 = vrot.lane.b32.xlu0 %v2007, 48
      %v2498 = vpop.permute.xlu0 %2497
      %2499 = vrot.lane.b32.xlu0 %v2008, 48
      %v2500 = vpop.permute.xlu0 %2499
      %2501 = vrot.lane.b32.xlu0 %v2009, 48
      %v2502 = vpop.permute.xlu0 %2501
      %2503 = vrot.lane.b32.xlu0 %v2010, 48
      %v2504 = vpop.permute.xlu0 %2503
      %2505 = vrot.lane.b32.xlu0 %v2011, 48
      %v2506 = vpop.permute.xlu0 %2505
      %2507 = vrot.lane.b32.xlu0 %v2012, 48
      %v2508 = vpop.permute.xlu0 %2507
      %2509 = vrot.lane.b32.xlu0 %v2013, 48
      %v2510 = vpop.permute.xlu0 %2509
      %2511 = vrot.lane.b32.xlu0 %v2014, 48
      %v2512 = vpop.permute.xlu0 %2511
      %2513 = vrot.lane.b32.xlu0 %v1998, 48
      %v2514 = vpop.permute.xlu0 %2513
      %2515 = vrot.lane.b32.xlu0 %v2068, 56
      %v2516 = vpop.permute.xlu0 %2515
      %2517 = vrot.lane.b32.xlu0 %v2080, 56
      %v2518 = vpop.permute.xlu0 %2517
      %2519 = vrot.lane.b32.xlu0 %v2092, 56
      %v2520 = vpop.permute.xlu0 %2519
      %2521 = vrot.lane.b32.xlu0 %v2104, 56
      %v2522 = vpop.permute.xlu0 %2521
      %2523 = vrot.lane.b32.xlu0 %v2116, 56
      %v2524 = vpop.permute.xlu0 %2523
      %2525 = vrot.lane.b32.xlu0 %v2128, 56
      %v2526 = vpop.permute.xlu0 %2525
      %2527 = vrot.lane.b32.xlu0 %v2140, 56
      %v2528 = vpop.permute.xlu0 %2527
      %2529 = vrot.lane.b32.xlu0 %v2152, 56
      %v2530 = vpop.permute.xlu0 %2529
      %2531 = vrot.lane.b32.xlu0 %v2164, 56
      %v2532 = vpop.permute.xlu0 %2531
      %2533 = vrot.lane.b32.xlu0 %v2176, 56
      %v2534 = vpop.permute.xlu0 %2533
      %2535 = vrot.lane.b32.xlu0 %v2188, 56
      %v2536 = vpop.permute.xlu0 %2535
      %2537 = vrot.lane.b32.xlu0 %v2200, 56
      %v2538 = vpop.permute.xlu0 %2537
      %2539 = vrot.lane.b32.xlu0 %v2212, 56
      %v2540 = vpop.permute.xlu0 %2539
      %2541 = vrot.lane.b32.xlu0 %v2224, 56
      %v2542 = vpop.permute.xlu0 %2541
      %2543 = vrot.lane.b32.xlu0 %v2414, 56
      %v2544 = vpop.permute.xlu0 %2543
      %2545 = vrot.lane.b32.xlu0 %v2044, 56
      %v2546 = vpop.permute.xlu0 %2545
      %2547 = vrot.lane.b32.xlu0 %v2298, 64
      %v2548 = vpop.permute.xlu0 %2547
      %2549 = vrot.lane.b32.xlu0 %v2301, 64
      %v2550 = vpop.permute.xlu0 %2549
      %2551 = vrot.lane.b32.xlu0 %v2304, 64
      %v2552 = vpop.permute.xlu0 %2551
      %2553 = vrot.lane.b32.xlu0 %v2307, 64
      %v2554 = vpop.permute.xlu0 %2553
      %2555 = vrot.lane.b32.xlu0 %v2310, 64
      %v2556 = vpop.permute.xlu0 %2555
      %2557 = vrot.lane.b32.xlu0 %v2313, 64
      %v2558 = vpop.permute.xlu0 %2557
      %2559 = vrot.lane.b32.xlu0 %v2316, 64
      %v2560 = vpop.permute.xlu0 %2559
      %2561 = vrot.lane.b32.xlu0 %v2319, 64
      %v2562 = vpop.permute.xlu0 %2561
      %2563 = vrot.lane.b32.xlu0 %v2322, 64
      %v2564 = vpop.permute.xlu0 %2563
      %2565 = vrot.lane.b32.xlu0 %v2325, 64
      %v2566 = vpop.permute.xlu0 %2565
      %2567 = vrot.lane.b32.xlu0 %v2328, 64
      %v2568 = vpop.permute.xlu0 %2567
      %2569 = vrot.lane.b32.xlu0 %v2331, 64
      %v2570 = vpop.permute.xlu0 %2569
      %2571 = vrot.lane.b32.xlu0 %v2334, 64
      %v2572 = vpop.permute.xlu0 %2571
      %2573 = vrot.lane.b32.xlu0 %v2337, 64
      %v2574 = vpop.permute.xlu0 %2573
      %2575 = vrot.lane.b32.xlu0 %v2450, 64
      %v2576 = vpop.permute.xlu0 %2575
      %2577 = vrot.lane.b32.xlu0 %v2292, 64
      %v2578 = vpop.permute.xlu0 %2577
      %vm2579 = vcmask 64512
      %v2581 = vsel %vm2579, %v1998, %v2226
      %v2583 = vsel %vm2579, %v1999, %v2228
      %v2585 = vsel %vm2579, %v2000, %v2230
      %v2587 = vsel %vm2579, %v2001, %v2232
      %v2589 = vsel %vm2579, %v2002, %v2234
      %v2591 = vsel %vm2579, %v2003, %v2236
      %v2593 = vsel %vm2579, %v2004, %v2238
      %v2595 = vsel %vm2579, %v2005, %v2240
      %v2597 = vsel %vm2579, %v2006, %v2242
      %v2599 = vsel %vm2579, %v2007, %v2244
      %v2601 = vsel %vm2579, %v2008, %v2246
      %v2603 = vsel %vm2579, %v2009, %v2248
      %v2605 = vsel %vm2579, %v2010, %v2250
      %v2607 = vsel %vm2579, %v2011, %v2252
      %v2609 = vsel %vm2579, %v2012, %v2254
      %v2611 = vsel %vm2579, %v2013, %v2256
      %vm2612 = vcmask 130048
      %v2614 = vsel %vm2612, %v2581, %v2339
      %v2616 = vsel %vm2612, %v2583, %v2341
      %v2618 = vsel %vm2612, %v2585, %v2343
      %v2620 = vsel %vm2612, %v2587, %v2345
      %v2622 = vsel %vm2612, %v2589, %v2347
      %v2624 = vsel %vm2612, %v2591, %v2349
      %v2626 = vsel %vm2612, %v2593, %v2351
      %v2628 = vsel %vm2612, %v2595, %v2353
      %v2630 = vsel %vm2612, %v2597, %v2355
      %v2632 = vsel %vm2612, %v2599, %v2357
      %v2634 = vsel %vm2612, %v2601, %v2359
      %v2636 = vsel %vm2612, %v2603, %v2361
      %v2638 = vsel %vm2612, %v2605, %v2363
      %v2640 = vsel %vm2612, %v2607, %v2365
      %v2642 = vsel %vm2612, %v2609, %v2367
      %v2644 = vsel %vm2612, %v2611, %v2369
      %vm2645 = vcmask 195584
      %v2647 = vsel %vm2645, %v2614, %v2372
      %v2649 = vsel %vm2645, %v2616, %v2374
      %v2651 = vsel %vm2645, %v2618, %v2376
      %v2653 = vsel %vm2645, %v2620, %v2378
      %v2655 = vsel %vm2645, %v2622, %v2380
      %v2657 = vsel %vm2645, %v2624, %v2382
      %v2659 = vsel %vm2645, %v2626, %v2384
      %v2661 = vsel %vm2645, %v2628, %v2386
      %v2663 = vsel %vm2645, %v2630, %v2388
      %v2665 = vsel %vm2645, %v2632, %v2390
      %v2667 = vsel %vm2645, %v2634, %v2392
      %v2669 = vsel %vm2645, %v2636, %v2394
      %v2671 = vsel %vm2645, %v2638, %v2396
      %v2673 = vsel %vm2645, %v2640, %v2398
      %v2675 = vsel %vm2645, %v2642, %v2400
      %v2677 = vsel %vm2645, %v2644, %v2402
      %vm2678 = vcmask 261120
      %v2680 = vsel %vm2678, %v2647, %v2416
      %v2682 = vsel %vm2678, %v2649, %v2418
      %v2684 = vsel %vm2678, %v2651, %v2420
      %v2686 = vsel %vm2678, %v2653, %v2422
      %v2688 = vsel %vm2678, %v2655, %v2424
      %v2690 = vsel %vm2678, %v2657, %v2426
      %v2692 = vsel %vm2678, %v2659, %v2428
      %v2694 = vsel %vm2678, %v2661, %v2430
      %v2696 = vsel %vm2678, %v2663, %v2432
      %v2698 = vsel %vm2678, %v2665, %v2434
      %v2700 = vsel %vm2678, %v2667, %v2436
      %v2702 = vsel %vm2678, %v2669, %v2438
      %v2704 = vsel %vm2678, %v2671, %v2440
      %v2706 = vsel %vm2678, %v2673, %v2442
      %v2708 = vsel %vm2678, %v2675, %v2444
      %v2710 = vsel %vm2678, %v2677, %v2446
      %vm2711 = vcmask 326656
      %v2713 = vsel %vm2711, %v2680, %v2452
      %v2715 = vsel %vm2711, %v2682, %v2454
      %v2717 = vsel %vm2711, %v2684, %v2456
      %v2719 = vsel %vm2711, %v2686, %v2458
      %v2721 = vsel %vm2711, %v2688, %v2460
      %v2723 = vsel %vm2711, %v2690, %v2462
      %v2725 = vsel %vm2711, %v2692, %v2464
      %v2727 = vsel %vm2711, %v2694, %v2466
      %v2729 = vsel %vm2711, %v2696, %v2468
      %v2731 = vsel %vm2711, %v2698, %v2470
      %v2733 = vsel %vm2711, %v2700, %v2472
      %v2735 = vsel %vm2711, %v2702, %v2474
      %v2737 = vsel %vm2711, %v2704, %v2476
      %v2739 = vsel %vm2711, %v2706, %v2478
      %v2741 = vsel %vm2711, %v2708, %v2480
      %v2743 = vsel %vm2711, %v2710, %v2482
      %vm2744 = vcmask 392192
      %v2746 = vsel %vm2744, %v2713, %v2484
      %v2748 = vsel %vm2744, %v2715, %v2486
      %v2750 = vsel %vm2744, %v2717, %v2488
      %v2752 = vsel %vm2744, %v2719, %v2490
      %v2754 = vsel %vm2744, %v2721, %v2492
      %v2756 = vsel %vm2744, %v2723, %v2494
      %v2758 = vsel %vm2744, %v2725, %v2496
      %v2760 = vsel %vm2744, %v2727, %v2498
      %v2762 = vsel %vm2744, %v2729, %v2500
      %v2764 = vsel %vm2744, %v2731, %v2502
      %v2766 = vsel %vm2744, %v2733, %v2504
      %v2768 = vsel %vm2744, %v2735, %v2506
      %v2770 = vsel %vm2744, %v2737, %v2508
      %v2772 = vsel %vm2744, %v2739, %v2510
      %v2774 = vsel %vm2744, %v2741, %v2512
      %v2776 = vsel %vm2744, %v2743, %v2514
      %vm2777 = vcmask 457728
      %v2779 = vsel %vm2777, %v2746, %v2516
      %v2781 = vsel %vm2777, %v2748, %v2518
      %v2783 = vsel %vm2777, %v2750, %v2520
      %v2785 = vsel %vm2777, %v2752, %v2522
      %v2787 = vsel %vm2777, %v2754, %v2524
      %v2789 = vsel %vm2777, %v2756, %v2526
      %v2791 = vsel %vm2777, %v2758, %v2528
      %v2793 = vsel %vm2777, %v2760, %v2530
      %v2795 = vsel %vm2777, %v2762, %v2532
      %v2797 = vsel %vm2777, %v2764, %v2534
      %v2799 = vsel %vm2777, %v2766, %v2536
      %v2801 = vsel %vm2777, %v2768, %v2538
      %v2803 = vsel %vm2777, %v2770, %v2540
      %v2805 = vsel %vm2777, %v2772, %v2542
      %v2807 = vsel %vm2777, %v2774, %v2544
      %v2809 = vsel %vm2777, %v2776, %v2546
      %vm2810 = vcmask 523264
      %v2812 = vsel %vm2810, %v2779, %v2548
      %v2814 = vsel %vm2810, %v2781, %v2550
      %v2816 = vsel %vm2810, %v2783, %v2552
      %v2818 = vsel %vm2810, %v2785, %v2554
      %v2820 = vsel %vm2810, %v2787, %v2556
      %v2822 = vsel %vm2810, %v2789, %v2558
      %v2824 = vsel %vm2810, %v2791, %v2560
      %v2826 = vsel %vm2810, %v2793, %v2562
      %v2828 = vsel %vm2810, %v2795, %v2564
      %v2830 = vsel %vm2810, %v2797, %v2566
      %v2832 = vsel %vm2810, %v2799, %v2568
      %v2834 = vsel %vm2810, %v2801, %v2570
      %v2836 = vsel %vm2810, %v2803, %v2572
      %v2838 = vsel %vm2810, %v2805, %v2574
      %v2840 = vsel %vm2810, %v2807, %v2576
      %v2842 = vsel %vm2810, %v2809, %v2578
      %v2843 = vld [vmem:[%s4] sm:$0xf]
      %v2844 = vld [vmem:[%s4 + $0x4] sm:$0xf]
      %v2845 = vld [vmem:[%s4 + $0x8] sm:$0xf]
      %v2846 = vld [vmem:[%s4 + $0xc] sm:$0xf]
      %v2847 = vld [vmem:[%s4 + $0x10] sm:$0xf]
      %v2848 = vld [vmem:[%s4 + $0x14] sm:$0xf]
      %v2849 = vld [vmem:[%s4 + $0x18] sm:$0xf]
      %v2850 = vld [vmem:[%s4 + $0x1c] sm:$0xf]
      %v2851 = vld [vmem:[%s4 + $0x20] sm:$0xf]
      %v2852 = vld [vmem:[%s5] sm:$0x1]
      %v2854 = vperm.slane %v2852, 0
      %v2865 = vunpack.c.l.b16 %v2843
      %v2866 = vunpack.c.l.b16 %v2844
      %v2867 = vunpack.c.l.b16 %v2845
      %v2868 = vunpack.c.l.b16 %v2846
      %v2869 = vunpack.c.l.b16 %v2847
      %v2870 = vunpack.c.l.b16 %v2848
      %v2871 = vunpack.c.l.b16 %v2849
      %v2872 = vunpack.c.l.b16 %v2850
      %v2873 = vunpack.c.l.b16 %v2851
      %v2874 = vpack.c.b16 %v2866, %v2865
      %v2875 = vpack.c.b16 %v2868, %v2867
      %v2876 = vpack.c.b16 %v2870, %v2869
      %v2877 = vpack.c.b16 %v2872, %v2871
      %v2878 = vpack.c.b16 %v2873, %v2873
      %vm2883 = vcmask 588800
      %v2884 = vsel %vm2883, %v2812, 0
      %v2886 = vsel %vm2883, %v2814, 0
      %v2888 = vsel %vm2883, %v2816, 0
      %v2890 = vsel %vm2883, %v2818, 0
      %v2892 = vsel %vm2883, %v2820, 0
      %v2894 = vsel %vm2883, %v2822, 0
      %v2896 = vsel %vm2883, %v2824, 0
      %v2898 = vsel %vm2883, %v2826, 0
      %v2900 = vsel %vm2883, %v2828, 0
      %v2902 = vsel %vm2883, %v2830, 0
      %v2904 = vsel %vm2883, %v2832, 0
      %v2906 = vsel %vm2883, %v2834, 0
      %v2908 = vsel %vm2883, %v2836, 0
      %v2910 = vsel %vm2883, %v2838, 0
      %v2912 = vsel %vm2883, %v2840, 0
      %v2914 = vsel %vm2883, %v2842, 0
      %vm2916 = vcmask 1043456
      %v2918 = vsel %vm2916, %v2878, 0
      %2920 = vmatpush.bf16.msra.mxu0 0
      %2921 = vmatpush.bf16.msra.mxu0 0
      %2922 = vmatpush.bf16.msra.mxu0 0
      %2923 = vmatpush.bf16.msra.mxu0 %v2918
      %2924 = vmatpush.bf16.msra.mxu0 %v2877
      %2925 = vmatpush.bf16.msra.mxu0 %v2876
      %2926 = vmatpush.bf16.msra.mxu0 %v2875
      %2927 = vmatpush.bf16.msra.mxu0 %v2874
      %2928 = vmatmul.bf16.gmra.mxu0 %v2884
      %v2929 = vpop.f32.mrf.mxu0
      %v2930 = vadd.f32 %v2854, %v2929
      %v2931 = vpop.f32.mrf.mxu0
      %v2932 = vadd.f32 %v2854, %v2931
      %2933 = vmatmul.bf16.gmra.mxu0 %v2886
      %v2934 = vpop.f32.mrf.mxu0
      %v2935 = vadd.f32 %v2854, %v2934
      %v2936 = vpop.f32.mrf.mxu0
      %v2937 = vadd.f32 %v2854, %v2936
      %2938 = vmatmul.bf16.gmra.mxu0 %v2888
      %v2939 = vpop.f32.mrf.mxu0
      %v2940 = vadd.f32 %v2854, %v2939
      %v2941 = vpop.f32.mrf.mxu0
      %v2942 = vadd.f32 %v2854, %v2941
      %2943 = vmatmul.bf16.gmra.mxu0 %v2890
      %v2944 = vpop.f32.mrf.mxu0
      %v2945 = vadd.f32 %v2854, %v2944
      %v2946 = vpop.f32.mrf.mxu0
      %v2947 = vadd.f32 %v2854, %v2946
      %2948 = vmatmul.bf16.gmra.mxu0 %v2892
      %v2949 = vpop.f32.mrf.mxu0
      %v2950 = vadd.f32 %v2854, %v2949
      %v2951 = vpop.f32.mrf.mxu0
      %v2952 = vadd.f32 %v2854, %v2951
      %2953 = vmatmul.bf16.gmra.mxu0 %v2894
      %v2954 = vpop.f32.mrf.mxu0
      %v2955 = vadd.f32 %v2854, %v2954
      %v2956 = vpop.f32.mrf.mxu0
      %v2957 = vadd.f32 %v2854, %v2956
      %2958 = vmatmul.bf16.gmra.mxu0 %v2896
      %v2959 = vpop.f32.mrf.mxu0
      %v2960 = vadd.f32 %v2854, %v2959
      %v2961 = vpop.f32.mrf.mxu0
      %v2962 = vadd.f32 %v2854, %v2961
      %2963 = vmatmul.bf16.gmra.mxu0 %v2898
      %v2964 = vpop.f32.mrf.mxu0
      %v2965 = vadd.f32 %v2854, %v2964
      %v2966 = vpop.f32.mrf.mxu0
      %v2967 = vadd.f32 %v2854, %v2966
      %2968 = vmatmul.bf16.gmra.mxu0 %v2900
      %v2969 = vpop.f32.mrf.mxu0
      %v2970 = vadd.f32 %v2854, %v2969
      %v2971 = vpop.f32.mrf.mxu0
      %v2972 = vadd.f32 %v2854, %v2971
      %2973 = vmatmul.bf16.gmra.mxu0 %v2902
      %v2974 = vpop.f32.mrf.mxu0
      %v2975 = vadd.f32 %v2854, %v2974
      %v2976 = vpop.f32.mrf.mxu0
      %v2977 = vadd.f32 %v2854, %v2976
      %2978 = vmatmul.bf16.gmra.mxu0 %v2904
      %v2979 = vpop.f32.mrf.mxu0
      %v2980 = vadd.f32 %v2854, %v2979
      %v2981 = vpop.f32.mrf.mxu0
      %v2982 = vadd.f32 %v2854, %v2981
      %2983 = vmatmul.bf16.gmra.mxu0 %v2906
      %v2984 = vpop.f32.mrf.mxu0
      %v2985 = vadd.f32 %v2854, %v2984
      %v2986 = vpop.f32.mrf.mxu0
      %v2987 = vadd.f32 %v2854, %v2986
      %2988 = vmatmul.bf16.gmra.mxu0 %v2908
      %v2989 = vpop.f32.mrf.mxu0
      %v2990 = vadd.f32 %v2854, %v2989
      %v2991 = vpop.f32.mrf.mxu0
      %v2992 = vadd.f32 %v2854, %v2991
      %2993 = vmatmul.bf16.gmra.mxu0 %v2910
      %v2994 = vpop.f32.mrf.mxu0
      %v2995 = vadd.f32 %v2854, %v2994
      %v2996 = vpop.f32.mrf.mxu0
      %v2997 = vadd.f32 %v2854, %v2996
      %2998 = vmatmul.bf16.gmra.mxu0 %v2912
      %v2999 = vpop.f32.mrf.mxu0
      %v3000 = vadd.f32 %v2854, %v2999
      %v3001 = vpop.f32.mrf.mxu0
      %v3002 = vadd.f32 %v2854, %v3001
      %3003 = vmatmul.bf16.gmra.mxu0 %v2914
      %v3004 = vpop.f32.mrf.mxu0
      %v3005 = vadd.f32 %v2854, %v3004
      %v3006 = vpop.f32.mrf.mxu0
      %v3007 = vadd.f32 %v2854, %v3006
      %3008 = vdwg.mxu0
      %v3009 = vmax.f32 %v2930, 0.0
      %v3010 = vmax.f32 %v2932, 0.0
      %v3011 = vmax.f32 %v2935, 0.0
      %v3012 = vmax.f32 %v2937, 0.0
      %v3013 = vmax.f32 %v2940, 0.0
      %v3014 = vmax.f32 %v2942, 0.0
      %v3015 = vmax.f32 %v2945, 0.0
      %v3016 = vmax.f32 %v2947, 0.0
      %v3017 = vmax.f32 %v2950, 0.0
      %v3018 = vmax.f32 %v2952, 0.0
      %v3019 = vmax.f32 %v2955, 0.0
      %v3020 = vmax.f32 %v2957, 0.0
      %v3021 = vmax.f32 %v2960, 0.0
      %v3022 = vmax.f32 %v2962, 0.0
      %v3023 = vmax.f32 %v2965, 0.0
      %v3024 = vmax.f32 %v2967, 0.0
      %v3025 = vmax.f32 %v2970, 0.0
      %v3026 = vmax.f32 %v2972, 0.0
      %v3027 = vmax.f32 %v2975, 0.0
      %v3028 = vmax.f32 %v2977, 0.0
      %v3029 = vmax.f32 %v2980, 0.0
      %v3030 = vmax.f32 %v2982, 0.0
      %v3031 = vmax.f32 %v2985, 0.0
      %v3032 = vmax.f32 %v2987, 0.0
      %v3033 = vmax.f32 %v2990, 0.0
      %v3034 = vmax.f32 %v2992, 0.0
      %v3035 = vmax.f32 %v2995, 0.0
      %v3036 = vmax.f32 %v2997, 0.0
      %v3037 = vmax.f32 %v3000, 0.0
      %v3038 = vmax.f32 %v3002, 0.0
      %v3039 = vmax.f32 %v3005, 0.0
      %v3040 = vmax.f32 %v3007, 0.0
      %v3041 = vpack.c.bf16 %v3009, %v3009
      %v3042 = vpack.c.bf16 %v3010, %v3010
      %v3043 = vpack.c.bf16 %v3011, %v3011
      %v3044 = vpack.c.bf16 %v3012, %v3012
      %v3045 = vpack.c.bf16 %v3013, %v3013
      %v3046 = vpack.c.bf16 %v3014, %v3014
      %v3047 = vpack.c.bf16 %v3015, %v3015
      %v3048 = vpack.c.bf16 %v3016, %v3016
      %v3049 = vpack.c.bf16 %v3017, %v3017
      %v3050 = vpack.c.bf16 %v3018, %v3018
      %v3051 = vpack.c.bf16 %v3019, %v3019
      %v3052 = vpack.c.bf16 %v3020, %v3020
      %v3053 = vpack.c.bf16 %v3021, %v3021
      %v3054 = vpack.c.bf16 %v3022, %v3022
      %v3055 = vpack.c.bf16 %v3023, %v3023
      %v3056 = vpack.c.bf16 %v3024, %v3024
      %v3057 = vpack.c.bf16 %v3025, %v3025
      %v3058 = vpack.c.bf16 %v3026, %v3026
      %v3059 = vpack.c.bf16 %v3027, %v3027
      %v3060 = vpack.c.bf16 %v3028, %v3028
      %v3061 = vpack.c.bf16 %v3029, %v3029
      %v3062 = vpack.c.bf16 %v3030, %v3030
      %v3063 = vpack.c.bf16 %v3031, %v3031
      %v3064 = vpack.c.bf16 %v3032, %v3032
      %v3065 = vpack.c.bf16 %v3033, %v3033
      %v3066 = vpack.c.bf16 %v3034, %v3034
      %v3067 = vpack.c.bf16 %v3035, %v3035
      %v3068 = vpack.c.bf16 %v3036, %v3036
      %v3069 = vpack.c.bf16 %v3037, %v3037
      %v3070 = vpack.c.bf16 %v3038, %v3038
      %v3071 = vpack.c.bf16 %v3039, %v3039
      %v3072 = vpack.c.bf16 %v3040, %v3040
      %v3105 = vunpack.c.l.b16 %v3041
      %v3106 = vunpack.c.l.b16 %v3042
      %v3107 = vunpack.c.l.b16 %v3043
      %v3108 = vunpack.c.l.b16 %v3044
      %v3109 = vunpack.c.l.b16 %v3045
      %v3110 = vunpack.c.l.b16 %v3046
      %v3111 = vunpack.c.l.b16 %v3047
      %v3112 = vunpack.c.l.b16 %v3048
      %v3113 = vunpack.c.l.b16 %v3049
      %v3114 = vunpack.c.l.b16 %v3050
      %v3115 = vunpack.c.l.b16 %v3051
      %v3116 = vunpack.c.l.b16 %v3052
      %v3117 = vunpack.c.l.b16 %v3053
      %v3118 = vunpack.c.l.b16 %v3054
      %v3119 = vunpack.c.l.b16 %v3055
      %v3120 = vunpack.c.l.b16 %v3056
      %v3121 = vunpack.c.l.b16 %v3057
      %v3122 = vunpack.c.l.b16 %v3058
      %v3123 = vunpack.c.l.b16 %v3059
      %v3124 = vunpack.c.l.b16 %v3060
      %v3125 = vunpack.c.l.b16 %v3061
      %v3126 = vunpack.c.l.b16 %v3062
      %v3127 = vunpack.c.l.b16 %v3063
      %v3128 = vunpack.c.l.b16 %v3064
      %v3129 = vunpack.c.l.b16 %v3065
      %v3130 = vunpack.c.l.b16 %v3066
      %v3131 = vunpack.c.l.b16 %v3067
      %v3132 = vunpack.c.l.b16 %v3068
      %v3133 = vunpack.c.l.b16 %v3069
      %v3134 = vunpack.c.l.b16 %v3070
      %v3135 = vunpack.c.l.b16 %v3071
      %v3136 = vunpack.c.l.b16 %v3072
      %v3137 = vpack.c.b16 %v3106, %v3105
      %v3138 = vpack.c.b16 %v3108, %v3107
      %v3139 = vpack.c.b16 %v3110, %v3109
      %v3140 = vpack.c.b16 %v3112, %v3111
      %v3141 = vpack.c.b16 %v3114, %v3113
      %v3142 = vpack.c.b16 %v3116, %v3115
      %v3143 = vpack.c.b16 %v3118, %v3117
      %v3144 = vpack.c.b16 %v3120, %v3119
      %v3145 = vpack.c.b16 %v3122, %v3121
      %v3146 = vpack.c.b16 %v3124, %v3123
      %v3147 = vpack.c.b16 %v3126, %v3125
      %v3148 = vpack.c.b16 %v3128, %v3127
      %v3149 = vpack.c.b16 %v3130, %v3129
      %v3150 = vpack.c.b16 %v3132, %v3131
      %v3151 = vpack.c.b16 %v3134, %v3133
      %v3152 = vpack.c.b16 %v3136, %v3135
      %v3154 = vshrl.u32 %v3137, 16
      %v3156 = vrot.slane %v3154, 7
      %v3157 = vshll.u32 %v3137, 16
      %v3159 = vor.u32 %v3156, %v3157
      %v3161 = vshrl.u32 %v3138, 16
      %v3163 = vrot.slane %v3161, 7
      %v3164 = vshll.u32 %v3138, 16
      %v3166 = vor.u32 %v3163, %v3164
      %v3168 = vshrl.u32 %v3139, 16
      %v3170 = vrot.slane %v3168, 7
      %v3171 = vshll.u32 %v3139, 16
      %v3173 = vor.u32 %v3170, %v3171
      %v3175 = vshrl.u32 %v3140, 16
      %v3177 = vrot.slane %v3175, 7
      %v3178 = vshll.u32 %v3140, 16
      %v3180 = vor.u32 %v3177, %v3178
      %v3182 = vshrl.u32 %v3141, 16
      %v3184 = vrot.slane %v3182, 7
      %v3185 = vshll.u32 %v3141, 16
      %v3187 = vor.u32 %v3184, %v3185
      %v3189 = vshrl.u32 %v3142, 16
      %v3191 = vrot.slane %v3189, 7
      %v3192 = vshll.u32 %v3142, 16
      %v3194 = vor.u32 %v3191, %v3192
      %v3196 = vshrl.u32 %v3143, 16
      %v3198 = vrot.slane %v3196, 7
      %v3199 = vshll.u32 %v3143, 16
      %v3201 = vor.u32 %v3198, %v3199
      %v3203 = vshrl.u32 %v3144, 16
      %v3205 = vrot.slane %v3203, 7
      %v3206 = vshll.u32 %v3144, 16
      %v3208 = vor.u32 %v3205, %v3206
      %v3210 = vshrl.u32 %v3145, 16
      %v3212 = vrot.slane %v3210, 7
      %v3213 = vshll.u32 %v3145, 16
      %v3215 = vor.u32 %v3212, %v3213
      %v3217 = vshrl.u32 %v3146, 16
      %v3219 = vrot.slane %v3217, 7
      %v3220 = vshll.u32 %v3146, 16
      %v3222 = vor.u32 %v3219, %v3220
      %v3224 = vshrl.u32 %v3147, 16
      %v3226 = vrot.slane %v3224, 7
      %v3227 = vshll.u32 %v3147, 16
      %v3229 = vor.u32 %v3226, %v3227
      %v3231 = vshrl.u32 %v3148, 16
      %v3233 = vrot.slane %v3231, 7
      %v3234 = vshll.u32 %v3148, 16
      %v3236 = vor.u32 %v3233, %v3234
      %v3238 = vshrl.u32 %v3149, 16
      %v3240 = vrot.slane %v3238, 7
      %v3241 = vshll.u32 %v3149, 16
      %v3243 = vor.u32 %v3240, %v3241
      %v3245 = vshrl.u32 %v3150, 16
      %v3247 = vrot.slane %v3245, 7
      %v3248 = vshll.u32 %v3150, 16
      %v3250 = vor.u32 %v3247, %v3248
      %v3252 = vshrl.u32 %v3151, 16
      %v3254 = vrot.slane %v3252, 7
      %v3255 = vshll.u32 %v3151, 16
      %v3257 = vor.u32 %v3254, %v3255
      %v3259 = vshrl.u32 %v3152, 16
      %v3261 = vrot.slane %v3259, 7
      %v3262 = vshll.u32 %v3152, 16
      %v3264 = vor.u32 %v3261, %v3262
      %v3297 = vsel %vm1997, 0, %v3159
      %v3298 = vsel %vm1997, 0, %v3166
      %v3299 = vsel %vm1997, 0, %v3173
      %v3300 = vsel %vm1997, 0, %v3180
      %v3301 = vsel %vm1997, 0, %v3187
      %v3302 = vsel %vm1997, 0, %v3194
      %v3303 = vsel %vm1997, 0, %v3201
      %v3304 = vsel %vm1997, 0, %v3208
      %v3305 = vsel %vm1997, 0, %v3215
      %v3306 = vsel %vm1997, 0, %v3222
      %v3307 = vsel %vm1997, 0, %v3229
      %v3308 = vsel %vm1997, 0, %v3236
      %v3309 = vsel %vm1997, 0, %v3243
      %v3310 = vsel %vm1997, 0, %v3250
      %v3311 = vsel %vm1997, 0, %v3257
      %v3312 = vsel %vm1997, 0, %v3264
      %v3313 = vsel %vm1997, %v3156, 0
      %v3314 = vsel %vm1997, %v3163, 0
      %v3315 = vsel %vm1997, %v3170, 0
      %v3316 = vsel %vm1997, %v3177, 0
      %v3317 = vsel %vm1997, %v3184, 0
      %v3318 = vsel %vm1997, %v3191, 0
      %v3319 = vsel %vm1997, %v3198, 0
      %v3320 = vsel %vm1997, %v3205, 0
      %v3321 = vsel %vm1997, %v3212, 0
      %v3322 = vsel %vm1997, %v3219, 0
      %v3323 = vsel %vm1997, %v3226, 0
      %v3324 = vsel %vm1997, %v3233, 0
      %v3325 = vsel %vm1997, %v3240, 0
      %v3326 = vsel %vm1997, %v3247, 0
      %v3327 = vsel %vm1997, %v3254, 0
      %v3328 = vsel %vm1997, %v3261, 0
      %v3330 = vshrl.u32 %v3297, 16
      %v3332 = vshll.u32 %v3297, 16
      %v3334 = vrot.slane %v3332, 1
      %v3335 = vor.u32 %v3330, %v3334
      %v3337 = vshll.u32 %v3313, 16
      %v3339 = vrot.slane %v3337, 1
      %v3340 = vsel %vm2032, %v3335, %v3339
      %v3342 = vshrl.u32 %v3298, 16
      %v3344 = vshll.u32 %v3298, 16
      %v3346 = vrot.slane %v3344, 1
      %v3347 = vor.u32 %v3342, %v3346
      %v3349 = vshll.u32 %v3314, 16
      %v3351 = vrot.slane %v3349, 1
      %v3352 = vsel %vm2032, %v3347, %v3351
      %v3354 = vshrl.u32 %v3299, 16
      %v3356 = vshll.u32 %v3299, 16
      %v3358 = vrot.slane %v3356, 1
      %v3359 = vor.u32 %v3354, %v3358
      %v3361 = vshll.u32 %v3315, 16
      %v3363 = vrot.slane %v3361, 1
      %v3364 = vsel %vm2032, %v3359, %v3363
      %v3366 = vshrl.u32 %v3300, 16
      %v3368 = vshll.u32 %v3300, 16
      %v3370 = vrot.slane %v3368, 1
      %v3371 = vor.u32 %v3366, %v3370
      %v3373 = vshll.u32 %v3316, 16
      %v3375 = vrot.slane %v3373, 1
      %v3376 = vsel %vm2032, %v3371, %v3375
      %v3378 = vshrl.u32 %v3301, 16
      %v3380 = vshll.u32 %v3301, 16
      %v3382 = vrot.slane %v3380, 1
      %v3383 = vor.u32 %v3378, %v3382
      %v3385 = vshll.u32 %v3317, 16
      %v3387 = vrot.slane %v3385, 1
      %v3388 = vsel %vm2032, %v3383, %v3387
      %v3390 = vshrl.u32 %v3302, 16
      %v3392 = vshll.u32 %v3302, 16
      %v3394 = vrot.slane %v3392, 1
      %v3395 = vor.u32 %v3390, %v3394
      %v3397 = vshll.u32 %v3318, 16
      %v3399 = vrot.slane %v3397, 1
      %v3400 = vsel %vm2032, %v3395, %v3399
      %v3402 = vshrl.u32 %v3303, 16
      %v3404 = vshll.u32 %v3303, 16
      %v3406 = vrot.slane %v3404, 1
      %v3407 = vor.u32 %v3402, %v3406
      %v3409 = vshll.u32 %v3319, 16
      %v3411 = vrot.slane %v3409, 1
      %v3412 = vsel %vm2032, %v3407, %v3411
      %v3414 = vshrl.u32 %v3304, 16
      %v3416 = vshll.u32 %v3304, 16
      %v3418 = vrot.slane %v3416, 1
      %v3419 = vor.u32 %v3414, %v3418
      %v3421 = vshll.u32 %v3320, 16
      %v3423 = vrot.slane %v3421, 1
      %v3424 = vsel %vm2032, %v3419, %v3423
      %v3426 = vshrl.u32 %v3305, 16
      %v3428 = vshll.u32 %v3305, 16
      %v3430 = vrot.slane %v3428, 1
      %v3431 = vor.u32 %v3426, %v3430
      %v3433 = vshll.u32 %v3321, 16
      %v3435 = vrot.slane %v3433, 1
      %v3436 = vsel %vm2032, %v3431, %v3435
      %v3438 = vshrl.u32 %v3306, 16
      %v3440 = vshll.u32 %v3306, 16
      %v3442 = vrot.slane %v3440, 1
      %v3443 = vor.u32 %v3438, %v3442
      %v3445 = vshll.u32 %v3322, 16
      %v3447 = vrot.slane %v3445, 1
      %v3448 = vsel %vm2032, %v3443, %v3447
      %v3450 = vshrl.u32 %v3307, 16
      %v3452 = vshll.u32 %v3307, 16
      %v3454 = vrot.slane %v3452, 1
      %v3455 = vor.u32 %v3450, %v3454
      %v3457 = vshll.u32 %v3323, 16
      %v3459 = vrot.slane %v3457, 1
      %v3460 = vsel %vm2032, %v3455, %v3459
      %v3462 = vshrl.u32 %v3308, 16
      %v3464 = vshll.u32 %v3308, 16
      %v3466 = vrot.slane %v3464, 1
      %v3467 = vor.u32 %v3462, %v3466
      %v3469 = vshll.u32 %v3324, 16
      %v3471 = vrot.slane %v3469, 1
      %v3472 = vsel %vm2032, %v3467, %v3471
      %v3474 = vshrl.u32 %v3309, 16
      %v3476 = vshll.u32 %v3309, 16
      %v3478 = vrot.slane %v3476, 1
      %v3479 = vor.u32 %v3474, %v3478
      %v3481 = vshll.u32 %v3325, 16
      %v3483 = vrot.slane %v3481, 1
      %v3484 = vsel %vm2032, %v3479, %v3483
      %v3486 = vshrl.u32 %v3310, 16
      %v3488 = vshll.u32 %v3310, 16
      %v3490 = vrot.slane %v3488, 1
      %v3491 = vor.u32 %v3486, %v3490
      %v3493 = vshll.u32 %v3326, 16
      %v3495 = vrot.slane %v3493, 1
      %v3496 = vsel %vm2032, %v3491, %v3495
      %v3498 = vshrl.u32 %v3311, 16
      %v3500 = vshll.u32 %v3311, 16
      %v3502 = vrot.slane %v3500, 1
      %v3503 = vor.u32 %v3498, %v3502
      %v3505 = vshll.u32 %v3327, 16
      %v3507 = vrot.slane %v3505, 1
      %v3508 = vsel %vm2032, %v3503, %v3507
      %3509 = vrot.lane.b32.xlu0 %v3340, 8
      %v3510 = vpop.permute.xlu0 %3509
      %3511 = vrot.lane.b32.xlu0 %v3352, 8
      %v3512 = vpop.permute.xlu0 %3511
      %3513 = vrot.lane.b32.xlu0 %v3364, 8
      %v3514 = vpop.permute.xlu0 %3513
      %3515 = vrot.lane.b32.xlu0 %v3376, 8
      %v3516 = vpop.permute.xlu0 %3515
      %3517 = vrot.lane.b32.xlu0 %v3388, 8
      %v3518 = vpop.permute.xlu0 %3517
      %3519 = vrot.lane.b32.xlu0 %v3400, 8
      %v3520 = vpop.permute.xlu0 %3519
      %3521 = vrot.lane.b32.xlu0 %v3412, 8
      %v3522 = vpop.permute.xlu0 %3521
      %3523 = vrot.lane.b32.xlu0 %v3424, 8
      %v3524 = vpop.permute.xlu0 %3523
      %3525 = vrot.lane.b32.xlu0 %v3436, 8
      %v3526 = vpop.permute.xlu0 %3525
      %3527 = vrot.lane.b32.xlu0 %v3448, 8
      %v3528 = vpop.permute.xlu0 %3527
      %3529 = vrot.lane.b32.xlu0 %v3460, 8
      %v3530 = vpop.permute.xlu0 %3529
      %3531 = vrot.lane.b32.xlu0 %v3472, 8
      %v3532 = vpop.permute.xlu0 %3531
      %3533 = vrot.lane.b32.xlu0 %v3484, 8
      %v3534 = vpop.permute.xlu0 %3533
      %3535 = vrot.lane.b32.xlu0 %v3496, 8
      %v3536 = vpop.permute.xlu0 %3535
      %3537 = vrot.lane.b32.xlu0 %v3508, 8
      %v3538 = vpop.permute.xlu0 %3537
      %v3569 = vrot.slane %v3297, 1
      %v3570 = vrot.slane %v3313, 1
      %v3571 = vsel %vm2289, %v3569, %v3570
      %v3572 = vrot.slane %v3298, 1
      %v3573 = vrot.slane %v3314, 1
      %v3574 = vsel %vm2289, %v3572, %v3573
      %v3575 = vrot.slane %v3299, 1
      %v3576 = vrot.slane %v3315, 1
      %v3577 = vsel %vm2289, %v3575, %v3576
      %v3578 = vrot.slane %v3300, 1
      %v3579 = vrot.slane %v3316, 1
      %v3580 = vsel %vm2289, %v3578, %v3579
      %v3581 = vrot.slane %v3301, 1
      %v3582 = vrot.slane %v3317, 1
      %v3583 = vsel %vm2289, %v3581, %v3582
      %v3584 = vrot.slane %v3302, 1
      %v3585 = vrot.slane %v3318, 1
      %v3586 = vsel %vm2289, %v3584, %v3585
      %v3587 = vrot.slane %v3303, 1
      %v3588 = vrot.slane %v3319, 1
      %v3589 = vsel %vm2289, %v3587, %v3588
      %v3590 = vrot.slane %v3304, 1
      %v3591 = vrot.slane %v3320, 1
      %v3592 = vsel %vm2289, %v3590, %v3591
      %v3593 = vrot.slane %v3305, 1
      %v3594 = vrot.slane %v3321, 1
      %v3595 = vsel %vm2289, %v3593, %v3594
      %v3596 = vrot.slane %v3306, 1
      %v3597 = vrot.slane %v3322, 1
      %v3598 = vsel %vm2289, %v3596, %v3597
      %v3599 = vrot.slane %v3307, 1
      %v3600 = vrot.slane %v3323, 1
      %v3601 = vsel %vm2289, %v3599, %v3600
      %v3602 = vrot.slane %v3308, 1
      %v3603 = vrot.slane %v3324, 1
      %v3604 = vsel %vm2289, %v3602, %v3603
      %v3605 = vrot.slane %v3309, 1
      %v3606 = vrot.slane %v3325, 1
      %v3607 = vsel %vm2289, %v3605, %v3606
      %v3608 = vrot.slane %v3310, 1
      %v3609 = vrot.slane %v3326, 1
      %v3610 = vsel %vm2289, %v3608, %v3609
      %v3611 = vrot.slane %v3311, 1
      %v3612 = vrot.slane %v3327, 1
      %v3613 = vsel %vm2289, %v3611, %v3612
      %3614 = vrot.lane.b32.xlu0 %v3571, 16
      %v3615 = vpop.permute.xlu0 %3614
      %3616 = vrot.lane.b32.xlu0 %v3574, 16
      %v3617 = vpop.permute.xlu0 %3616
      %3618 = vrot.lane.b32.xlu0 %v3577, 16
      %v3619 = vpop.permute.xlu0 %3618
      %3620 = vrot.lane.b32.xlu0 %v3580, 16
      %v3621 = vpop.permute.xlu0 %3620
      %3622 = vrot.lane.b32.xlu0 %v3583, 16
      %v3623 = vpop.permute.xlu0 %3622
      %3624 = vrot.lane.b32.xlu0 %v3586, 16
      %v3625 = vpop.permute.xlu0 %3624
      %3626 = vrot.lane.b32.xlu0 %v3589, 16
      %v3627 = vpop.permute.xlu0 %3626
      %3628 = vrot.lane.b32.xlu0 %v3592, 16
      %v3629 = vpop.permute.xlu0 %3628
      %3630 = vrot.lane.b32.xlu0 %v3595, 16
      %v3631 = vpop.permute.xlu0 %3630
      %3632 = vrot.lane.b32.xlu0 %v3598, 16
      %v3633 = vpop.permute.xlu0 %3632
      %3634 = vrot.lane.b32.xlu0 %v3601, 16
      %v3635 = vpop.permute.xlu0 %3634
      %3636 = vrot.lane.b32.xlu0 %v3604, 16
      %v3637 = vpop.permute.xlu0 %3636
      %3638 = vrot.lane.b32.xlu0 %v3607, 16
      %v3639 = vpop.permute.xlu0 %3638
      %3640 = vrot.lane.b32.xlu0 %v3610, 16
      %v3641 = vpop.permute.xlu0 %3640
      %3642 = vrot.lane.b32.xlu0 %v3613, 16
      %v3643 = vpop.permute.xlu0 %3642
      %3645 = vrot.lane.b32.xlu0 %v3297, 24
      %v3646 = vpop.permute.xlu0 %3645
      %3647 = vrot.lane.b32.xlu0 %v3298, 24
      %v3648 = vpop.permute.xlu0 %3647
      %3649 = vrot.lane.b32.xlu0 %v3299, 24
      %v3650 = vpop.permute.xlu0 %3649
      %3651 = vrot.lane.b32.xlu0 %v3300, 24
      %v3652 = vpop.permute.xlu0 %3651
      %3653 = vrot.lane.b32.xlu0 %v3301, 24
      %v3654 = vpop.permute.xlu0 %3653
      %3655 = vrot.lane.b32.xlu0 %v3302, 24
      %v3656 = vpop.permute.xlu0 %3655
      %3657 = vrot.lane.b32.xlu0 %v3303, 24
      %v3658 = vpop.permute.xlu0 %3657
      %3659 = vrot.lane.b32.xlu0 %v3304, 24
      %v3660 = vpop.permute.xlu0 %3659
      %3661 = vrot.lane.b32.xlu0 %v3305, 24
      %v3662 = vpop.permute.xlu0 %3661
      %3663 = vrot.lane.b32.xlu0 %v3306, 24
      %v3664 = vpop.permute.xlu0 %3663
      %3665 = vrot.lane.b32.xlu0 %v3307, 24
      %v3666 = vpop.permute.xlu0 %3665
      %3667 = vrot.lane.b32.xlu0 %v3308, 24
      %v3668 = vpop.permute.xlu0 %3667
      %3669 = vrot.lane.b32.xlu0 %v3309, 24
      %v3670 = vpop.permute.xlu0 %3669
      %3671 = vrot.lane.b32.xlu0 %v3310, 24
      %v3672 = vpop.permute.xlu0 %3671
      %3673 = vrot.lane.b32.xlu0 %v3311, 24
      %v3674 = vpop.permute.xlu0 %3673
      %3675 = vrot.lane.b32.xlu0 %v3312, 24
      %v3676 = vpop.permute.xlu0 %3675
      %v3678 = vshrl.u32 %v3312, 16
      %v3680 = vshll.u32 %v3312, 16
      %v3682 = vrot.slane %v3680, 1
      %v3683 = vor.u32 %v3678, %v3682
      %v3685 = vshll.u32 %v3328, 16
      %v3687 = vrot.slane %v3685, 1
      %v3688 = vsel %vm2032, %v3683, %v3687
      %3689 = vrot.lane.b32.xlu0 %v3340, 32
      %v3690 = vpop.permute.xlu0 %3689
      %3691 = vrot.lane.b32.xlu0 %v3352, 32
      %v3692 = vpop.permute.xlu0 %3691
      %3693 = vrot.lane.b32.xlu0 %v3364, 32
      %v3694 = vpop.permute.xlu0 %3693
      %3695 = vrot.lane.b32.xlu0 %v3376, 32
      %v3696 = vpop.permute.xlu0 %3695
      %3697 = vrot.lane.b32.xlu0 %v3388, 32
      %v3698 = vpop.permute.xlu0 %3697
      %3699 = vrot.lane.b32.xlu0 %v3400, 32
      %v3700 = vpop.permute.xlu0 %3699
      %3701 = vrot.lane.b32.xlu0 %v3412, 32
      %v3702 = vpop.permute.xlu0 %3701
      %3703 = vrot.lane.b32.xlu0 %v3424, 32
      %v3704 = vpop.permute.xlu0 %3703
      %3705 = vrot.lane.b32.xlu0 %v3436, 32
      %v3706 = vpop.permute.xlu0 %3705
      %3707 = vrot.lane.b32.xlu0 %v3448, 32
      %v3708 = vpop.permute.xlu0 %3707
      %3709 = vrot.lane.b32.xlu0 %v3460, 32
      %v3710 = vpop.permute.xlu0 %3709
      %3711 = vrot.lane.b32.xlu0 %v3472, 32
      %v3712 = vpop.permute.xlu0 %3711
      %3713 = vrot.lane.b32.xlu0 %v3484, 32
      %v3714 = vpop.permute.xlu0 %3713
      %3715 = vrot.lane.b32.xlu0 %v3496, 32
      %v3716 = vpop.permute.xlu0 %3715
      %3717 = vrot.lane.b32.xlu0 %v3508, 32
      %v3718 = vpop.permute.xlu0 %3717
      %3719 = vrot.lane.b32.xlu0 %v3688, 32
      %v3720 = vpop.permute.xlu0 %3719
      %v3722 = vrot.slane %v3312, 1
      %v3723 = vrot.slane %v3328, 1
      %v3724 = vsel %vm2289, %v3722, %v3723
      %3725 = vrot.lane.b32.xlu0 %v3571, 40
      %v3726 = vpop.permute.xlu0 %3725
      %3727 = vrot.lane.b32.xlu0 %v3574, 40
      %v3728 = vpop.permute.xlu0 %3727
      %3729 = vrot.lane.b32.xlu0 %v3577, 40
      %v3730 = vpop.permute.xlu0 %3729
      %3731 = vrot.lane.b32.xlu0 %v3580, 40
      %v3732 = vpop.permute.xlu0 %3731
      %3733 = vrot.lane.b32.xlu0 %v3583, 40
      %v3734 = vpop.permute.xlu0 %3733
      %3735 = vrot.lane.b32.xlu0 %v3586, 40
      %v3736 = vpop.permute.xlu0 %3735
      %3737 = vrot.lane.b32.xlu0 %v3589, 40
      %v3738 = vpop.permute.xlu0 %3737
      %3739 = vrot.lane.b32.xlu0 %v3592, 40
      %v3740 = vpop.permute.xlu0 %3739
      %3741 = vrot.lane.b32.xlu0 %v3595, 40
      %v3742 = vpop.permute.xlu0 %3741
      %3743 = vrot.lane.b32.xlu0 %v3598, 40
      %v3744 = vpop.permute.xlu0 %3743
      %3745 = vrot.lane.b32.xlu0 %v3601, 40
      %v3746 = vpop.permute.xlu0 %3745
      %3747 = vrot.lane.b32.xlu0 %v3604, 40
      %v3748 = vpop.permute.xlu0 %3747
      %3749 = vrot.lane.b32.xlu0 %v3607, 40
      %v3750 = vpop.permute.xlu0 %3749
      %3751 = vrot.lane.b32.xlu0 %v3610, 40
      %v3752 = vpop.permute.xlu0 %3751
      %3753 = vrot.lane.b32.xlu0 %v3613, 40
      %v3754 = vpop.permute.xlu0 %3753
      %3755 = vrot.lane.b32.xlu0 %v3724, 40
      %v3756 = vpop.permute.xlu0 %3755
      %3757 = vrot.lane.b32.xlu0 %v3298, 48
      %v3758 = vpop.permute.xlu0 %3757
      %3759 = vrot.lane.b32.xlu0 %v3299, 48
      %v3760 = vpop.permute.xlu0 %3759
      %3761 = vrot.lane.b32.xlu0 %v3300, 48
      %v3762 = vpop.permute.xlu0 %3761
      %3763 = vrot.lane.b32.xlu0 %v3301, 48
      %v3764 = vpop.permute.xlu0 %3763
      %3765 = vrot.lane.b32.xlu0 %v3302, 48
      %v3766 = vpop.permute.xlu0 %3765
      %3767 = vrot.lane.b32.xlu0 %v3303, 48
      %v3768 = vpop.permute.xlu0 %3767
      %3769 = vrot.lane.b32.xlu0 %v3304, 48
      %v3770 = vpop.permute.xlu0 %3769
      %3771 = vrot.lane.b32.xlu0 %v3305, 48
      %v3772 = vpop.permute.xlu0 %3771
      %3773 = vrot.lane.b32.xlu0 %v3306, 48
      %v3774 = vpop.permute.xlu0 %3773
      %3775 = vrot.lane.b32.xlu0 %v3307, 48
      %v3776 = vpop.permute.xlu0 %3775
      %3777 = vrot.lane.b32.xlu0 %v3308, 48
      %v3778 = vpop.permute.xlu0 %3777
      %3779 = vrot.lane.b32.xlu0 %v3309, 48
      %v3780 = vpop.permute.xlu0 %3779
      %3781 = vrot.lane.b32.xlu0 %v3310, 48
      %v3782 = vpop.permute.xlu0 %3781
      %3783 = vrot.lane.b32.xlu0 %v3311, 48
      %v3784 = vpop.permute.xlu0 %3783
      %3785 = vrot.lane.b32.xlu0 %v3312, 48
      %v3786 = vpop.permute.xlu0 %3785
      %3787 = vrot.lane.b32.xlu0 %v3352, 56
      %v3788 = vpop.permute.xlu0 %3787
      %3789 = vrot.lane.b32.xlu0 %v3364, 56
      %v3790 = vpop.permute.xlu0 %3789
      %3791 = vrot.lane.b32.xlu0 %v3376, 56
      %v3792 = vpop.permute.xlu0 %3791
      %3793 = vrot.lane.b32.xlu0 %v3388, 56
      %v3794 = vpop.permute.xlu0 %3793
      %3795 = vrot.lane.b32.xlu0 %v3400, 56
      %v3796 = vpop.permute.xlu0 %3795
      %3797 = vrot.lane.b32.xlu0 %v3412, 56
      %v3798 = vpop.permute.xlu0 %3797
      %3799 = vrot.lane.b32.xlu0 %v3424, 56
      %v3800 = vpop.permute.xlu0 %3799
      %3801 = vrot.lane.b32.xlu0 %v3436, 56
      %v3802 = vpop.permute.xlu0 %3801
      %3803 = vrot.lane.b32.xlu0 %v3448, 56
      %v3804 = vpop.permute.xlu0 %3803
      %3805 = vrot.lane.b32.xlu0 %v3460, 56
      %v3806 = vpop.permute.xlu0 %3805
      %3807 = vrot.lane.b32.xlu0 %v3472, 56
      %v3808 = vpop.permute.xlu0 %3807
      %3809 = vrot.lane.b32.xlu0 %v3484, 56
      %v3810 = vpop.permute.xlu0 %3809
      %3811 = vrot.lane.b32.xlu0 %v3496, 56
      %v3812 = vpop.permute.xlu0 %3811
      %3813 = vrot.lane.b32.xlu0 %v3508, 56
      %v3814 = vpop.permute.xlu0 %3813
      %3815 = vrot.lane.b32.xlu0 %v3688, 56
      %v3816 = vpop.permute.xlu0 %3815
      %3817 = vrot.lane.b32.xlu0 %v3574, 64
      %v3818 = vpop.permute.xlu0 %3817
      %3819 = vrot.lane.b32.xlu0 %v3577, 64
      %v3820 = vpop.permute.xlu0 %3819
      %3821 = vrot.lane.b32.xlu0 %v3580, 64
      %v3822 = vpop.permute.xlu0 %3821
      %3823 = vrot.lane.b32.xlu0 %v3583, 64
      %v3824 = vpop.permute.xlu0 %3823
      %3825 = vrot.lane.b32.xlu0 %v3586, 64
      %v3826 = vpop.permute.xlu0 %3825
      %3827 = vrot.lane.b32.xlu0 %v3589, 64
      %v3828 = vpop.permute.xlu0 %3827
      %3829 = vrot.lane.b32.xlu0 %v3592, 64
      %v3830 = vpop.permute.xlu0 %3829
      %3831 = vrot.lane.b32.xlu0 %v3595, 64
      %v3832 = vpop.permute.xlu0 %3831
      %3833 = vrot.lane.b32.xlu0 %v3598, 64
      %v3834 = vpop.permute.xlu0 %3833
      %3835 = vrot.lane.b32.xlu0 %v3601, 64
      %v3836 = vpop.permute.xlu0 %3835
      %3837 = vrot.lane.b32.xlu0 %v3604, 64
      %v3838 = vpop.permute.xlu0 %3837
      %3839 = vrot.lane.b32.xlu0 %v3607, 64
      %v3840 = vpop.permute.xlu0 %3839
      %3841 = vrot.lane.b32.xlu0 %v3610, 64
      %v3842 = vpop.permute.xlu0 %3841
      %3843 = vrot.lane.b32.xlu0 %v3613, 64
      %v3844 = vpop.permute.xlu0 %3843
      %3845 = vrot.lane.b32.xlu0 %v3724, 64
      %v3846 = vpop.permute.xlu0 %3845
      %v3848 = vsel %vm2579, %v3297, %v3510
      %v3850 = vsel %vm2579, %v3298, %v3512
      %v3852 = vsel %vm2579, %v3299, %v3514
      %v3854 = vsel %vm2579, %v3300, %v3516
      %v3856 = vsel %vm2579, %v3301, %v3518
      %v3858 = vsel %vm2579, %v3302, %v3520
      %v3860 = vsel %vm2579, %v3303, %v3522
      %v3862 = vsel %vm2579, %v3304, %v3524
      %v3864 = vsel %vm2579, %v3305, %v3526
      %v3866 = vsel %vm2579, %v3306, %v3528
      %v3868 = vsel %vm2579, %v3307, %v3530
      %v3870 = vsel %vm2579, %v3308, %v3532
      %v3872 = vsel %vm2579, %v3309, %v3534
      %v3874 = vsel %vm2579, %v3310, %v3536
      %v3876 = vsel %vm2579, %v3311, %v3538
      %v3878 = vsel %vm2612, %v3848, %v3615
      %v3880 = vsel %vm2612, %v3850, %v3617
      %v3882 = vsel %vm2612, %v3852, %v3619
      %v3884 = vsel %vm2612, %v3854, %v3621
      %v3886 = vsel %vm2612, %v3856, %v3623
      %v3888 = vsel %vm2612, %v3858, %v3625
      %v3890 = vsel %vm2612, %v3860, %v3627
      %v3892 = vsel %vm2612, %v3862, %v3629
      %v3894 = vsel %vm2612, %v3864, %v3631
      %v3896 = vsel %vm2612, %v3866, %v3633
      %v3898 = vsel %vm2612, %v3868, %v3635
      %v3900 = vsel %vm2612, %v3870, %v3637
      %v3902 = vsel %vm2612, %v3872, %v3639
      %v3904 = vsel %vm2612, %v3874, %v3641
      %v3906 = vsel %vm2612, %v3876, %v3643
      %v3908 = vsel %vm2645, %v2614, %v3646
      %v3910 = vsel %vm2645, %v3878, %v3648
      %v3912 = vsel %vm2645, %v3880, %v3650
      %v3914 = vsel %vm2645, %v3882, %v3652
      %v3916 = vsel %vm2645, %v3884, %v3654
      %v3918 = vsel %vm2645, %v3886, %v3656
      %v3920 = vsel %vm2645, %v3888, %v3658
      %v3922 = vsel %vm2645, %v3890, %v3660
      %v3924 = vsel %vm2645, %v3892, %v3662
      %v3926 = vsel %vm2645, %v3894, %v3664
      %v3928 = vsel %vm2645, %v3896, %v3666
      %v3930 = vsel %vm2645, %v3898, %v3668
      %v3932 = vsel %vm2645, %v3900, %v3670
      %v3934 = vsel %vm2645, %v3902, %v3672
      %v3936 = vsel %vm2645, %v3904, %v3674
      %v3938 = vsel %vm2645, %v3906, %v3676
      %v3940 = vsel %vm2678, %v3908, %v3690
      %v3942 = vsel %vm2678, %v3910, %v3692
      %v3944 = vsel %vm2678, %v3912, %v3694
      %v3946 = vsel %vm2678, %v3914, %v3696
      %v3948 = vsel %vm2678, %v3916, %v3698
      %v3950 = vsel %vm2678, %v3918, %v3700
      %v3952 = vsel %vm2678, %v3920, %v3702
      %v3954 = vsel %vm2678, %v3922, %v3704
      %v3956 = vsel %vm2678, %v3924, %v3706
      %v3958 = vsel %vm2678, %v3926, %v3708
      %v3960 = vsel %vm2678, %v3928, %v3710
      %v3962 = vsel %vm2678, %v3930, %v3712
      %v3964 = vsel %vm2678, %v3932, %v3714
      %v3966 = vsel %vm2678, %v3934, %v3716
      %v3968 = vsel %vm2678, %v3936, %v3718
      %v3970 = vsel %vm2678, %v3938, %v3720
      %v3972 = vsel %vm2711, %v3940, %v3726
      %v3974 = vsel %vm2711, %v3942, %v3728
      %v3976 = vsel %vm2711, %v3944, %v3730
      %v3978 = vsel %vm2711, %v3946, %v3732
      %v3980 = vsel %vm2711, %v3948, %v3734
      %v3982 = vsel %vm2711, %v3950, %v3736
      %v3984 = vsel %vm2711, %v3952, %v3738
      %v3986 = vsel %vm2711, %v3954, %v3740
      %v3988 = vsel %vm2711, %v3956, %v3742
      %v3990 = vsel %vm2711, %v3958, %v3744
      %v3992 = vsel %vm2711, %v3960, %v3746
      %v3994 = vsel %vm2711, %v3962, %v3748
      %v3996 = vsel %vm2711, %v3964, %v3750
      %v3998 = vsel %vm2711, %v3966, %v3752
      %v4000 = vsel %vm2711, %v3968, %v3754
      %v4002 = vsel %vm2711, %v3970, %v3756
      %v4004 = vsel %vm2744, %v3972, %v3758
      %v4006 = vsel %vm2744, %v3974, %v3760
      %v4008 = vsel %vm2744, %v3976, %v3762
      %v4010 = vsel %vm2744, %v3978, %v3764
      %v4012 = vsel %vm2744, %v3980, %v3766
      %v4014 = vsel %vm2744, %v3982, %v3768
      %v4016 = vsel %vm2744, %v3984, %v3770
      %v4018 = vsel %vm2744, %v3986, %v3772
      %v4020 = vsel %vm2744, %v3988, %v3774
      %v4022 = vsel %vm2744, %v3990, %v3776
      %v4024 = vsel %vm2744, %v3992, %v3778
      %v4026 = vsel %vm2744, %v3994, %v3780
      %v4028 = vsel %vm2744, %v3996, %v3782
      %v4030 = vsel %vm2744, %v3998, %v3784
      %v4032 = vsel %vm2744, %v4000, %v3786
      %v4033 = vsel %vm2744, %v4002, %v2514
      %v4035 = vsel %vm2777, %v4004, %v3788
      %v4037 = vsel %vm2777, %v4006, %v3790
      %v4039 = vsel %vm2777, %v4008, %v3792
      %v4041 = vsel %vm2777, %v4010, %v3794
      %v4043 = vsel %vm2777, %v4012, %v3796
      %v4045 = vsel %vm2777, %v4014, %v3798
      %v4047 = vsel %vm2777, %v4016, %v3800
      %v4049 = vsel %vm2777, %v4018, %v3802
      %v4051 = vsel %vm2777, %v4020, %v3804
      %v4053 = vsel %vm2777, %v4022, %v3806
      %v4055 = vsel %vm2777, %v4024, %v3808
      %v4057 = vsel %vm2777, %v4026, %v3810
      %v4059 = vsel %vm2777, %v4028, %v3812
      %v4061 = vsel %vm2777, %v4030, %v3814
      %v4063 = vsel %vm2777, %v4032, %v3816
      %v4064 = vsel %vm2777, %v4033, %v2546
      %v4066 = vsel %vm2810, %v4035, %v3818
      %v4068 = vsel %vm2810, %v4037, %v3820
      %v4070 = vsel %vm2810, %v4039, %v3822
      %v4072 = vsel %vm2810, %v4041, %v3824
      %v4074 = vsel %vm2810, %v4043, %v3826
      %v4076 = vsel %vm2810, %v4045, %v3828
      %v4078 = vsel %vm2810, %v4047, %v3830
      %v4080 = vsel %vm2810, %v4049, %v3832
      %v4082 = vsel %vm2810, %v4051, %v3834
      %v4084 = vsel %vm2810, %v4053, %v3836
      %v4086 = vsel %vm2810, %v4055, %v3838
      %v4088 = vsel %vm2810, %v4057, %v3840
      %v4090 = vsel %vm2810, %v4059, %v3842
      %v4092 = vsel %vm2810, %v4061, %v3844
      %v4094 = vsel %vm2810, %v4063, %v3846
      %v4095 = vsel %vm2810, %v4064, %v2578
      %v4096 = vld [vmem:[%s6] sm:$0xf]
      %v4097 = vld [vmem:[%s6 + $0x4] sm:$0xf]
      %v4098 = vld [vmem:[%s6 + $0x8] sm:$0xf]
      %v4099 = vld [vmem:[%s6 + $0xc] sm:$0xf]
      %v4100 = vld [vmem:[%s6 + $0x10] sm:$0xf]
      %v4101 = vld [vmem:[%s6 + $0x14] sm:$0xf]
      %v4102 = vld [vmem:[%s6 + $0x18] sm:$0xf]
      %v4103 = vld [vmem:[%s6 + $0x1c] sm:$0xf]
      %v4104 = vld [vmem:[%s6 + $0x20] sm:$0xf]
      %v4105 = vld [vmem:[%s7] sm:$0x1]
      %v4107 = vperm.slane %v4105, 0
      %v4118 = vunpack.c.l.b16 %v4096
      %v4119 = vunpack.c.l.b16 %v4097
      %v4120 = vunpack.c.l.b16 %v4098
      %v4121 = vunpack.c.l.b16 %v4099
      %v4122 = vunpack.c.l.b16 %v4100
      %v4123 = vunpack.c.l.b16 %v4101
      %v4124 = vunpack.c.l.b16 %v4102
      %v4125 = vunpack.c.l.b16 %v4103
      %v4126 = vunpack.c.l.b16 %v4104
      %v4127 = vpack.c.b16 %v4119, %v4118
      %v4128 = vpack.c.b16 %v4121, %v4120
      %v4129 = vpack.c.b16 %v4123, %v4122
      %v4130 = vpack.c.b16 %v4125, %v4124
      %v4131 = vpack.c.b16 %v4126, %v4126
      %v4136 = vsel %vm2883, %v4066, 0
      %v4138 = vsel %vm2883, %v4068, 0
      %v4140 = vsel %vm2883, %v4070, 0
      %v4142 = vsel %vm2883, %v4072, 0
      %v4144 = vsel %vm2883, %v4074, 0
      %v4146 = vsel %vm2883, %v4076, 0
      %v4148 = vsel %vm2883, %v4078, 0
      %v4150 = vsel %vm2883, %v4080, 0
      %v4152 = vsel %vm2883, %v4082, 0
      %v4154 = vsel %vm2883, %v4084, 0
      %v4156 = vsel %vm2883, %v4086, 0
      %v4158 = vsel %vm2883, %v4088, 0
      %v4160 = vsel %vm2883, %v4090, 0
      %v4162 = vsel %vm2883, %v4092, 0
      %v4164 = vsel %vm2883, %v4094, 0
      %v4166 = vsel %vm2883, %v4095, 0
      %v4169 = vsel %vm2916, %v4131, 0
      %4171 = vmatpush.bf16.msra.mxu0 0
      %4172 = vmatpush.bf16.msra.mxu0 0
      %4173 = vmatpush.bf16.msra.mxu0 0
      %4174 = vmatpush.bf16.msra.mxu0 %v4169
      %4175 = vmatpush.bf16.msra.mxu0 %v4130
      %4176 = vmatpush.bf16.msra.mxu0 %v4129
      %4177 = vmatpush.bf16.msra.mxu0 %v4128
      %4178 = vmatpush.bf16.msra.mxu0 %v4127
      %4179 = vmatmul.bf16.gmra.mxu0 %v4136
      %v4180 = vpop.f32.mrf.mxu0
      %v4181 = vadd.f32 %v4107, %v4180
      %v4182 = vpop.f32.mrf.mxu0
      %v4183 = vadd.f32 %v4107, %v4182
      %4184 = vmatmul.bf16.gmra.mxu0 %v4138
      %v4185 = vpop.f32.mrf.mxu0
      %v4186 = vadd.f32 %v4107, %v4185
      %v4187 = vpop.f32.mrf.mxu0
      %v4188 = vadd.f32 %v4107, %v4187
      %4189 = vmatmul.bf16.gmra.mxu0 %v4140
      %v4190 = vpop.f32.mrf.mxu0
      %v4191 = vadd.f32 %v4107, %v4190
      %v4192 = vpop.f32.mrf.mxu0
      %v4193 = vadd.f32 %v4107, %v4192
      %4194 = vmatmul.bf16.gmra.mxu0 %v4142
      %v4195 = vpop.f32.mrf.mxu0
      %v4196 = vadd.f32 %v4107, %v4195
      %v4197 = vpop.f32.mrf.mxu0
      %v4198 = vadd.f32 %v4107, %v4197
      %4199 = vmatmul.bf16.gmra.mxu0 %v4144
      %v4200 = vpop.f32.mrf.mxu0
      %v4201 = vadd.f32 %v4107, %v4200
      %v4202 = vpop.f32.mrf.mxu0
      %v4203 = vadd.f32 %v4107, %v4202
      %4204 = vmatmul.bf16.gmra.mxu0 %v4146
      %v4205 = vpop.f32.mrf.mxu0
      %v4206 = vadd.f32 %v4107, %v4205
      %v4207 = vpop.f32.mrf.mxu0
      %v4208 = vadd.f32 %v4107, %v4207
      %4209 = vmatmul.bf16.gmra.mxu0 %v4148
      %v4210 = vpop.f32.mrf.mxu0
      %v4211 = vadd.f32 %v4107, %v4210
      %v4212 = vpop.f32.mrf.mxu0
      %v4213 = vadd.f32 %v4107, %v4212
      %4214 = vmatmul.bf16.gmra.mxu0 %v4150
      %v4215 = vpop.f32.mrf.mxu0
      %v4216 = vadd.f32 %v4107, %v4215
      %v4217 = vpop.f32.mrf.mxu0
      %v4218 = vadd.f32 %v4107, %v4217
      %4219 = vmatmul.bf16.gmra.mxu0 %v4152
      %v4220 = vpop.f32.mrf.mxu0
      %v4221 = vadd.f32 %v4107, %v4220
      %v4222 = vpop.f32.mrf.mxu0
      %v4223 = vadd.f32 %v4107, %v4222
      %4224 = vmatmul.bf16.gmra.mxu0 %v4154
      %v4225 = vpop.f32.mrf.mxu0
      %v4226 = vadd.f32 %v4107, %v4225
      %v4227 = vpop.f32.mrf.mxu0
      %v4228 = vadd.f32 %v4107, %v4227
      %4229 = vmatmul.bf16.gmra.mxu0 %v4156
      %v4230 = vpop.f32.mrf.mxu0
      %v4231 = vadd.f32 %v4107, %v4230
      %v4232 = vpop.f32.mrf.mxu0
      %v4233 = vadd.f32 %v4107, %v4232
      %4234 = vmatmul.bf16.gmra.mxu0 %v4158
      %v4235 = vpop.f32.mrf.mxu0
      %v4236 = vadd.f32 %v4107, %v4235
      %v4237 = vpop.f32.mrf.mxu0
      %v4238 = vadd.f32 %v4107, %v4237
      %4239 = vmatmul.bf16.gmra.mxu0 %v4160
      %v4240 = vpop.f32.mrf.mxu0
      %v4241 = vadd.f32 %v4107, %v4240
      %v4242 = vpop.f32.mrf.mxu0
      %v4243 = vadd.f32 %v4107, %v4242
      %4244 = vmatmul.bf16.gmra.mxu0 %v4162
      %v4245 = vpop.f32.mrf.mxu0
      %v4246 = vadd.f32 %v4107, %v4245
      %v4247 = vpop.f32.mrf.mxu0
      %v4248 = vadd.f32 %v4107, %v4247
      %4249 = vmatmul.bf16.gmra.mxu0 %v4164
      %v4250 = vpop.f32.mrf.mxu0
      %v4251 = vadd.f32 %v4107, %v4250
      %v4252 = vpop.f32.mrf.mxu0
      %v4253 = vadd.f32 %v4107, %v4252
      %4254 = vmatmul.bf16.gmra.mxu0 %v4166
      %v4255 = vpop.f32.mrf.mxu0
      %v4256 = vadd.f32 %v4107, %v4255
      %v4257 = vpop.f32.mrf.mxu0
      %v4258 = vadd.f32 %v4107, %v4257
      %4259 = vdwg.mxu0
      %v4260 = vmax.f32 %v4181, 0.0
      %v4261 = vmax.f32 %v4183, 0.0
      %v4262 = vmax.f32 %v4186, 0.0
      %v4263 = vmax.f32 %v4188, 0.0
      %v4264 = vmax.f32 %v4191, 0.0
      %v4265 = vmax.f32 %v4193, 0.0
      %v4266 = vmax.f32 %v4196, 0.0
      %v4267 = vmax.f32 %v4198, 0.0
      %v4268 = vmax.f32 %v4201, 0.0
      %v4269 = vmax.f32 %v4203, 0.0
      %v4270 = vmax.f32 %v4206, 0.0
      %v4271 = vmax.f32 %v4208, 0.0
      %v4272 = vmax.f32 %v4211, 0.0
      %v4273 = vmax.f32 %v4213, 0.0
      %v4274 = vmax.f32 %v4216, 0.0
      %v4275 = vmax.f32 %v4218, 0.0
      %v4276 = vmax.f32 %v4221, 0.0
      %v4277 = vmax.f32 %v4223, 0.0
      %v4278 = vmax.f32 %v4226, 0.0
      %v4279 = vmax.f32 %v4228, 0.0
      %v4280 = vmax.f32 %v4231, 0.0
      %v4281 = vmax.f32 %v4233, 0.0
      %v4282 = vmax.f32 %v4236, 0.0
      %v4283 = vmax.f32 %v4238, 0.0
      %v4284 = vmax.f32 %v4241, 0.0
      %v4285 = vmax.f32 %v4243, 0.0
      %v4286 = vmax.f32 %v4246, 0.0
      %v4287 = vmax.f32 %v4248, 0.0
      %v4288 = vmax.f32 %v4251, 0.0
      %v4289 = vmax.f32 %v4253, 0.0
      %v4290 = vmax.f32 %v4256, 0.0
      %v4291 = vmax.f32 %v4258, 0.0
      %v4292 = vadd.f32 %v4260, %v1698
      %v4293 = vadd.f32 %v4261, %v1699
      %v4294 = vadd.f32 %v4262, %v1700
      %v4295 = vadd.f32 %v4263, %v1701
      %v4296 = vadd.f32 %v4264, %v1702
      %v4297 = vadd.f32 %v4265, %v1703
      %v4298 = vadd.f32 %v4266, %v1704
      %v4299 = vadd.f32 %v4267, %v1705
      %v4300 = vadd.f32 %v4268, %v1706
      %v4301 = vadd.f32 %v4269, %v1707
      %v4302 = vadd.f32 %v4270, %v1708
      %v4303 = vadd.f32 %v4271, %v1709
      %v4304 = vadd.f32 %v4272, %v1710
      %v4305 = vadd.f32 %v4273, %v1711
      %v4306 = vadd.f32 %v4274, %v1712
      %v4307 = vadd.f32 %v4275, %v1713
      %v4308 = vadd.f32 %v4276, %v1714
      %v4309 = vadd.f32 %v4277, %v1715
      %v4310 = vadd.f32 %v4278, %v1716
      %v4311 = vadd.f32 %v4279, %v1717
      %v4312 = vadd.f32 %v4280, %v1718
      %v4313 = vadd.f32 %v4281, %v1719
      %v4314 = vadd.f32 %v4282, %v1720
      %v4315 = vadd.f32 %v4283, %v1721
      %v4316 = vadd.f32 %v4284, %v1722
      %v4317 = vadd.f32 %v4285, %v1723
      %v4318 = vadd.f32 %v4286, %v1724
      %v4319 = vadd.f32 %v4287, %v1725
      %v4320 = vadd.f32 %v4288, %v1726
      %v4321 = vadd.f32 %v4289, %v1727
      %v4322 = vadd.f32 %v4290, %v1728
      %v4323 = vadd.f32 %v4291, %v1729
      %v4324 = vpack.c.bf16 %v4293, %v4292
      %v4325 = vpack.c.bf16 %v4295, %v4294
      %v4326 = vpack.c.bf16 %v4297, %v4296
      %v4327 = vpack.c.bf16 %v4299, %v4298
      %v4328 = vpack.c.bf16 %v4301, %v4300
      %v4329 = vpack.c.bf16 %v4303, %v4302
      %v4330 = vpack.c.bf16 %v4305, %v4304
      %v4331 = vpack.c.bf16 %v4307, %v4306
      %v4332 = vpack.c.bf16 %v4309, %v4308
      %v4333 = vpack.c.bf16 %v4311, %v4310
      %v4334 = vpack.c.bf16 %v4313, %v4312
      %v4335 = vpack.c.bf16 %v4315, %v4314
      %v4336 = vpack.c.bf16 %v4317, %v4316
      %v4337 = vpack.c.bf16 %v4319, %v4318
      %v4338 = vpack.c.bf16 %v4321, %v4320
      %v4339 = vpack.c.bf16 %v4323, %v4322
      %v4340 = vld [vmem:[%s8] sm:$0xf]
      %v4341 = vld [vmem:[%s9] sm:$0x1]
      %v4343 = vperm.slane %v4341, 0
      %v4346 = vsel %vm2579, %v4324, 0
      %v4349 = vsel %vm2579, %v4325, 0
      %v4352 = vsel %vm2579, %v4326, 0
      %v4355 = vsel %vm2579, %v4327, 0
      %v4358 = vsel %vm2579, %v4328, 0
      %v4361 = vsel %vm2579, %v4329, 0
      %v4364 = vsel %vm2579, %v4330, 0
      %v4367 = vsel %vm2579, %v4331, 0
      %v4370 = vsel %vm2579, %v4332, 0
      %v4373 = vsel %vm2579, %v4333, 0
      %v4376 = vsel %vm2579, %v4334, 0
      %v4379 = vsel %vm2579, %v4335, 0
      %v4382 = vsel %vm2579, %v4336, 0
      %v4385 = vsel %vm2579, %v4337, 0
      %v4388 = vsel %vm2579, %v4338, 0
      %v4391 = vsel %vm2579, %v4339, 0
      %v4394 = vsel %vm2916, %v4340, 0
      %4396 = vmatpush.bf16.msra.mxu0 0
      %4397 = vmatpush.bf16.msra.mxu0 0
      %4398 = vmatpush.bf16.msra.mxu0 0
      %4399 = vmatpush.bf16.msra.mxu0 0
      %4400 = vmatpush.bf16.msra.mxu0 0
      %4401 = vmatpush.bf16.msra.mxu0 0
      %4402 = vmatpush.bf16.msra.mxu0 0
      %4403 = vmatpush.bf16.msra.mxu0 %v4394
      %4404 = vmatmul.bf16.gmra.mxu0 %v4346
      %v4405 = vpop.f32.mrf.mxu0
      %v4406 = vadd.f32 %v4343, %v4405
      %v4407 = vpop.f32.mrf.mxu0
      %v4408 = vadd.f32 %v4343, %v4407
      %4409 = vmatmul.bf16.gmra.mxu0 %v4349
      %v4410 = vpop.f32.mrf.mxu0
      %v4411 = vadd.f32 %v4343, %v4410
      %v4412 = vpop.f32.mrf.mxu0
      %v4413 = vadd.f32 %v4343, %v4412
      %4414 = vmatmul.bf16.gmra.mxu0 %v4352
      %v4415 = vpop.f32.mrf.mxu0
      %v4416 = vadd.f32 %v4343, %v4415
      %v4417 = vpop.f32.mrf.mxu0
      %v4418 = vadd.f32 %v4343, %v4417
      %4419 = vmatmul.bf16.gmra.mxu0 %v4355
      %v4420 = vpop.f32.mrf.mxu0
      %v4421 = vadd.f32 %v4343, %v4420
      %v4422 = vpop.f32.mrf.mxu0
      %v4423 = vadd.f32 %v4343, %v4422
      %4424 = vmatmul.bf16.gmra.mxu0 %v4358
      %v4425 = vpop.f32.mrf.mxu0
      %v4426 = vadd.f32 %v4343, %v4425
      %v4427 = vpop.f32.mrf.mxu0
      %v4428 = vadd.f32 %v4343, %v4427
      %4429 = vmatmul.bf16.gmra.mxu0 %v4361
      %v4430 = vpop.f32.mrf.mxu0
      %v4431 = vadd.f32 %v4343, %v4430
      %v4432 = vpop.f32.mrf.mxu0
      %v4433 = vadd.f32 %v4343, %v4432
      %4434 = vmatmul.bf16.gmra.mxu0 %v4364
      %v4435 = vpop.f32.mrf.mxu0
      %v4436 = vadd.f32 %v4343, %v4435
      %v4437 = vpop.f32.mrf.mxu0
      %v4438 = vadd.f32 %v4343, %v4437
      %4439 = vmatmul.bf16.gmra.mxu0 %v4367
      %v4440 = vpop.f32.mrf.mxu0
      %v4441 = vadd.f32 %v4343, %v4440
      %v4442 = vpop.f32.mrf.mxu0
      %v4443 = vadd.f32 %v4343, %v4442
      %4444 = vmatmul.bf16.gmra.mxu0 %v4370
      %v4445 = vpop.f32.mrf.mxu0
      %v4446 = vadd.f32 %v4343, %v4445
      %v4447 = vpop.f32.mrf.mxu0
      %v4448 = vadd.f32 %v4343, %v4447
      %4449 = vmatmul.bf16.gmra.mxu0 %v4373
      %v4450 = vpop.f32.mrf.mxu0
      %v4451 = vadd.f32 %v4343, %v4450
      %v4452 = vpop.f32.mrf.mxu0
      %v4453 = vadd.f32 %v4343, %v4452
      %4454 = vmatmul.bf16.gmra.mxu0 %v4376
      %v4455 = vpop.f32.mrf.mxu0
      %v4456 = vadd.f32 %v4343, %v4455
      %v4457 = vpop.f32.mrf.mxu0
      %v4458 = vadd.f32 %v4343, %v4457
      %4459 = vmatmul.bf16.gmra.mxu0 %v4379
      %v4460 = vpop.f32.mrf.mxu0
      %v4461 = vadd.f32 %v4343, %v4460
      %v4462 = vpop.f32.mrf.mxu0
      %v4463 = vadd.f32 %v4343, %v4462
      %4464 = vmatmul.bf16.gmra.mxu0 %v4382
      %v4465 = vpop.f32.mrf.mxu0
      %v4466 = vadd.f32 %v4343, %v4465
      %v4467 = vpop.f32.mrf.mxu0
      %v4468 = vadd.f32 %v4343, %v4467
      %4469 = vmatmul.bf16.gmra.mxu0 %v4385
      %v4470 = vpop.f32.mrf.mxu0
      %v4471 = vadd.f32 %v4343, %v4470
      %v4472 = vpop.f32.mrf.mxu0
      %v4473 = vadd.f32 %v4343, %v4472
      %4474 = vmatmul.bf16.gmra.mxu0 %v4388
      %v4475 = vpop.f32.mrf.mxu0
      %v4476 = vadd.f32 %v4343, %v4475
      %v4477 = vpop.f32.mrf.mxu0
      %v4478 = vadd.f32 %v4343, %v4477
      %4479 = vmatmul.bf16.gmra.mxu0 %v4391
      %v4480 = vpop.f32.mrf.mxu0
      %v4481 = vadd.f32 %v4343, %v4480
      %v4482 = vpop.f32.mrf.mxu0
      %v4483 = vadd.f32 %v4343, %v4482
      %4484 = vdwg.mxu0
      %4485 = vst [vmem:[%s379] sm:$0xff] %v4406
      %4486 = vst [vmem:[%s379 + $0x8] sm:$0xff] %v4408
      %4487 = vst [vmem:[%s379 + $0x10] sm:$0xff] %v4411
      %4488 = vst [vmem:[%s379 + $0x18] sm:$0xff] %v4413
      %4489 = vst [vmem:[%s379 + $0x20] sm:$0xff] %v4416
      %4490 = vst [vmem:[%s379 + $0x28] sm:$0xff] %v4418
      %4491 = vst [vmem:[%s379 + $0x30] sm:$0xff] %v4421
      %4492 = vst [vmem:[%s379 + $0x38] sm:$0xff] %v4423
      %4493 = vst [vmem:[%s379 + $0x40] sm:$0xff] %v4426
      %4494 = vst [vmem:[%s379 + $0x48] sm:$0xff] %v4428
      %4495 = vst [vmem:[%s379 + $0x50] sm:$0xff] %v4431
      %4496 = vst [vmem:[%s379 + $0x58] sm:$0xff] %v4433
      %4497 = vst [vmem:[%s379 + $0x60] sm:$0xff] %v4436
      %4498 = vst [vmem:[%s379 + $0x68] sm:$0xff] %v4438
      %4499 = vst [vmem:[%s379 + $0x70] sm:$0xff] %v4441
      %4500 = vst [vmem:[%s379 + $0x78] sm:$0xff] %v4443
      %4501 = vst [vmem:[%s379 + $0x80] sm:$0xff] %v4446
      %4502 = vst [vmem:[%s379 + $0x88] sm:$0xff] %v4448
      %4503 = vst [vmem:[%s379 + $0x90] sm:$0xff] %v4451
      %4504 = vst [vmem:[%s379 + $0x98] sm:$0xff] %v4453
      %4505 = vst [vmem:[%s379 + $0xa0] sm:$0xff] %v4456
      %4506 = vst [vmem:[%s379 + $0xa8] sm:$0xff] %v4458
      %4507 = vst [vmem:[%s379 + $0xb0] sm:$0xff] %v4461
      %4508 = vst [vmem:[%s379 + $0xb8] sm:$0xff] %v4463
      %4509 = vst [vmem:[%s379 + $0xc0] sm:$0xff] %v4466
      %4510 = vst [vmem:[%s379 + $0xc8] sm:$0xff] %v4468
      %4511 = vst [vmem:[%s379 + $0xd0] sm:$0xff] %v4471
      %4512 = vst [vmem:[%s379 + $0xd8] sm:$0xff] %v4473
      %4513 = vst [vmem:[%s379 + $0xe0] sm:$0xff] %v4476
      %4514 = vst [vmem:[%s379 + $0xe8] sm:$0xff] %v4478
      %4515 = vst [vmem:[%s379 + $0xf0] sm:$0xff] %v4481
      %4516 = vst [vmem:[%s379 + $0xf8] sm:$0xff] %v4483
      %p4517 = scmp.lt.s32.totalorder %s21, 1
      %s4518 = scalar_select %p4517, %s21, 1
      %s4519 = smul.addr %s4518, 32
      %s4520 = smul.addr %s4519, 8
      %s4521 = scalar_lea.vmem %s10, %s4520
      // Predicated region
      $region61: #{res_up_pallas.1} parent=59 // pred_check
        %p4522 = pneg %p259
      $region62: #{res_up_pallas.1} parent=59 // pred_check_branch
        %4524 = sbr.rel (%p4522) target = $region64
      $region63: #{res_up_pallas.1} parent=59 // pred_region
        _
      $region64: #{res_up_pallas.1} parent=59 // pred_fallthru
        _
    $region60: #{res_up_pallas.1} parent=5 // pred_fallthru
      _
    %p4525 = scmp.le.s32.totalorder 2, %s16
    // Predicated region
    $region65: #{res_up_pallas.1} parent=5 // pred_check
      %p4526 = pneg %p4525
    $region66: #{res_up_pallas.1} parent=5 // pred_check_branch
      %4528 = sbr.rel (%p4526) target = $region68
    $region67: #{res_up_pallas.1} parent=5 // pred_region
      %s4529 = ssub.s32 %s16, 2
      // Predicated region
      $region69: #{res_up_pallas.1} parent=67 // pred_check
        %p4530 = pneg %p265
      $region70: #{res_up_pallas.1} parent=67 // pred_check_branch
        %4532 = sbr.rel (%p4530) target = $region72
      $region71: #{res_up_pallas.1} parent=67 // pred_region
        %p4533 = scmp.lt.s32.totalorder %s22, 1
        %s4534 = scalar_select %p4533, %s22, 1
        %s4535 = smul.addr %s4534, 32
        %s4536 = smul.addr %s4535, 8
        %s4537 = scalar_lea.vmem %s10, %s4536
      $region72: #{res_up_pallas.1} parent=67 // pred_fallthru
        _
    $region68: #{res_up_pallas.1} parent=5 // pred_fallthru
      _
  $region6: #{res_up_pallas.1} parent=0 // loop_footer
    %s20 = sadd.s32 1, %s16
  $region7: #{res_up_pallas.1} parent=0 // loop_footer_branch
    %15 = sbr.rel target = $region3
  $region8: #{res_up_pallas.1} parent=0 // loop_exit
    _

</llo_original>
